<compile_context>
chip_gen: v5e
topology: v5e:2x2
jax: 0.10.0
libtpu: 0.0.40
codegen_flags: <defaults>
</compile_context>

<pallas_src>
import math

import jax
import jax.numpy as jnp
from jax.experimental import pallas as pl
from jax.experimental.pallas import tpu as pltpu

# ----------------------- model hyper-parameters (small, synthetic) -----------------------
D_MODEL = 32
HEADS = 4
DK = D_MODEL // HEADS
NUM_LAYERS = 2
D_FF = 64          # FeedForward hidden dim
VOCAB = 16         # len(word_map)
EPS = 1e-5         # nn.LayerNorm default
NEG_INF = -1e9
MAX_LEN = 64
LANE = 128         # every packed-slab entry occupies one 128-lane column block


# ===================================== packed-slab layouts =====================================

def _build_layouts():
    w32, w64, brow = [], [], []
    for l in range(NUM_LAYERS):
        p = f"enc{l}"
        w32 += [(f"{p}_wqkv", 3 * D_MODEL), (f"{p}_wo", D_MODEL), (f"{p}_w1", D_FF)]
        w64 += [(f"{p}_w2", D_MODEL)]
        brow += [(f"{p}_bqkv", 3 * D_MODEL), (f"{p}_bo", D_MODEL),
                 (f"{p}_b1", D_FF), (f"{p}_b2", D_MODEL),
                 (f"{p}_n1_g", D_MODEL), (f"{p}_n1_b", D_MODEL),
                 (f"{p}_n2_g", D_MODEL), (f"{p}_n2_b", D_MODEL)]
    for l in range(NUM_LAYERS):
        p = f"dec{l}"
        w32 += [(f"{p}_sa_wqkv", 3 * D_MODEL), (f"{p}_sa_wo", D_MODEL),
                (f"{p}_ca_wqkv", 3 * D_MODEL), (f"{p}_ca_wo", D_MODEL),
                (f"{p}_w1", D_FF)]
        w64 += [(f"{p}_w2", D_MODEL)]
        brow += [(f"{p}_sa_bqkv", 3 * D_MODEL), (f"{p}_sa_bo", D_MODEL),
                 (f"{p}_ca_bqkv", 3 * D_MODEL), (f"{p}_ca_bo", D_MODEL),
                 (f"{p}_b1", D_FF), (f"{p}_b2", D_MODEL),
                 (f"{p}_n1_g", D_MODEL), (f"{p}_n1_b", D_MODEL),
                 (f"{p}_n2_g", D_MODEL), (f"{p}_n2_b", D_MODEL),
                 (f"{p}_n3_g", D_MODEL), (f"{p}_n3_b", D_MODEL)]
    w32 += [("logit_w", LANE),     # vocab dim padded to a full 128-lane block
            ("embed", D_MODEL)]    # embed table padded to 32 rows (one-hot over 32 classes)
    brow += [("logit_b", LANE)]    # pad lanes carry -1e9 so log_softmax ignores them
    return w32, w64, brow


W32_ENTRIES, W64_ENTRIES, BROW_ENTRIES = _build_layouts()
W32_IDX = {n: i for i, (n, _) in enumerate(W32_ENTRIES)}
W32_W = dict(W32_ENTRIES)
W64_IDX = {n: i for i, (n, _) in enumerate(W64_ENTRIES)}
W64_W = dict(W64_ENTRIES)
BROW_IDX = {n: i for i, (n, _) in enumerate(BROW_ENTRIES)}
BROW_W = dict(BROW_ENTRIES)


# ===================================== fused forward kernel =====================================

def _transformer_kernel(src_ids_ref, tgt_ids_ref, pe_src_ref, pe_tgt_ref,
                        enc_bias_ref, dec_bias_ref, cross_bias_ref,
                        w32_ref, w64_ref, brow_ref, out_ref):
    f32 = jnp.float32

    # ---- static, lane-aligned views into the packed weight slabs (no copies) ----
    def w32(name):
        i, w = W32_IDX[name], W32_W[name]
        return w32_ref[:, i * LANE: i * LANE + w]

    def w64(name):
        i, w = W64_IDX[name], W64_W[name]
        return w64_ref[:, i * LANE: i * LANE + w]

    def brow(name):
        i, w = BROW_IDX[name], BROW_W[name]
        return brow_ref[i:i + 1, :w]                       # [1, w] broadcastable row

    def layernorm(x, name):
        g, b = brow(name + "_g"), brow(name + "_b")
        mu = jnp.mean(x, axis=-1, keepdims=True)
        var = jnp.mean(jnp.square(x - mu), axis=-1, keepdims=True)
        return (x - mu) * jax.lax.rsqrt(var + EPS) * g + b

    def embed(ids_ref, pe_ref):
        ids = ids_ref[...]                                  # [M, 1] int32
        rows = ids.shape[0]
        classes = jax.lax.broadcasted_iota(jnp.int32, (rows, D_MODEL), 1)
        onehot = (classes == ids).astype(f32)               # [M, 32]; rows >= VOCAB never hot
        table = w32("embed")                                 # [32, 32] (zero-padded rows)
        return (jnp.dot(onehot, table, preferred_element_type=f32) * math.sqrt(D_MODEL)
                + pe_ref[...])

    def mha(xq, xkv, bias, prefix, self_attn):
        """Multi-head attention on batch-folded [M, D] activations.

        bias: additive [Mq, Mk] mask (0 keep, -1e9 masked) — already includes the
        block-diagonal batch structure, so the whole folded batch is one matmul.
        """
        wqkv, bqkv = w32(prefix + "_wqkv"), brow(prefix + "_bqkv")
        if self_attn:
            qkv = jnp.dot(xq, wqkv, preferred_element_type=f32) + bqkv
            q = qkv[:, 0:D_MODEL]
            k = qkv[:, D_MODEL:2 * D_MODEL]
            v = qkv[:, 2 * D_MODEL:3 * D_MODEL]
        else:                                               # cross-attention: K/V from memory
            q = jnp.dot(xq, wqkv[:, 0:D_MODEL], preferred_element_type=f32) + bqkv[:, 0:D_MODEL]
            kv = (jnp.dot(xkv, wqkv[:, D_MODEL:3 * D_MODEL], preferred_element_type=f32)
                  + bqkv[:, D_MODEL:3 * D_MODEL])
            k = kv[:, 0:D_MODEL]
            v = kv[:, D_MODEL:2 * D_MODEL]

        scale = 1.0 / math.sqrt(DK)
        ctx_parts = []
        for h in range(HEADS):
            lo, hi = h * DK, (h + 1) * DK
            # q_h @ k_h^T without an explicit transpose: contract dim 1 of both operands.
            s = jax.lax.dot_general(q[:, lo:hi], k[:, lo:hi],
                                    (((1,), (1,)), ((), ())),
                                    preferred_element_type=f32) * scale + bias
            mx = jnp.max(s, axis=-1, keepdims=True)
            p = jnp.exp(s - mx)
            # approx reciprocal (EUP slot); fully masked rows give a uniform softmax (finite).
            p = p * pl.reciprocal(jnp.sum(p, axis=-1, keepdims=True), approx=True)
            ctx_parts.append(jnp.dot(p, v[:, lo:hi], preferred_element_type=f32))
        ctx = jnp.concatenate(ctx_parts, axis=1)            # [Mq, D]
        return (jnp.dot(ctx, w32(prefix + "_wo"), preferred_element_type=f32)
                + brow(prefix + "_bo"))

    def ffn(x, prefix):
        h = jnp.maximum(
            jnp.dot(x, w32(prefix + "_w1"), preferred_element_type=f32) + brow(prefix + "_b1"),
            0.0)
        return jnp.dot(h, w64(prefix + "_w2"), preferred_element_type=f32) + brow(prefix + "_b2")

    # ---------------- encoder (post-LN, residual) ----------------
    x = embed(src_ids_ref, pe_src_ref)                      # [B*Ss, D]
    enc_bias = enc_bias_ref[...]
    for l in range(NUM_LAYERS):
        p = f"enc{l}"
        x = layernorm(mha(x, x, enc_bias, p, True) + x, p + "_n1")
        x = layernorm(ffn(x, p) + x, p + "_n2")

    # ---------------- decoder ----------------
    y = embed(tgt_ids_ref, pe_tgt_ref)                      # [B*St, D]
    dec_bias = dec_bias_ref[...]
    cross_bias = cross_bias_ref[...]
    for l in range(NUM_LAYERS):
        p = f"dec{l}"
        y = layernorm(mha(y, y, dec_bias, p + "_sa", True) + y, p + "_n1")
        y = layernorm(mha(y, x, cross_bias, p + "_ca", False) + y, p + "_n2")
        y = layernorm(ffn(y, p) + y, p + "_n3")

    # ---------------- logits + log_softmax (lane-dense 128-wide store) ----------------
    logits = jnp.dot(y, w32("logit_w"), preferred_element_type=f32) + brow("logit_b")
    mx = jnp.max(logits, axis=-1, keepdims=True)
    sh = logits - mx
    lse = jnp.log(jnp.sum(jnp.exp(sh), axis=-1, keepdims=True))
    out_ref[...] = sh - lse                                  # [B*St, 128]; wrapper slices :VOCAB


# ===================================== wrapper (JAX glue) =====================================

def make_pe(max_len, d_model):
    pos = jnp.arange(max_len, dtype=jnp.float32)[:, None]
    div = jnp.exp(jnp.arange(0, d_model, 2, dtype=jnp.float32) *
                  (-math.log(10000.0) / d_model))
    pe = jnp.zeros((max_len, d_model), jnp.float32)
    pe = pe.at[:, 0::2].set(jnp.sin(pos * div))
    pe = pe.at[:, 1::2].set(jnp.cos(pos * div))
    return pe


def _fold_bias(bias):
    """Per-batch additive bias [B, Sq, Sk] -> folded [B*Sq, B*Sk] with cross-batch blocks masked."""
    B, Sq, Sk = bias.shape
    same_batch = jnp.eye(B, dtype=jnp.bool_)[:, None, :, None]            # [B,1,B,1]
    full = jnp.where(same_batch, bias[:, :, None, :], NEG_INF)            # [B,Sq,B,Sk]
    return full.reshape(B * Sq, B * Sk)


def transformer_forward(packed, src_words, src_mask, tgt_words, tgt_mask):
    """src_mask: [B,1,Ss] int (1=keep); tgt_mask: [B,St,St] int."""
    w32_slab, w64_slab, brow_slab, pe = packed
    B, Ss = src_words.shape
    _, St = tgt_words.shape

    src_ids = src_words.reshape(B * Ss, 1).astype(jnp.int32)
    tgt_ids = tgt_words.reshape(B * St, 1).astype(jnp.int32)
    pe_src = jnp.tile(pe[:Ss], (B, 1))                                    # [B*Ss, D]
    pe_tgt = jnp.tile(pe[:St], (B, 1))                                    # [B*St, D]

    src_bias = (1.0 - src_mask.astype(jnp.float32)) * NEG_INF             # [B,1,Ss]
    tgt_bias = (1.0 - tgt_mask.astype(jnp.float32)) * NEG_INF             # [B,St,St]
    enc_bias = _fold_bias(jnp.broadcast_to(src_bias, (B, Ss, Ss)))        # [B*Ss, B*Ss]
    dec_bias = _fold_bias(tgt_bias)                                       # [B*St, B*St]
    cross_bias = _fold_bias(jnp.broadcast_to(src_bias, (B, St, Ss)))      # [B*St, B*Ss]

    # Single invocation (empty grid): every operand is a whole-array block resident in VMEM.
    out = pl.pallas_call(
        _transformer_kernel,
        out_shape=jax.ShapeDtypeStruct((B * St, LANE), jnp.float32),
        compiler_params=pltpu.CompilerParams(vmem_limit_bytes=32 * 1024 * 1024),
    )(src_ids, tgt_ids, pe_src, pe_tgt, enc_bias, dec_bias, cross_bias,
      w32_slab, w64_slab, brow_slab)

    return out.reshape(B, St, LANE)[:, :, :VOCAB]


# ===================================== parameters =====================================

def init_params(key):
    keys = iter(jax.random.split(key, 64))

    def w(shape):
        return jax.random.normal(next(keys), shape, jnp.float32) * 0.02

    params = {}
    for name, width in W32_ENTRIES:
        if name == "logit_w":
            params[name] = w((D_MODEL, VOCAB))
        elif name == "embed":
            params[name] = w((VOCAB, D_MODEL))
        else:
            params[name] = w((D_MODEL, width))
    for name, width in W64_ENTRIES:
        params[name] = w((D_FF, width))
    for name, width in BROW_ENTRIES:
        if name == "logit_b":
            params[name] = jnp.zeros((VOCAB,), jnp.float32)
        elif name.endswith("_g"):
            params[name] = jnp.ones((width,), jnp.float32)
        else:
            params[name] = jnp.zeros((width,), jnp.float32)
    return params


def pack_params(params):
    """Pack natural-shaped weights into three lane-aligned f32 slabs + positional encodings."""
    n32 = len(W32_ENTRIES)
    w32 = jnp.zeros((D_MODEL, n32 * LANE), jnp.float32)
    for i, (name, width) in enumerate(W32_ENTRIES):
        if name == "logit_w":
            blk = jnp.zeros((D_MODEL, LANE), jnp.float32).at[:, :VOCAB].set(params[name])
        elif name == "embed":
            blk = jnp.zeros((D_MODEL, D_MODEL), jnp.float32).at[:VOCAB, :].set(params[name])
        else:
            blk = params[name]
        w32 = w32.at[:, i * LANE: i * LANE + blk.shape[1]].set(blk)

    n64 = len(W64_ENTRIES)
    w64 = jnp.zeros((D_FF, n64 * LANE), jnp.float32)
    for i, (name, width) in enumerate(W64_ENTRIES):
        w64 = w64.at[:, i * LANE: i * LANE + width].set(params[name])

    nb = len(BROW_ENTRIES)
    brow = jnp.zeros((nb, LANE), jnp.float32)
    for i, (name, width) in enumerate(BROW_ENTRIES):
        if name == "logit_b":
            row = jnp.full((LANE,), NEG_INF, jnp.float32).at[:VOCAB].set(params[name])
        else:
            row = jnp.zeros((LANE,), jnp.float32).at[:width].set(params[name])
        brow = brow.at[i].set(row)

    return w32, w64, brow, make_pe(MAX_LEN, D_MODEL)


# ===================================== pure-JAX reference =====================================

def reference_forward(params, src_words, src_mask, tgt_words, tgt_mask):
    B, Ss = src_words.shape
    _, St = tgt_words.shape
    pe = make_pe(MAX_LEN, D_MODEL)

    def embed(words, S):
        return params["embed"][words] * math.sqrt(D_MODEL) + pe[:S][None]

    def ln(x, name):
        g, b = params[name + "_g"], params[name + "_b"]
        mu = jnp.mean(x, -1, keepdims=True)
        var = jnp.mean((x - mu) ** 2, -1, keepdims=True)
        return (x - mu) * jax.lax.rsqrt(var + EPS) * g + b

    def mha(xq, xkv, bias, prefix):
        wqkv, bqkv = params[prefix + "_wqkv"], params[prefix + "_bqkv"]
        q = xq @ wqkv[:, :D_MODEL] + bqkv[:D_MODEL]
        k = xkv @ wqkv[:, D_MODEL:2 * D_MODEL] + bqkv[D_MODEL:2 * D_MODEL]
        v = xkv @ wqkv[:, 2 * D_MODEL:] + bqkv[2 * D_MODEL:]

        def split(t):
            return t.reshape(t.shape[0], t.shape[1], HEADS, DK).transpose(0, 2, 1, 3)

        s = jnp.einsum("bhqd,bhkd->bhqk", split(q), split(k)) / math.sqrt(DK)
        s = s + bias[:, None]
        p = jax.nn.softmax(s, axis=-1)
        ctx = jnp.einsum("bhqk,bhkd->bhqd", p, split(v))
        ctx = ctx.transpose(0, 2, 1, 3).reshape(xq.shape[0], xq.shape[1], D_MODEL)
        return ctx @ params[prefix + "_wo"] + params[prefix + "_bo"]

    def ffn(x, prefix):
        h = jax.nn.relu(x @ params[prefix + "_w1"] + params[prefix + "_b1"])
        return h @ params[prefix + "_w2"] + params[prefix + "_b2"]

    src_bias = (1.0 - src_mask.astype(jnp.float32)) * NEG_INF
    tgt_bias = (1.0 - tgt_mask.astype(jnp.float32)) * NEG_INF

    x = embed(src_words, Ss)
    for l in range(NUM_LAYERS):
        p = f"enc{l}"
        x = ln(mha(x, x, src_bias, p) + x, p + "_n1")
        x = ln(ffn(x, p) + x, p + "_n2")
    y = embed(tgt_words, St)
    for l in range(NUM_LAYERS):
        p = f"dec{l}"
        y = ln(mha(y, y, tgt_bias, p + "_sa") + y, p + "_n1")
        y = ln(mha(y, x, src_bias, p + "_ca") + y, p + "_n2")
        y = ln(ffn(y, p) + y, p + "_n3")
    logits = y @ params["logit_w"] + params["logit_b"]
    return jax.nn.log_softmax(logits, axis=-1)


# ===================================== main =====================================

if __name__ == "__main__":
    root = jax.random.PRNGKey(0)
    kp, ks, kt = jax.random.split(root, 3)

    params = init_params(kp)
    packed = pack_params(params)

    B, Ss, St = 2, 8, 8
    src_words = jax.random.randint(ks, (B, Ss), 0, VOCAB)
    tgt_words = jax.random.randint(kt, (B, St), 0, VOCAB)

    # pad-token mask (token 0 = pad) and causal target mask, as in the reference usage
    src_mask = (src_words != 0).astype(jnp.int32)[:, None, :]                      # [B,1,Ss]
    causal = jnp.tril(jnp.ones((St, St), jnp.int32))
    tgt_mask = (tgt_words != 0).astype(jnp.int32)[:, None, :] * causal[None]       # [B,St,St]

    fwd = jax.jit(transformer_forward)
    out = fwd(packed, src_words, src_mask, tgt_words, tgt_mask)
    jax.block_until_ready(out)

    assert out.shape == (B, St, VOCAB)
    assert bool(jnp.all(jnp.isfinite(out)))

    ref = reference_forward(params, src_words, src_mask, tgt_words, tgt_mask)
    max_err = float(jnp.max(jnp.abs(out - ref)))
    assert max_err < 5e-2, f"kernel/reference mismatch: {max_err}"

    print("KERNEL_OK")
</pallas_src>

<mosaic_0001>
module attributes {stable_mosaic.version = 11 : i64} {
  func.func @_transformer_kernel(%arg0: memref<16x1xi32, #tpu.memory_space<vmem>>, %arg1: memref<16x1xi32, #tpu.memory_space<vmem>>, %arg2: memref<16x32xf32, #tpu.memory_space<vmem>>, %arg3: memref<16x32xf32, #tpu.memory_space<vmem>>, %arg4: memref<16x16xf32, #tpu.memory_space<vmem>>, %arg5: memref<16x16xf32, #tpu.memory_space<vmem>>, %arg6: memref<16x16xf32, #tpu.memory_space<vmem>>, %arg7: memref<32x2304xf32, #tpu.memory_space<vmem>>, %arg8: memref<64x512xf32, #tpu.memory_space<vmem>>, %arg9: memref<41x128xf32, #tpu.memory_space<vmem>>, %arg10: memref<16x128xf32, #tpu.memory_space<vmem>>) attributes {dimension_semantics = [], scalar_prefetch = 0 : i64, scratch_operands = 0 : i64, tpu.core_type = #tpu.core_type<tc>} {
    %c0 = arith.constant 0 : index
    %c0_0 = arith.constant 0 : index
    %0 = vector.load %arg0[%c0, %c0_0] : memref<16x1xi32, #tpu.memory_space<vmem>>, vector<16x1xi32>
    %1 = tpu.iota {dimensions = array<i32: 1>} : vector<16x32xi32>
    %2 = vector.broadcast %0 : vector<16x1xi32> to vector<16x32xi32>
    %3 = arith.cmpi eq, %1, %2 : vector<16x32xi32>
    %4 = arith.extui %3 : vector<16x32xi1> to vector<16x32xi32>
    %5 = arith.sitofp %4 : vector<16x32xi32> to vector<16x32xf32>
    %c0_1 = arith.constant 0 : index
    %c2176 = arith.constant 2176 : index
    %6 = vector.load %arg7[%c0_1, %c2176] : memref<32x2304xf32, #tpu.memory_space<vmem>>, vector<32x32xf32>
    %cst = arith.constant dense<0.000000e+00> : vector<16x32xf32>
    %7 = tpu.matmul %5, %6, %cst {dimension_numbers = #tpu.dot_dimension_numbers<[1], [0], [0], [1], [0, 0, 1, 1], [], []>} : vector<16x32xf32>, vector<32x32xf32>, vector<16x32xf32> -> vector<16x32xf32>
    %cst_2 = arith.constant 5.65685415 : f32
    %8 = vector.broadcast %cst_2 : f32 to vector<16x32xf32>
    %9 = arith.mulf %7, %8 : vector<16x32xf32>
    %c0_3 = arith.constant 0 : index
    %c0_4 = arith.constant 0 : index
    %10 = vector.load %arg2[%c0_3, %c0_4] : memref<16x32xf32, #tpu.memory_space<vmem>>, vector<16x32xf32>
    %11 = arith.addf %9, %10 : vector<16x32xf32>
    %c0_5 = arith.constant 0 : index
    %c0_6 = arith.constant 0 : index
    %12 = vector.load %arg4[%c0_5, %c0_6] : memref<16x16xf32, #tpu.memory_space<vmem>>, vector<16x16xf32>
    %c0_7 = arith.constant 0 : index
    %c0_8 = arith.constant 0 : index
    %13 = vector.load %arg7[%c0_7, %c0_8] : memref<32x2304xf32, #tpu.memory_space<vmem>>, vector<32x96xf32>
    %c0_9 = arith.constant 0 : index
    %c0_10 = arith.constant 0 : index
    %14 = vector.load %arg9[%c0_9, %c0_10] : memref<41x128xf32, #tpu.memory_space<vmem>>, vector<1x96xf32>
    %cst_11 = arith.constant dense<0.000000e+00> : vector<16x96xf32>
    %15 = tpu.matmul %11, %13, %cst_11 {dimension_numbers = #tpu.dot_dimension_numbers<[1], [0], [0], [1], [0, 0, 1, 1], [], []>} : vector<16x32xf32>, vector<32x96xf32>, vector<16x96xf32> -> vector<16x96xf32>
    %16 = vector.broadcast %14 : vector<1x96xf32> to vector<16x96xf32>
    %17 = arith.addf %15, %16 : vector<16x96xf32>
    %18 = vector.extract_strided_slice %17 {offsets = [0, 0], sizes = [16, 32], strides = [1, 1]} : vector<16x96xf32> to vector<16x32xf32>
    %19 = vector.extract_strided_slice %17 {offsets = [0, 32], sizes = [16, 32], strides = [1, 1]} : vector<16x96xf32> to vector<16x32xf32>
    %20 = vector.extract_strided_slice %17 {offsets = [0, 64], sizes = [16, 32], strides = [1, 1]} : vector<16x96xf32> to vector<16x32xf32>
    %21 = vector.extract_strided_slice %18 {offsets = [0, 0], sizes = [16, 8], strides = [1, 1]} : vector<16x32xf32> to vector<16x8xf32>
    %22 = vector.extract_strided_slice %19 {offsets = [0, 0], sizes = [16, 8], strides = [1, 1]} : vector<16x32xf32> to vector<16x8xf32>
    %cst_12 = arith.constant dense<0.000000e+00> : vector<16x16xf32>
    %23 = tpu.matmul %21, %22, %cst_12 {dimension_numbers = #tpu.dot_dimension_numbers<[1], [1], [0], [0], [0, 0, 1, 0], [], []>} : vector<16x8xf32>, vector<16x8xf32>, vector<16x16xf32> -> vector<16x16xf32>
    %cst_13 = arith.constant 0.353553385 : f32
    %24 = vector.broadcast %cst_13 : f32 to vector<16x16xf32>
    %25 = arith.mulf %23, %24 : vector<16x16xf32>
    %26 = arith.addf %25, %12 : vector<16x16xf32>
    %cst_14 = arith.constant dense<0xFF800000> : vector<16xf32>
    %27 = vector.multi_reduction <maximumf>, %26, %cst_14 [1] : vector<16x16xf32> to vector<16xf32>
    %28 = vector.shape_cast %27 : vector<16xf32> to vector<16x1xf32>
    %29 = vector.broadcast %28 : vector<16x1xf32> to vector<16x16xf32>
    %30 = arith.subf %26, %29 : vector<16x16xf32>
    %31 = math.exp %30 : vector<16x16xf32>
    %cst_15 = arith.constant dense<0.000000e+00> : vector<16xf32>
    %32 = vector.multi_reduction <add>, %31, %cst_15 [1] : vector<16x16xf32> to vector<16xf32>
    %33 = vector.shape_cast %32 : vector<16xf32> to vector<16x1xf32>
    %34 = tpu.reciprocal %33 {approx = true} : vector<16x1xf32> -> vector<16x1xf32>
    %35 = vector.broadcast %34 : vector<16x1xf32> to vector<16x16xf32>
    %36 = arith.mulf %31, %35 : vector<16x16xf32>
    %37 = vector.extract_strided_slice %20 {offsets = [0, 0], sizes = [16, 8], strides = [1, 1]} : vector<16x32xf32> to vector<16x8xf32>
    %cst_16 = arith.constant dense<0.000000e+00> : vector<16x8xf32>
    %38 = tpu.matmul %36, %37, %cst_16 {dimension_numbers = #tpu.dot_dimension_numbers<[1], [0], [0], [1], [0, 0, 1, 1], [], []>} : vector<16x16xf32>, vector<16x8xf32>, vector<16x8xf32> -> vector<16x8xf32>
    %39 = vector.extract_strided_slice %18 {offsets = [0, 8], sizes = [16, 8], strides = [1, 1]} : vector<16x32xf32> to vector<16x8xf32>
    %40 = vector.extract_strided_slice %19 {offsets = [0, 8], sizes = [16, 8], strides = [1, 1]} : vector<16x32xf32> to vector<16x8xf32>
    %cst_17 = arith.constant dense<0.000000e+00> : vector<16x16xf32>
    %41 = tpu.matmul %39, %40, %cst_17 {dimension_numbers = #tpu.dot_dimension_numbers<[1], [1], [0], [0], [0, 0, 1, 0], [], []>} : vector<16x8xf32>, vector<16x8xf32>, vector<16x16xf32> -> vector<16x16xf32>
    %cst_18 = arith.constant 0.353553385 : f32
    %42 = vector.broadcast %cst_18 : f32 to vector<16x16xf32>
    %43 = arith.mulf %41, %42 : vector<16x16xf32>
    %44 = arith.addf %43, %12 : vector<16x16xf32>
    %cst_19 = arith.constant dense<0xFF800000> : vector<16xf32>
    %45 = vector.multi_reduction <maximumf>, %44, %cst_19 [1] : vector<16x16xf32> to vector<16xf32>
    %46 = vector.shape_cast %45 : vector<16xf32> to vector<16x1xf32>
    %47 = vector.broadcast %46 : vector<16x1xf32> to vector<16x16xf32>
    %48 = arith.subf %44, %47 : vector<16x16xf32>
    %49 = math.exp %48 : vector<16x16xf32>
    %cst_20 = arith.constant dense<0.000000e+00> : vector<16xf32>
    %50 = vector.multi_reduction <add>, %49, %cst_20 [1] : vector<16x16xf32> to vector<16xf32>
    %51 = vector.shape_cast %50 : vector<16xf32> to vector<16x1xf32>
    %52 = tpu.reciprocal %51 {approx = true} : vector<16x1xf32> -> vector<16x1xf32>
    %53 = vector.broadcast %52 : vector<16x1xf32> to vector<16x16xf32>
    %54 = arith.mulf %49, %53 : vector<16x16xf32>
    %55 = vector.extract_strided_slice %20 {offsets = [0, 8], sizes = [16, 8], strides = [1, 1]} : vector<16x32xf32> to vector<16x8xf32>
    %cst_21 = arith.constant dense<0.000000e+00> : vector<16x8xf32>
    %56 = tpu.matmul %54, %55, %cst_21 {dimension_numbers = #tpu.dot_dimension_numbers<[1], [0], [0], [1], [0, 0, 1, 1], [], []>} : vector<16x16xf32>, vector<16x8xf32>, vector<16x8xf32> -> vector<16x8xf32>
    %57 = vector.extract_strided_slice %18 {offsets = [0, 16], sizes = [16, 8], strides = [1, 1]} : vector<16x32xf32> to vector<16x8xf32>
    %58 = vector.extract_strided_slice %19 {offsets = [0, 16], sizes = [16, 8], strides = [1, 1]} : vector<16x32xf32> to vector<16x8xf32>
    %cst_22 = arith.constant dense<0.000000e+00> : vector<16x16xf32>
    %59 = tpu.matmul %57, %58, %cst_22 {dimension_numbers = #tpu.dot_dimension_numbers<[1], [1], [0], [0], [0, 0, 1, 0], [], []>} : vector<16x8xf32>, vector<16x8xf32>, vector<16x16xf32> -> vector<16x16xf32>
    %cst_23 = arith.constant 0.353553385 : f32
    %60 = vector.broadcast %cst_23 : f32 to vector<16x16xf32>
    %61 = arith.mulf %59, %60 : vector<16x16xf32>
    %62 = arith.addf %61, %12 : vector<16x16xf32>
    %cst_24 = arith.constant dense<0xFF800000> : vector<16xf32>
    %63 = vector.multi_reduction <maximumf>, %62, %cst_24 [1] : vector<16x16xf32> to vector<16xf32>
    %64 = vector.shape_cast %63 : vector<16xf32> to vector<16x1xf32>
    %65 = vector.broadcast %64 : vector<16x1xf32> to vector<16x16xf32>
    %66 = arith.subf %62, %65 : vector<16x16xf32>
    %67 = math.exp %66 : vector<16x16xf32>
    %cst_25 = arith.constant dense<0.000000e+00> : vector<16xf32>
    %68 = vector.multi_reduction <add>, %67, %cst_25 [1] : vector<16x16xf32> to vector<16xf32>
    %69 = vector.shape_cast %68 : vector<16xf32> to vector<16x1xf32>
    %70 = tpu.reciprocal %69 {approx = true} : vector<16x1xf32> -> vector<16x1xf32>
    %71 = vector.broadcast %70 : vector<16x1xf32> to vector<16x16xf32>
    %72 = arith.mulf %67, %71 : vector<16x16xf32>
    %73 = vector.extract_strided_slice %20 {offsets = [0, 16], sizes = [16, 8], strides = [1, 1]} : vector<16x32xf32> to vector<16x8xf32>
    %cst_26 = arith.constant dense<0.000000e+00> : vector<16x8xf32>
    %74 = tpu.matmul %72, %73, %cst_26 {dimension_numbers = #tpu.dot_dimension_numbers<[1], [0], [0], [1], [0, 0, 1, 1], [], []>} : vector<16x16xf32>, vector<16x8xf32>, vector<16x8xf32> -> vector<16x8xf32>
    %75 = vector.extract_strided_slice %18 {offsets = [0, 24], sizes = [16, 8], strides = [1, 1]} : vector<16x32xf32> to vector<16x8xf32>
    %76 = vector.extract_strided_slice %19 {offsets = [0, 24], sizes = [16, 8], strides = [1, 1]} : vector<16x32xf32> to vector<16x8xf32>
    %cst_27 = arith.constant dense<0.000000e+00> : vector<16x16xf32>
    %77 = tpu.matmul %75, %76, %cst_27 {dimension_numbers = #tpu.dot_dimension_numbers<[1], [1], [0], [0], [0, 0, 1, 0], [], []>} : vector<16x8xf32>, vector<16x8xf32>, vector<16x16xf32> -> vector<16x16xf32>
    %cst_28 = arith.constant 0.353553385 : f32
    %78 = vector.broadcast %cst_28 : f32 to vector<16x16xf32>
    %79 = arith.mulf %77, %78 : vector<16x16xf32>
    %80 = arith.addf %79, %12 : vector<16x16xf32>
    %cst_29 = arith.constant dense<0xFF800000> : vector<16xf32>
    %81 = vector.multi_reduction <maximumf>, %80, %cst_29 [1] : vector<16x16xf32> to vector<16xf32>
    %82 = vector.shape_cast %81 : vector<16xf32> to vector<16x1xf32>
    %83 = vector.broadcast %82 : vector<16x1xf32> to vector<16x16xf32>
    %84 = arith.subf %80, %83 : vector<16x16xf32>
    %85 = math.exp %84 : vector<16x16xf32>
    %cst_30 = arith.constant dense<0.000000e+00> : vector<16xf32>
    %86 = vector.multi_reduction <add>, %85, %cst_30 [1] : vector<16x16xf32> to vector<16xf32>
    %87 = vector.shape_cast %86 : vector<16xf32> to vector<16x1xf32>
    %88 = tpu.reciprocal %87 {approx = true} : vector<16x1xf32> -> vector<16x1xf32>
    %89 = vector.broadcast %88 : vector<16x1xf32> to vector<16x16xf32>
    %90 = arith.mulf %85, %89 : vector<16x16xf32>
    %91 = vector.extract_strided_slice %20 {offsets = [0, 24], sizes = [16, 8], strides = [1, 1]} : vector<16x32xf32> to vector<16x8xf32>
    %cst_31 = arith.constant dense<0.000000e+00> : vector<16x8xf32>
    %92 = tpu.matmul %90, %91, %cst_31 {dimension_numbers = #tpu.dot_dimension_numbers<[1], [0], [0], [1], [0, 0, 1, 1], [], []>} : vector<16x16xf32>, vector<16x8xf32>, vector<16x8xf32> -> vector<16x8xf32>
    %93 = tpu.concatenate %38, %56, %74, %92 in 1 : vector<16x8xf32>, vector<16x8xf32>, vector<16x8xf32>, vector<16x8xf32> -> vector<16x32xf32>
    %c0_32 = arith.constant 0 : index
    %c128 = arith.constant 128 : index
    %94 = vector.load %arg7[%c0_32, %c128] : memref<32x2304xf32, #tpu.memory_space<vmem>>, vector<32x32xf32>
    %cst_33 = arith.constant dense<0.000000e+00> : vector<16x32xf32>
    %95 = tpu.matmul %93, %94, %cst_33 {dimension_numbers = #tpu.dot_dimension_numbers<[1], [0], [0], [1], [0, 0, 1, 1], [], []>} : vector<16x32xf32>, vector<32x32xf32>, vector<16x32xf32> -> vector<16x32xf32>
    %c1 = arith.constant 1 : index
    %c0_34 = arith.constant 0 : index
    %96 = vector.load %arg9[%c1, %c0_34] : memref<41x128xf32, #tpu.memory_space<vmem>>, vector<1x32xf32>
    %97 = vector.broadcast %96 : vector<1x32xf32> to vector<16x32xf32>
    %98 = arith.addf %95, %97 : vector<16x32xf32>
    %99 = arith.addf %98, %11 : vector<16x32xf32>
    %c4 = arith.constant 4 : index
    %c0_35 = arith.constant 0 : index
    %100 = vector.load %arg9[%c4, %c0_35] : memref<41x128xf32, #tpu.memory_space<vmem>>, vector<1x32xf32>
    %c5 = arith.constant 5 : index
    %c0_36 = arith.constant 0 : index
    %101 = vector.load %arg9[%c5, %c0_36] : memref<41x128xf32, #tpu.memory_space<vmem>>, vector<1x32xf32>
    %cst_37 = arith.constant dense<0.000000e+00> : vector<16xf32>
    %102 = vector.multi_reduction <add>, %99, %cst_37 [1] : vector<16x32xf32> to vector<16xf32>
    %103 = vector.shape_cast %102 : vector<16xf32> to vector<16x1xf32>
    %cst_38 = arith.constant 3.200000e+01 : f32
    %104 = vector.broadcast %cst_38 : f32 to vector<16x1xf32>
    %105 = arith.divf %103, %104 : vector<16x1xf32>
    %106 = vector.broadcast %105 : vector<16x1xf32> to vector<16x32xf32>
    %107 = arith.subf %99, %106 : vector<16x32xf32>
    %108 = arith.mulf %107, %107 : vector<16x32xf32>
    %cst_39 = arith.constant dense<0.000000e+00> : vector<16xf32>
    %109 = vector.multi_reduction <add>, %108, %cst_39 [1] : vector<16x32xf32> to vector<16xf32>
    %110 = vector.shape_cast %109 : vector<16xf32> to vector<16x1xf32>
    %cst_40 = arith.constant 3.200000e+01 : f32
    %111 = vector.broadcast %cst_40 : f32 to vector<16x1xf32>
    %112 = arith.divf %110, %111 : vector<16x1xf32>
    %113 = vector.broadcast %105 : vector<16x1xf32> to vector<16x32xf32>
    %114 = arith.subf %99, %113 : vector<16x32xf32>
    %cst_41 = arith.constant 9.99999974E-6 : f32
    %115 = vector.broadcast %cst_41 : f32 to vector<16x1xf32>
    %116 = arith.addf %112, %115 : vector<16x1xf32>
    %117 = math.rsqrt %116 : vector<16x1xf32>
    %118 = vector.broadcast %117 : vector<16x1xf32> to vector<16x32xf32>
    %119 = arith.mulf %114, %118 : vector<16x32xf32>
    %120 = vector.broadcast %100 : vector<1x32xf32> to vector<16x32xf32>
    %121 = arith.mulf %119, %120 : vector<16x32xf32>
    %122 = vector.broadcast %101 : vector<1x32xf32> to vector<16x32xf32>
    %123 = arith.addf %121, %122 : vector<16x32xf32>
    %c0_42 = arith.constant 0 : index
    %c256 = arith.constant 256 : index
    %124 = vector.load %arg7[%c0_42, %c256] : memref<32x2304xf32, #tpu.memory_space<vmem>>, vector<32x64xf32>
    %cst_43 = arith.constant dense<0.000000e+00> : vector<16x64xf32>
    %125 = tpu.matmul %123, %124, %cst_43 {dimension_numbers = #tpu.dot_dimension_numbers<[1], [0], [0], [1], [0, 0, 1, 1], [], []>} : vector<16x32xf32>, vector<32x64xf32>, vector<16x64xf32> -> vector<16x64xf32>
    %c2 = arith.constant 2 : index
    %c0_44 = arith.constant 0 : index
    %126 = vector.load %arg9[%c2, %c0_44] : memref<41x128xf32, #tpu.memory_space<vmem>>, vector<1x64xf32>
    %127 = vector.broadcast %126 : vector<1x64xf32> to vector<16x64xf32>
    %128 = arith.addf %125, %127 : vector<16x64xf32>
    %cst_45 = arith.constant 0.000000e+00 : f32
    %129 = vector.broadcast %cst_45 : f32 to vector<16x64xf32>
    %130 = arith.maximumf %128, %129 : vector<16x64xf32>
    %c0_46 = arith.constant 0 : index
    %c0_47 = arith.constant 0 : index
    %131 = vector.load %arg8[%c0_46, %c0_47] : memref<64x512xf32, #tpu.memory_space<vmem>>, vector<64x32xf32>
    %cst_48 = arith.constant dense<0.000000e+00> : vector<16x32xf32>
    %132 = tpu.matmul %130, %131, %cst_48 {dimension_numbers = #tpu.dot_dimension_numbers<[1], [0], [0], [1], [0, 0, 1, 1], [], []>} : vector<16x64xf32>, vector<64x32xf32>, vector<16x32xf32> -> vector<16x32xf32>
    %c3 = arith.constant 3 : index
    %c0_49 = arith.constant 0 : index
    %133 = vector.load %arg9[%c3, %c0_49] : memref<41x128xf32, #tpu.memory_space<vmem>>, vector<1x32xf32>
    %134 = vector.broadcast %133 : vector<1x32xf32> to vector<16x32xf32>
    %135 = arith.addf %132, %134 : vector<16x32xf32>
    %136 = arith.addf %135, %123 : vector<16x32xf32>
    %c6 = arith.constant 6 : index
    %c0_50 = arith.constant 0 : index
    %137 = vector.load %arg9[%c6, %c0_50] : memref<41x128xf32, #tpu.memory_space<vmem>>, vector<1x32xf32>
    %c7 = arith.constant 7 : index
    %c0_51 = arith.constant 0 : index
    %138 = vector.load %arg9[%c7, %c0_51] : memref<41x128xf32, #tpu.memory_space<vmem>>, vector<1x32xf32>
    %cst_52 = arith.constant dense<0.000000e+00> : vector<16xf32>
    %139 = vector.multi_reduction <add>, %136, %cst_52 [1] : vector<16x32xf32> to vector<16xf32>
    %140 = vector.shape_cast %139 : vector<16xf32> to vector<16x1xf32>
    %cst_53 = arith.constant 3.200000e+01 : f32
    %141 = vector.broadcast %cst_53 : f32 to vector<16x1xf32>
    %142 = arith.divf %140, %141 : vector<16x1xf32>
    %143 = vector.broadcast %142 : vector<16x1xf32> to vector<16x32xf32>
    %144 = arith.subf %136, %143 : vector<16x32xf32>
    %145 = arith.mulf %144, %144 : vector<16x32xf32>
    %cst_54 = arith.constant dense<0.000000e+00> : vector<16xf32>
    %146 = vector.multi_reduction <add>, %145, %cst_54 [1] : vector<16x32xf32> to vector<16xf32>
    %147 = vector.shape_cast %146 : vector<16xf32> to vector<16x1xf32>
    %cst_55 = arith.constant 3.200000e+01 : f32
    %148 = vector.broadcast %cst_55 : f32 to vector<16x1xf32>
    %149 = arith.divf %147, %148 : vector<16x1xf32>
    %150 = vector.broadcast %142 : vector<16x1xf32> to vector<16x32xf32>
    %151 = arith.subf %136, %150 : vector<16x32xf32>
    %cst_56 = arith.constant 9.99999974E-6 : f32
    %152 = vector.broadcast %cst_56 : f32 to vector<16x1xf32>
    %153 = arith.addf %149, %152 : vector<16x1xf32>
    %154 = math.rsqrt %153 : vector<16x1xf32>
    %155 = vector.broadcast %154 : vector<16x1xf32> to vector<16x32xf32>
    %156 = arith.mulf %151, %155 : vector<16x32xf32>
    %157 = vector.broadcast %137 : vector<1x32xf32> to vector<16x32xf32>
    %158 = arith.mulf %156, %157 : vector<16x32xf32>
    %159 = vector.broadcast %138 : vector<1x32xf32> to vector<16x32xf32>
    %160 = arith.addf %158, %159 : vector<16x32xf32>
    %c0_57 = arith.constant 0 : index
    %c384 = arith.constant 384 : index
    %161 = vector.load %arg7[%c0_57, %c384] : memref<32x2304xf32, #tpu.memory_space<vmem>>, vector<32x96xf32>
    %c8 = arith.constant 8 : index
    %c0_58 = arith.constant 0 : index
    %162 = vector.load %arg9[%c8, %c0_58] : memref<41x128xf32, #tpu.memory_space<vmem>>, vector<1x96xf32>
    %cst_59 = arith.constant dense<0.000000e+00> : vector<16x96xf32>
    %163 = tpu.matmul %160, %161, %cst_59 {dimension_numbers = #tpu.dot_dimension_numbers<[1], [0], [0], [1], [0, 0, 1, 1], [], []>} : vector<16x32xf32>, vector<32x96xf32>, vector<16x96xf32> -> vector<16x96xf32>
    %164 = vector.broadcast %162 : vector<1x96xf32> to vector<16x96xf32>
    %165 = arith.addf %163, %164 : vector<16x96xf32>
    %166 = vector.extract_strided_slice %165 {offsets = [0, 0], sizes = [16, 32], strides = [1, 1]} : vector<16x96xf32> to vector<16x32xf32>
    %167 = vector.extract_strided_slice %165 {offsets = [0, 32], sizes = [16, 32], strides = [1, 1]} : vector<16x96xf32> to vector<16x32xf32>
    %168 = vector.extract_strided_slice %165 {offsets = [0, 64], sizes = [16, 32], strides = [1, 1]} : vector<16x96xf32> to vector<16x32xf32>
    %169 = vector.extract_strided_slice %166 {offsets = [0, 0], sizes = [16, 8], strides = [1, 1]} : vector<16x32xf32> to vector<16x8xf32>
    %170 = vector.extract_strided_slice %167 {offsets = [0, 0], sizes = [16, 8], strides = [1, 1]} : vector<16x32xf32> to vector<16x8xf32>
    %cst_60 = arith.constant dense<0.000000e+00> : vector<16x16xf32>
    %171 = tpu.matmul %169, %170, %cst_60 {dimension_numbers = #tpu.dot_dimension_numbers<[1], [1], [0], [0], [0, 0, 1, 0], [], []>} : vector<16x8xf32>, vector<16x8xf32>, vector<16x16xf32> -> vector<16x16xf32>
    %cst_61 = arith.constant 0.353553385 : f32
    %172 = vector.broadcast %cst_61 : f32 to vector<16x16xf32>
    %173 = arith.mulf %171, %172 : vector<16x16xf32>
    %174 = arith.addf %173, %12 : vector<16x16xf32>
    %cst_62 = arith.constant dense<0xFF800000> : vector<16xf32>
    %175 = vector.multi_reduction <maximumf>, %174, %cst_62 [1] : vector<16x16xf32> to vector<16xf32>
    %176 = vector.shape_cast %175 : vector<16xf32> to vector<16x1xf32>
    %177 = vector.broadcast %176 : vector<16x1xf32> to vector<16x16xf32>
    %178 = arith.subf %174, %177 : vector<16x16xf32>
    %179 = math.exp %178 : vector<16x16xf32>
    %cst_63 = arith.constant dense<0.000000e+00> : vector<16xf32>
    %180 = vector.multi_reduction <add>, %179, %cst_63 [1] : vector<16x16xf32> to vector<16xf32>
    %181 = vector.shape_cast %180 : vector<16xf32> to vector<16x1xf32>
    %182 = tpu.reciprocal %181 {approx = true} : vector<16x1xf32> -> vector<16x1xf32>
    %183 = vector.broadcast %182 : vector<16x1xf32> to vector<16x16xf32>
    %184 = arith.mulf %179, %183 : vector<16x16xf32>
    %185 = vector.extract_strided_slice %168 {offsets = [0, 0], sizes = [16, 8], strides = [1, 1]} : vector<16x32xf32> to vector<16x8xf32>
    %cst_64 = arith.constant dense<0.000000e+00> : vector<16x8xf32>
    %186 = tpu.matmul %184, %185, %cst_64 {dimension_numbers = #tpu.dot_dimension_numbers<[1], [0], [0], [1], [0, 0, 1, 1], [], []>} : vector<16x16xf32>, vector<16x8xf32>, vector<16x8xf32> -> vector<16x8xf32>
    %187 = vector.extract_strided_slice %166 {offsets = [0, 8], sizes = [16, 8], strides = [1, 1]} : vector<16x32xf32> to vector<16x8xf32>
    %188 = vector.extract_strided_slice %167 {offsets = [0, 8], sizes = [16, 8], strides = [1, 1]} : vector<16x32xf32> to vector<16x8xf32>
    %cst_65 = arith.constant dense<0.000000e+00> : vector<16x16xf32>
    %189 = tpu.matmul %187, %188, %cst_65 {dimension_numbers = #tpu.dot_dimension_numbers<[1], [1], [0], [0], [0, 0, 1, 0], [], []>} : vector<16x8xf32>, vector<16x8xf32>, vector<16x16xf32> -> vector<16x16xf32>
    %cst_66 = arith.constant 0.353553385 : f32
    %190 = vector.broadcast %cst_66 : f32 to vector<16x16xf32>
    %191 = arith.mulf %189, %190 : vector<16x16xf32>
    %192 = arith.addf %191, %12 : vector<16x16xf32>
    %cst_67 = arith.constant dense<0xFF800000> : vector<16xf32>
    %193 = vector.multi_reduction <maximumf>, %192, %cst_67 [1] : vector<16x16xf32> to vector<16xf32>
    %194 = vector.shape_cast %193 : vector<16xf32> to vector<16x1xf32>
    %195 = vector.broadcast %194 : vector<16x1xf32> to vector<16x16xf32>
    %196 = arith.subf %192, %195 : vector<16x16xf32>
    %197 = math.exp %196 : vector<16x16xf32>
    %cst_68 = arith.constant dense<0.000000e+00> : vector<16xf32>
    %198 = vector.multi_reduction <add>, %197, %cst_68 [1] : vector<16x16xf32> to vector<16xf32>
    %199 = vector.shape_cast %198 : vector<16xf32> to vector<16x1xf32>
    %200 = tpu.reciprocal %199 {approx = true} : vector<16x1xf32> -> vector<16x1xf32>
    %201 = vector.broadcast %200 : vector<16x1xf32> to vector<16x16xf32>
    %202 = arith.mulf %197, %201 : vector<16x16xf32>
    %203 = vector.extract_strided_slice %168 {offsets = [0, 8], sizes = [16, 8], strides = [1, 1]} : vector<16x32xf32> to vector<16x8xf32>
    %cst_69 = arith.constant dense<0.000000e+00> : vector<16x8xf32>
    %204 = tpu.matmul %202, %203, %cst_69 {dimension_numbers = #tpu.dot_dimension_numbers<[1], [0], [0], [1], [0, 0, 1, 1], [], []>} : vector<16x16xf32>, vector<16x8xf32>, vector<16x8xf32> -> vector<16x8xf32>
    %205 = vector.extract_strided_slice %166 {offsets = [0, 16], sizes = [16, 8], strides = [1, 1]} : vector<16x32xf32> to vector<16x8xf32>
    %206 = vector.extract_strided_slice %167 {offsets = [0, 16], sizes = [16, 8], strides = [1, 1]} : vector<16x32xf32> to vector<16x8xf32>
    %cst_70 = arith.constant dense<0.000000e+00> : vector<16x16xf32>
    %207 = tpu.matmul %205, %206, %cst_70 {dimension_numbers = #tpu.dot_dimension_numbers<[1], [1], [0], [0], [0, 0, 1, 0], [], []>} : vector<16x8xf32>, vector<16x8xf32>, vector<16x16xf32> -> vector<16x16xf32>
    %cst_71 = arith.constant 0.353553385 : f32
    %208 = vector.broadcast %cst_71 : f32 to vector<16x16xf32>
    %209 = arith.mulf %207, %208 : vector<16x16xf32>
    %210 = arith.addf %209, %12 : vector<16x16xf32>
    %cst_72 = arith.constant dense<0xFF800000> : vector<16xf32>
    %211 = vector.multi_reduction <maximumf>, %210, %cst_72 [1] : vector<16x16xf32> to vector<16xf32>
    %212 = vector.shape_cast %211 : vector<16xf32> to vector<16x1xf32>
    %213 = vector.broadcast %212 : vector<16x1xf32> to vector<16x16xf32>
    %214 = arith.subf %210, %213 : vector<16x16xf32>
    %215 = math.exp %214 : vector<16x16xf32>
    %cst_73 = arith.constant dense<0.000000e+00> : vector<16xf32>
    %216 = vector.multi_reduction <add>, %215, %cst_73 [1] : vector<16x16xf32> to vector<16xf32>
    %217 = vector.shape_cast %216 : vector<16xf32> to vector<16x1xf32>
    %218 = tpu.reciprocal %217 {approx = true} : vector<16x1xf32> -> vector<16x1xf32>
    %219 = vector.broadcast %218 : vector<16x1xf32> to vector<16x16xf32>
    %220 = arith.mulf %215, %219 : vector<16x16xf32>
    %221 = vector.extract_strided_slice %168 {offsets = [0, 16], sizes = [16, 8], strides = [1, 1]} : vector<16x32xf32> to vector<16x8xf32>
    %cst_74 = arith.constant dense<0.000000e+00> : vector<16x8xf32>
    %222 = tpu.matmul %220, %221, %cst_74 {dimension_numbers = #tpu.dot_dimension_numbers<[1], [0], [0], [1], [0, 0, 1, 1], [], []>} : vector<16x16xf32>, vector<16x8xf32>, vector<16x8xf32> -> vector<16x8xf32>
    %223 = vector.extract_strided_slice %166 {offsets = [0, 24], sizes = [16, 8], strides = [1, 1]} : vector<16x32xf32> to vector<16x8xf32>
    %224 = vector.extract_strided_slice %167 {offsets = [0, 24], sizes = [16, 8], strides = [1, 1]} : vector<16x32xf32> to vector<16x8xf32>
    %cst_75 = arith.constant dense<0.000000e+00> : vector<16x16xf32>
    %225 = tpu.matmul %223, %224, %cst_75 {dimension_numbers = #tpu.dot_dimension_numbers<[1], [1], [0], [0], [0, 0, 1, 0], [], []>} : vector<16x8xf32>, vector<16x8xf32>, vector<16x16xf32> -> vector<16x16xf32>
    %cst_76 = arith.constant 0.353553385 : f32
    %226 = vector.broadcast %cst_76 : f32 to vector<16x16xf32>
    %227 = arith.mulf %225, %226 : vector<16x16xf32>
    %228 = arith.addf %227, %12 : vector<16x16xf32>
    %cst_77 = arith.constant dense<0xFF800000> : vector<16xf32>
    %229 = vector.multi_reduction <maximumf>, %228, %cst_77 [1] : vector<16x16xf32> to vector<16xf32>
    %230 = vector.shape_cast %229 : vector<16xf32> to vector<16x1xf32>
    %231 = vector.broadcast %230 : vector<16x1xf32> to vector<16x16xf32>
    %232 = arith.subf %228, %231 : vector<16x16xf32>
    %233 = math.exp %232 : vector<16x16xf32>
    %cst_78 = arith.constant dense<0.000000e+00> : vector<16xf32>
    %234 = vector.multi_reduction <add>, %233, %cst_78 [1] : vector<16x16xf32> to vector<16xf32>
    %235 = vector.shape_cast %234 : vector<16xf32> to vector<16x1xf32>
    %236 = tpu.reciprocal %235 {approx = true} : vector<16x1xf32> -> vector<16x1xf32>
    %237 = vector.broadcast %236 : vector<16x1xf32> to vector<16x16xf32>
    %238 = arith.mulf %233, %237 : vector<16x16xf32>
    %239 = vector.extract_strided_slice %168 {offsets = [0, 24], sizes = [16, 8], strides = [1, 1]} : vector<16x32xf32> to vector<16x8xf32>
    %cst_79 = arith.constant dense<0.000000e+00> : vector<16x8xf32>
    %240 = tpu.matmul %238, %239, %cst_79 {dimension_numbers = #tpu.dot_dimension_numbers<[1], [0], [0], [1], [0, 0, 1, 1], [], []>} : vector<16x16xf32>, vector<16x8xf32>, vector<16x8xf32> -> vector<16x8xf32>
    %241 = tpu.concatenate %186, %204, %222, %240 in 1 : vector<16x8xf32>, vector<16x8xf32>, vector<16x8xf32>, vector<16x8xf32> -> vector<16x32xf32>
    %c0_80 = arith.constant 0 : index
    %c512 = arith.constant 512 : index
    %242 = vector.load %arg7[%c0_80, %c512] : memref<32x2304xf32, #tpu.memory_space<vmem>>, vector<32x32xf32>
    %cst_81 = arith.constant dense<0.000000e+00> : vector<16x32xf32>
    %243 = tpu.matmul %241, %242, %cst_81 {dimension_numbers = #tpu.dot_dimension_numbers<[1], [0], [0], [1], [0, 0, 1, 1], [], []>} : vector<16x32xf32>, vector<32x32xf32>, vector<16x32xf32> -> vector<16x32xf32>
    %c9 = arith.constant 9 : index
    %c0_82 = arith.constant 0 : index
    %244 = vector.load %arg9[%c9, %c0_82] : memref<41x128xf32, #tpu.memory_space<vmem>>, vector<1x32xf32>
    %245 = vector.broadcast %244 : vector<1x32xf32> to vector<16x32xf32>
    %246 = arith.addf %243, %245 : vector<16x32xf32>
    %247 = arith.addf %246, %160 : vector<16x32xf32>
    %c12 = arith.constant 12 : index
    %c0_83 = arith.constant 0 : index
    %248 = vector.load %arg9[%c12, %c0_83] : memref<41x128xf32, #tpu.memory_space<vmem>>, vector<1x32xf32>
    %c13 = arith.constant 13 : index
    %c0_84 = arith.constant 0 : index
    %249 = vector.load %arg9[%c13, %c0_84] : memref<41x128xf32, #tpu.memory_space<vmem>>, vector<1x32xf32>
    %cst_85 = arith.constant dense<0.000000e+00> : vector<16xf32>
    %250 = vector.multi_reduction <add>, %247, %cst_85 [1] : vector<16x32xf32> to vector<16xf32>
    %251 = vector.shape_cast %250 : vector<16xf32> to vector<16x1xf32>
    %cst_86 = arith.constant 3.200000e+01 : f32
    %252 = vector.broadcast %cst_86 : f32 to vector<16x1xf32>
    %253 = arith.divf %251, %252 : vector<16x1xf32>
    %254 = vector.broadcast %253 : vector<16x1xf32> to vector<16x32xf32>
    %255 = arith.subf %247, %254 : vector<16x32xf32>
    %256 = arith.mulf %255, %255 : vector<16x32xf32>
    %cst_87 = arith.constant dense<0.000000e+00> : vector<16xf32>
    %257 = vector.multi_reduction <add>, %256, %cst_87 [1] : vector<16x32xf32> to vector<16xf32>
    %258 = vector.shape_cast %257 : vector<16xf32> to vector<16x1xf32>
    %cst_88 = arith.constant 3.200000e+01 : f32
    %259 = vector.broadcast %cst_88 : f32 to vector<16x1xf32>
    %260 = arith.divf %258, %259 : vector<16x1xf32>
    %261 = vector.broadcast %253 : vector<16x1xf32> to vector<16x32xf32>
    %262 = arith.subf %247, %261 : vector<16x32xf32>
    %cst_89 = arith.constant 9.99999974E-6 : f32
    %263 = vector.broadcast %cst_89 : f32 to vector<16x1xf32>
    %264 = arith.addf %260, %263 : vector<16x1xf32>
    %265 = math.rsqrt %264 : vector<16x1xf32>
    %266 = vector.broadcast %265 : vector<16x1xf32> to vector<16x32xf32>
    %267 = arith.mulf %262, %266 : vector<16x32xf32>
    %268 = vector.broadcast %248 : vector<1x32xf32> to vector<16x32xf32>
    %269 = arith.mulf %267, %268 : vector<16x32xf32>
    %270 = vector.broadcast %249 : vector<1x32xf32> to vector<16x32xf32>
    %271 = arith.addf %269, %270 : vector<16x32xf32>
    %c0_90 = arith.constant 0 : index
    %c640 = arith.constant 640 : index
    %272 = vector.load %arg7[%c0_90, %c640] : memref<32x2304xf32, #tpu.memory_space<vmem>>, vector<32x64xf32>
    %cst_91 = arith.constant dense<0.000000e+00> : vector<16x64xf32>
    %273 = tpu.matmul %271, %272, %cst_91 {dimension_numbers = #tpu.dot_dimension_numbers<[1], [0], [0], [1], [0, 0, 1, 1], [], []>} : vector<16x32xf32>, vector<32x64xf32>, vector<16x64xf32> -> vector<16x64xf32>
    %c10 = arith.constant 10 : index
    %c0_92 = arith.constant 0 : index
    %274 = vector.load %arg9[%c10, %c0_92] : memref<41x128xf32, #tpu.memory_space<vmem>>, vector<1x64xf32>
    %275 = vector.broadcast %274 : vector<1x64xf32> to vector<16x64xf32>
    %276 = arith.addf %273, %275 : vector<16x64xf32>
    %cst_93 = arith.constant 0.000000e+00 : f32
    %277 = vector.broadcast %cst_93 : f32 to vector<16x64xf32>
    %278 = arith.maximumf %276, %277 : vector<16x64xf32>
    %c0_94 = arith.constant 0 : index
    %c128_95 = arith.constant 128 : index
    %279 = vector.load %arg8[%c0_94, %c128_95] : memref<64x512xf32, #tpu.memory_space<vmem>>, vector<64x32xf32>
    %cst_96 = arith.constant dense<0.000000e+00> : vector<16x32xf32>
    %280 = tpu.matmul %278, %279, %cst_96 {dimension_numbers = #tpu.dot_dimension_numbers<[1], [0], [0], [1], [0, 0, 1, 1], [], []>} : vector<16x64xf32>, vector<64x32xf32>, vector<16x32xf32> -> vector<16x32xf32>
    %c11 = arith.constant 11 : index
    %c0_97 = arith.constant 0 : index
    %281 = vector.load %arg9[%c11, %c0_97] : memref<41x128xf32, #tpu.memory_space<vmem>>, vector<1x32xf32>
    %282 = vector.broadcast %281 : vector<1x32xf32> to vector<16x32xf32>
    %283 = arith.addf %280, %282 : vector<16x32xf32>
    %284 = arith.addf %283, %271 : vector<16x32xf32>
    %c14 = arith.constant 14 : index
    %c0_98 = arith.constant 0 : index
    %285 = vector.load %arg9[%c14, %c0_98] : memref<41x128xf32, #tpu.memory_space<vmem>>, vector<1x32xf32>
    %c15 = arith.constant 15 : index
    %c0_99 = arith.constant 0 : index
    %286 = vector.load %arg9[%c15, %c0_99] : memref<41x128xf32, #tpu.memory_space<vmem>>, vector<1x32xf32>
    %cst_100 = arith.constant dense<0.000000e+00> : vector<16xf32>
    %287 = vector.multi_reduction <add>, %284, %cst_100 [1] : vector<16x32xf32> to vector<16xf32>
    %288 = vector.shape_cast %287 : vector<16xf32> to vector<16x1xf32>
    %cst_101 = arith.constant 3.200000e+01 : f32
    %289 = vector.broadcast %cst_101 : f32 to vector<16x1xf32>
    %290 = arith.divf %288, %289 : vector<16x1xf32>
    %291 = vector.broadcast %290 : vector<16x1xf32> to vector<16x32xf32>
    %292 = arith.subf %284, %291 : vector<16x32xf32>
    %293 = arith.mulf %292, %292 : vector<16x32xf32>
    %cst_102 = arith.constant dense<0.000000e+00> : vector<16xf32>
    %294 = vector.multi_reduction <add>, %293, %cst_102 [1] : vector<16x32xf32> to vector<16xf32>
    %295 = vector.shape_cast %294 : vector<16xf32> to vector<16x1xf32>
    %cst_103 = arith.constant 3.200000e+01 : f32
    %296 = vector.broadcast %cst_103 : f32 to vector<16x1xf32>
    %297 = arith.divf %295, %296 : vector<16x1xf32>
    %298 = vector.broadcast %290 : vector<16x1xf32> to vector<16x32xf32>
    %299 = arith.subf %284, %298 : vector<16x32xf32>
    %cst_104 = arith.constant 9.99999974E-6 : f32
    %300 = vector.broadcast %cst_104 : f32 to vector<16x1xf32>
    %301 = arith.addf %297, %300 : vector<16x1xf32>
    %302 = math.rsqrt %301 : vector<16x1xf32>
    %303 = vector.broadcast %302 : vector<16x1xf32> to vector<16x32xf32>
    %304 = arith.mulf %299, %303 : vector<16x32xf32>
    %305 = vector.broadcast %285 : vector<1x32xf32> to vector<16x32xf32>
    %306 = arith.mulf %304, %305 : vector<16x32xf32>
    %307 = vector.broadcast %286 : vector<1x32xf32> to vector<16x32xf32>
    %308 = arith.addf %306, %307 : vector<16x32xf32>
    %c0_105 = arith.constant 0 : index
    %c0_106 = arith.constant 0 : index
    %309 = vector.load %arg1[%c0_105, %c0_106] : memref<16x1xi32, #tpu.memory_space<vmem>>, vector<16x1xi32>
    %310 = tpu.iota {dimensions = array<i32: 1>} : vector<16x32xi32>
    %311 = vector.broadcast %309 : vector<16x1xi32> to vector<16x32xi32>
    %312 = arith.cmpi eq, %310, %311 : vector<16x32xi32>
    %313 = arith.extui %312 : vector<16x32xi1> to vector<16x32xi32>
    %314 = arith.sitofp %313 : vector<16x32xi32> to vector<16x32xf32>
    %c0_107 = arith.constant 0 : index
    %c2176_108 = arith.constant 2176 : index
    %315 = vector.load %arg7[%c0_107, %c2176_108] : memref<32x2304xf32, #tpu.memory_space<vmem>>, vector<32x32xf32>
    %cst_109 = arith.constant dense<0.000000e+00> : vector<16x32xf32>
    %316 = tpu.matmul %314, %315, %cst_109 {dimension_numbers = #tpu.dot_dimension_numbers<[1], [0], [0], [1], [0, 0, 1, 1], [], []>} : vector<16x32xf32>, vector<32x32xf32>, vector<16x32xf32> -> vector<16x32xf32>
    %cst_110 = arith.constant 5.65685415 : f32
    %317 = vector.broadcast %cst_110 : f32 to vector<16x32xf32>
    %318 = arith.mulf %316, %317 : vector<16x32xf32>
    %c0_111 = arith.constant 0 : index
    %c0_112 = arith.constant 0 : index
    %319 = vector.load %arg3[%c0_111, %c0_112] : memref<16x32xf32, #tpu.memory_space<vmem>>, vector<16x32xf32>
    %320 = arith.addf %318, %319 : vector<16x32xf32>
    %c0_113 = arith.constant 0 : index
    %c0_114 = arith.constant 0 : index
    %321 = vector.load %arg5[%c0_113, %c0_114] : memref<16x16xf32, #tpu.memory_space<vmem>>, vector<16x16xf32>
    %c0_115 = arith.constant 0 : index
    %c0_116 = arith.constant 0 : index
    %322 = vector.load %arg6[%c0_115, %c0_116] : memref<16x16xf32, #tpu.memory_space<vmem>>, vector<16x16xf32>
    %c0_117 = arith.constant 0 : index
    %c768 = arith.constant 768 : index
    %323 = vector.load %arg7[%c0_117, %c768] : memref<32x2304xf32, #tpu.memory_space<vmem>>, vector<32x96xf32>
    %c16 = arith.constant 16 : index
    %c0_118 = arith.constant 0 : index
    %324 = vector.load %arg9[%c16, %c0_118] : memref<41x128xf32, #tpu.memory_space<vmem>>, vector<1x96xf32>
    %cst_119 = arith.constant dense<0.000000e+00> : vector<16x96xf32>
    %325 = tpu.matmul %320, %323, %cst_119 {dimension_numbers = #tpu.dot_dimension_numbers<[1], [0], [0], [1], [0, 0, 1, 1], [], []>} : vector<16x32xf32>, vector<32x96xf32>, vector<16x96xf32> -> vector<16x96xf32>
    %326 = vector.broadcast %324 : vector<1x96xf32> to vector<16x96xf32>
    %327 = arith.addf %325, %326 : vector<16x96xf32>
    %328 = vector.extract_strided_slice %327 {offsets = [0, 0], sizes = [16, 32], strides = [1, 1]} : vector<16x96xf32> to vector<16x32xf32>
    %329 = vector.extract_strided_slice %327 {offsets = [0, 32], sizes = [16, 32], strides = [1, 1]} : vector<16x96xf32> to vector<16x32xf32>
    %330 = vector.extract_strided_slice %327 {offsets = [0, 64], sizes = [16, 32], strides = [1, 1]} : vector<16x96xf32> to vector<16x32xf32>
    %331 = vector.extract_strided_slice %328 {offsets = [0, 0], sizes = [16, 8], strides = [1, 1]} : vector<16x32xf32> to vector<16x8xf32>
    %332 = vector.extract_strided_slice %329 {offsets = [0, 0], sizes = [16, 8], strides = [1, 1]} : vector<16x32xf32> to vector<16x8xf32>
    %cst_120 = arith.constant dense<0.000000e+00> : vector<16x16xf32>
    %333 = tpu.matmul %331, %332, %cst_120 {dimension_numbers = #tpu.dot_dimension_numbers<[1], [1], [0], [0], [0, 0, 1, 0], [], []>} : vector<16x8xf32>, vector<16x8xf32>, vector<16x16xf32> -> vector<16x16xf32>
    %cst_121 = arith.constant 0.353553385 : f32
    %334 = vector.broadcast %cst_121 : f32 to vector<16x16xf32>
    %335 = arith.mulf %333, %334 : vector<16x16xf32>
    %336 = arith.addf %335, %321 : vector<16x16xf32>
    %cst_122 = arith.constant dense<0xFF800000> : vector<16xf32>
    %337 = vector.multi_reduction <maximumf>, %336, %cst_122 [1] : vector<16x16xf32> to vector<16xf32>
    %338 = vector.shape_cast %337 : vector<16xf32> to vector<16x1xf32>
    %339 = vector.broadcast %338 : vector<16x1xf32> to vector<16x16xf32>
    %340 = arith.subf %336, %339 : vector<16x16xf32>
    %341 = math.exp %340 : vector<16x16xf32>
    %cst_123 = arith.constant dense<0.000000e+00> : vector<16xf32>
    %342 = vector.multi_reduction <add>, %341, %cst_123 [1] : vector<16x16xf32> to vector<16xf32>
    %343 = vector.shape_cast %342 : vector<16xf32> to vector<16x1xf32>
    %344 = tpu.reciprocal %343 {approx = true} : vector<16x1xf32> -> vector<16x1xf32>
    %345 = vector.broadcast %344 : vector<16x1xf32> to vector<16x16xf32>
    %346 = arith.mulf %341, %345 : vector<16x16xf32>
    %347 = vector.extract_strided_slice %330 {offsets = [0, 0], sizes = [16, 8], strides = [1, 1]} : vector<16x32xf32> to vector<16x8xf32>
    %cst_124 = arith.constant dense<0.000000e+00> : vector<16x8xf32>
    %348 = tpu.matmul %346, %347, %cst_124 {dimension_numbers = #tpu.dot_dimension_numbers<[1], [0], [0], [1], [0, 0, 1, 1], [], []>} : vector<16x16xf32>, vector<16x8xf32>, vector<16x8xf32> -> vector<16x8xf32>
    %349 = vector.extract_strided_slice %328 {offsets = [0, 8], sizes = [16, 8], strides = [1, 1]} : vector<16x32xf32> to vector<16x8xf32>
    %350 = vector.extract_strided_slice %329 {offsets = [0, 8], sizes = [16, 8], strides = [1, 1]} : vector<16x32xf32> to vector<16x8xf32>
    %cst_125 = arith.constant dense<0.000000e+00> : vector<16x16xf32>
    %351 = tpu.matmul %349, %350, %cst_125 {dimension_numbers = #tpu.dot_dimension_numbers<[1], [1], [0], [0], [0, 0, 1, 0], [], []>} : vector<16x8xf32>, vector<16x8xf32>, vector<16x16xf32> -> vector<16x16xf32>
    %cst_126 = arith.constant 0.353553385 : f32
    %352 = vector.broadcast %cst_126 : f32 to vector<16x16xf32>
    %353 = arith.mulf %351, %352 : vector<16x16xf32>
    %354 = arith.addf %353, %321 : vector<16x16xf32>
    %cst_127 = arith.constant dense<0xFF800000> : vector<16xf32>
    %355 = vector.multi_reduction <maximumf>, %354, %cst_127 [1] : vector<16x16xf32> to vector<16xf32>
    %356 = vector.shape_cast %355 : vector<16xf32> to vector<16x1xf32>
    %357 = vector.broadcast %356 : vector<16x1xf32> to vector<16x16xf32>
    %358 = arith.subf %354, %357 : vector<16x16xf32>
    %359 = math.exp %358 : vector<16x16xf32>
    %cst_128 = arith.constant dense<0.000000e+00> : vector<16xf32>
    %360 = vector.multi_reduction <add>, %359, %cst_128 [1] : vector<16x16xf32> to vector<16xf32>
    %361 = vector.shape_cast %360 : vector<16xf32> to vector<16x1xf32>
    %362 = tpu.reciprocal %361 {approx = true} : vector<16x1xf32> -> vector<16x1xf32>
    %363 = vector.broadcast %362 : vector<16x1xf32> to vector<16x16xf32>
    %364 = arith.mulf %359, %363 : vector<16x16xf32>
    %365 = vector.extract_strided_slice %330 {offsets = [0, 8], sizes = [16, 8], strides = [1, 1]} : vector<16x32xf32> to vector<16x8xf32>
    %cst_129 = arith.constant dense<0.000000e+00> : vector<16x8xf32>
    %366 = tpu.matmul %364, %365, %cst_129 {dimension_numbers = #tpu.dot_dimension_numbers<[1], [0], [0], [1], [0, 0, 1, 1], [], []>} : vector<16x16xf32>, vector<16x8xf32>, vector<16x8xf32> -> vector<16x8xf32>
    %367 = vector.extract_strided_slice %328 {offsets = [0, 16], sizes = [16, 8], strides = [1, 1]} : vector<16x32xf32> to vector<16x8xf32>
    %368 = vector.extract_strided_slice %329 {offsets = [0, 16], sizes = [16, 8], strides = [1, 1]} : vector<16x32xf32> to vector<16x8xf32>
    %cst_130 = arith.constant dense<0.000000e+00> : vector<16x16xf32>
    %369 = tpu.matmul %367, %368, %cst_130 {dimension_numbers = #tpu.dot_dimension_numbers<[1], [1], [0], [0], [0, 0, 1, 0], [], []>} : vector<16x8xf32>, vector<16x8xf32>, vector<16x16xf32> -> vector<16x16xf32>
    %cst_131 = arith.constant 0.353553385 : f32
    %370 = vector.broadcast %cst_131 : f32 to vector<16x16xf32>
    %371 = arith.mulf %369, %370 : vector<16x16xf32>
    %372 = arith.addf %371, %321 : vector<16x16xf32>
    %cst_132 = arith.constant dense<0xFF800000> : vector<16xf32>
    %373 = vector.multi_reduction <maximumf>, %372, %cst_132 [1] : vector<16x16xf32> to vector<16xf32>
    %374 = vector.shape_cast %373 : vector<16xf32> to vector<16x1xf32>
    %375 = vector.broadcast %374 : vector<16x1xf32> to vector<16x16xf32>
    %376 = arith.subf %372, %375 : vector<16x16xf32>
    %377 = math.exp %376 : vector<16x16xf32>
    %cst_133 = arith.constant dense<0.000000e+00> : vector<16xf32>
    %378 = vector.multi_reduction <add>, %377, %cst_133 [1] : vector<16x16xf32> to vector<16xf32>
    %379 = vector.shape_cast %378 : vector<16xf32> to vector<16x1xf32>
    %380 = tpu.reciprocal %379 {approx = true} : vector<16x1xf32> -> vector<16x1xf32>
    %381 = vector.broadcast %380 : vector<16x1xf32> to vector<16x16xf32>
    %382 = arith.mulf %377, %381 : vector<16x16xf32>
    %383 = vector.extract_strided_slice %330 {offsets = [0, 16], sizes = [16, 8], strides = [1, 1]} : vector<16x32xf32> to vector<16x8xf32>
    %cst_134 = arith.constant dense<0.000000e+00> : vector<16x8xf32>
    %384 = tpu.matmul %382, %383, %cst_134 {dimension_numbers = #tpu.dot_dimension_numbers<[1], [0], [0], [1], [0, 0, 1, 1], [], []>} : vector<16x16xf32>, vector<16x8xf32>, vector<16x8xf32> -> vector<16x8xf32>
    %385 = vector.extract_strided_slice %328 {offsets = [0, 24], sizes = [16, 8], strides = [1, 1]} : vector<16x32xf32> to vector<16x8xf32>
    %386 = vector.extract_strided_slice %329 {offsets = [0, 24], sizes = [16, 8], strides = [1, 1]} : vector<16x32xf32> to vector<16x8xf32>
    %cst_135 = arith.constant dense<0.000000e+00> : vector<16x16xf32>
    %387 = tpu.matmul %385, %386, %cst_135 {dimension_numbers = #tpu.dot_dimension_numbers<[1], [1], [0], [0], [0, 0, 1, 0], [], []>} : vector<16x8xf32>, vector<16x8xf32>, vector<16x16xf32> -> vector<16x16xf32>
    %cst_136 = arith.constant 0.353553385 : f32
    %388 = vector.broadcast %cst_136 : f32 to vector<16x16xf32>
    %389 = arith.mulf %387, %388 : vector<16x16xf32>
    %390 = arith.addf %389, %321 : vector<16x16xf32>
    %cst_137 = arith.constant dense<0xFF800000> : vector<16xf32>
    %391 = vector.multi_reduction <maximumf>, %390, %cst_137 [1] : vector<16x16xf32> to vector<16xf32>
    %392 = vector.shape_cast %391 : vector<16xf32> to vector<16x1xf32>
    %393 = vector.broadcast %392 : vector<16x1xf32> to vector<16x16xf32>
    %394 = arith.subf %390, %393 : vector<16x16xf32>
    %395 = math.exp %394 : vector<16x16xf32>
    %cst_138 = arith.constant dense<0.000000e+00> : vector<16xf32>
    %396 = vector.multi_reduction <add>, %395, %cst_138 [1] : vector<16x16xf32> to vector<16xf32>
    %397 = vector.shape_cast %396 : vector<16xf32> to vector<16x1xf32>
    %398 = tpu.reciprocal %397 {approx = true} : vector<16x1xf32> -> vector<16x1xf32>
    %399 = vector.broadcast %398 : vector<16x1xf32> to vector<16x16xf32>
    %400 = arith.mulf %395, %399 : vector<16x16xf32>
    %401 = vector.extract_strided_slice %330 {offsets = [0, 24], sizes = [16, 8], strides = [1, 1]} : vector<16x32xf32> to vector<16x8xf32>
    %cst_139 = arith.constant dense<0.000000e+00> : vector<16x8xf32>
    %402 = tpu.matmul %400, %401, %cst_139 {dimension_numbers = #tpu.dot_dimension_numbers<[1], [0], [0], [1], [0, 0, 1, 1], [], []>} : vector<16x16xf32>, vector<16x8xf32>, vector<16x8xf32> -> vector<16x8xf32>
    %403 = tpu.concatenate %348, %366, %384, %402 in 1 : vector<16x8xf32>, vector<16x8xf32>, vector<16x8xf32>, vector<16x8xf32> -> vector<16x32xf32>
    %c0_140 = arith.constant 0 : index
    %c896 = arith.constant 896 : index
    %404 = vector.load %arg7[%c0_140, %c896] : memref<32x2304xf32, #tpu.memory_space<vmem>>, vector<32x32xf32>
    %cst_141 = arith.constant dense<0.000000e+00> : vector<16x32xf32>
    %405 = tpu.matmul %403, %404, %cst_141 {dimension_numbers = #tpu.dot_dimension_numbers<[1], [0], [0], [1], [0, 0, 1, 1], [], []>} : vector<16x32xf32>, vector<32x32xf32>, vector<16x32xf32> -> vector<16x32xf32>
    %c17 = arith.constant 17 : index
    %c0_142 = arith.constant 0 : index
    %406 = vector.load %arg9[%c17, %c0_142] : memref<41x128xf32, #tpu.memory_space<vmem>>, vector<1x32xf32>
    %407 = vector.broadcast %406 : vector<1x32xf32> to vector<16x32xf32>
    %408 = arith.addf %405, %407 : vector<16x32xf32>
    %409 = arith.addf %408, %320 : vector<16x32xf32>
    %c22 = arith.constant 22 : index
    %c0_143 = arith.constant 0 : index
    %410 = vector.load %arg9[%c22, %c0_143] : memref<41x128xf32, #tpu.memory_space<vmem>>, vector<1x32xf32>
    %c23 = arith.constant 23 : index
    %c0_144 = arith.constant 0 : index
    %411 = vector.load %arg9[%c23, %c0_144] : memref<41x128xf32, #tpu.memory_space<vmem>>, vector<1x32xf32>
    %cst_145 = arith.constant dense<0.000000e+00> : vector<16xf32>
    %412 = vector.multi_reduction <add>, %409, %cst_145 [1] : vector<16x32xf32> to vector<16xf32>
    %413 = vector.shape_cast %412 : vector<16xf32> to vector<16x1xf32>
    %cst_146 = arith.constant 3.200000e+01 : f32
    %414 = vector.broadcast %cst_146 : f32 to vector<16x1xf32>
    %415 = arith.divf %413, %414 : vector<16x1xf32>
    %416 = vector.broadcast %415 : vector<16x1xf32> to vector<16x32xf32>
    %417 = arith.subf %409, %416 : vector<16x32xf32>
    %418 = arith.mulf %417, %417 : vector<16x32xf32>
    %cst_147 = arith.constant dense<0.000000e+00> : vector<16xf32>
    %419 = vector.multi_reduction <add>, %418, %cst_147 [1] : vector<16x32xf32> to vector<16xf32>
    %420 = vector.shape_cast %419 : vector<16xf32> to vector<16x1xf32>
    %cst_148 = arith.constant 3.200000e+01 : f32
    %421 = vector.broadcast %cst_148 : f32 to vector<16x1xf32>
    %422 = arith.divf %420, %421 : vector<16x1xf32>
    %423 = vector.broadcast %415 : vector<16x1xf32> to vector<16x32xf32>
    %424 = arith.subf %409, %423 : vector<16x32xf32>
    %cst_149 = arith.constant 9.99999974E-6 : f32
    %425 = vector.broadcast %cst_149 : f32 to vector<16x1xf32>
    %426 = arith.addf %422, %425 : vector<16x1xf32>
    %427 = math.rsqrt %426 : vector<16x1xf32>
    %428 = vector.broadcast %427 : vector<16x1xf32> to vector<16x32xf32>
    %429 = arith.mulf %424, %428 : vector<16x32xf32>
    %430 = vector.broadcast %410 : vector<1x32xf32> to vector<16x32xf32>
    %431 = arith.mulf %429, %430 : vector<16x32xf32>
    %432 = vector.broadcast %411 : vector<1x32xf32> to vector<16x32xf32>
    %433 = arith.addf %431, %432 : vector<16x32xf32>
    %c0_150 = arith.constant 0 : index
    %c1024 = arith.constant 1024 : index
    %434 = vector.load %arg7[%c0_150, %c1024] : memref<32x2304xf32, #tpu.memory_space<vmem>>, vector<32x96xf32>
    %c18 = arith.constant 18 : index
    %c0_151 = arith.constant 0 : index
    %435 = vector.load %arg9[%c18, %c0_151] : memref<41x128xf32, #tpu.memory_space<vmem>>, vector<1x96xf32>
    %436 = vector.extract_strided_slice %434 {offsets = [0, 0], sizes = [32, 32], strides = [1, 1]} : vector<32x96xf32> to vector<32x32xf32>
    %cst_152 = arith.constant dense<0.000000e+00> : vector<16x32xf32>
    %437 = tpu.matmul %433, %436, %cst_152 {dimension_numbers = #tpu.dot_dimension_numbers<[1], [0], [0], [1], [0, 0, 1, 1], [], []>} : vector<16x32xf32>, vector<32x32xf32>, vector<16x32xf32> -> vector<16x32xf32>
    %438 = vector.extract_strided_slice %435 {offsets = [0, 0], sizes = [1, 32], strides = [1, 1]} : vector<1x96xf32> to vector<1x32xf32>
    %439 = vector.broadcast %438 : vector<1x32xf32> to vector<16x32xf32>
    %440 = arith.addf %437, %439 : vector<16x32xf32>
    %441 = vector.extract_strided_slice %434 {offsets = [0, 32], sizes = [32, 64], strides = [1, 1]} : vector<32x96xf32> to vector<32x64xf32>
    %cst_153 = arith.constant dense<0.000000e+00> : vector<16x64xf32>
    %442 = tpu.matmul %308, %441, %cst_153 {dimension_numbers = #tpu.dot_dimension_numbers<[1], [0], [0], [1], [0, 0, 1, 1], [], []>} : vector<16x32xf32>, vector<32x64xf32>, vector<16x64xf32> -> vector<16x64xf32>
    %443 = vector.extract_strided_slice %435 {offsets = [0, 32], sizes = [1, 64], strides = [1, 1]} : vector<1x96xf32> to vector<1x64xf32>
    %444 = vector.broadcast %443 : vector<1x64xf32> to vector<16x64xf32>
    %445 = arith.addf %442, %444 : vector<16x64xf32>
    %446 = vector.extract_strided_slice %445 {offsets = [0, 0], sizes = [16, 32], strides = [1, 1]} : vector<16x64xf32> to vector<16x32xf32>
    %447 = vector.extract_strided_slice %445 {offsets = [0, 32], sizes = [16, 32], strides = [1, 1]} : vector<16x64xf32> to vector<16x32xf32>
    %448 = vector.extract_strided_slice %440 {offsets = [0, 0], sizes = [16, 8], strides = [1, 1]} : vector<16x32xf32> to vector<16x8xf32>
    %449 = vector.extract_strided_slice %446 {offsets = [0, 0], sizes = [16, 8], strides = [1, 1]} : vector<16x32xf32> to vector<16x8xf32>
    %cst_154 = arith.constant dense<0.000000e+00> : vector<16x16xf32>
    %450 = tpu.matmul %448, %449, %cst_154 {dimension_numbers = #tpu.dot_dimension_numbers<[1], [1], [0], [0], [0, 0, 1, 0], [], []>} : vector<16x8xf32>, vector<16x8xf32>, vector<16x16xf32> -> vector<16x16xf32>
    %cst_155 = arith.constant 0.353553385 : f32
    %451 = vector.broadcast %cst_155 : f32 to vector<16x16xf32>
    %452 = arith.mulf %450, %451 : vector<16x16xf32>
    %453 = arith.addf %452, %322 : vector<16x16xf32>
    %cst_156 = arith.constant dense<0xFF800000> : vector<16xf32>
    %454 = vector.multi_reduction <maximumf>, %453, %cst_156 [1] : vector<16x16xf32> to vector<16xf32>
    %455 = vector.shape_cast %454 : vector<16xf32> to vector<16x1xf32>
    %456 = vector.broadcast %455 : vector<16x1xf32> to vector<16x16xf32>
    %457 = arith.subf %453, %456 : vector<16x16xf32>
    %458 = math.exp %457 : vector<16x16xf32>
    %cst_157 = arith.constant dense<0.000000e+00> : vector<16xf32>
    %459 = vector.multi_reduction <add>, %458, %cst_157 [1] : vector<16x16xf32> to vector<16xf32>
    %460 = vector.shape_cast %459 : vector<16xf32> to vector<16x1xf32>
    %461 = tpu.reciprocal %460 {approx = true} : vector<16x1xf32> -> vector<16x1xf32>
    %462 = vector.broadcast %461 : vector<16x1xf32> to vector<16x16xf32>
    %463 = arith.mulf %458, %462 : vector<16x16xf32>
    %464 = vector.extract_strided_slice %447 {offsets = [0, 0], sizes = [16, 8], strides = [1, 1]} : vector<16x32xf32> to vector<16x8xf32>
    %cst_158 = arith.constant dense<0.000000e+00> : vector<16x8xf32>
    %465 = tpu.matmul %463, %464, %cst_158 {dimension_numbers = #tpu.dot_dimension_numbers<[1], [0], [0], [1], [0, 0, 1, 1], [], []>} : vector<16x16xf32>, vector<16x8xf32>, vector<16x8xf32> -> vector<16x8xf32>
    %466 = vector.extract_strided_slice %440 {offsets = [0, 8], sizes = [16, 8], strides = [1, 1]} : vector<16x32xf32> to vector<16x8xf32>
    %467 = vector.extract_strided_slice %446 {offsets = [0, 8], sizes = [16, 8], strides = [1, 1]} : vector<16x32xf32> to vector<16x8xf32>
    %cst_159 = arith.constant dense<0.000000e+00> : vector<16x16xf32>
    %468 = tpu.matmul %466, %467, %cst_159 {dimension_numbers = #tpu.dot_dimension_numbers<[1], [1], [0], [0], [0, 0, 1, 0], [], []>} : vector<16x8xf32>, vector<16x8xf32>, vector<16x16xf32> -> vector<16x16xf32>
    %cst_160 = arith.constant 0.353553385 : f32
    %469 = vector.broadcast %cst_160 : f32 to vector<16x16xf32>
    %470 = arith.mulf %468, %469 : vector<16x16xf32>
    %471 = arith.addf %470, %322 : vector<16x16xf32>
    %cst_161 = arith.constant dense<0xFF800000> : vector<16xf32>
    %472 = vector.multi_reduction <maximumf>, %471, %cst_161 [1] : vector<16x16xf32> to vector<16xf32>
    %473 = vector.shape_cast %472 : vector<16xf32> to vector<16x1xf32>
    %474 = vector.broadcast %473 : vector<16x1xf32> to vector<16x16xf32>
    %475 = arith.subf %471, %474 : vector<16x16xf32>
    %476 = math.exp %475 : vector<16x16xf32>
    %cst_162 = arith.constant dense<0.000000e+00> : vector<16xf32>
    %477 = vector.multi_reduction <add>, %476, %cst_162 [1] : vector<16x16xf32> to vector<16xf32>
    %478 = vector.shape_cast %477 : vector<16xf32> to vector<16x1xf32>
    %479 = tpu.reciprocal %478 {approx = true} : vector<16x1xf32> -> vector<16x1xf32>
    %480 = vector.broadcast %479 : vector<16x1xf32> to vector<16x16xf32>
    %481 = arith.mulf %476, %480 : vector<16x16xf32>
    %482 = vector.extract_strided_slice %447 {offsets = [0, 8], sizes = [16, 8], strides = [1, 1]} : vector<16x32xf32> to vector<16x8xf32>
    %cst_163 = arith.constant dense<0.000000e+00> : vector<16x8xf32>
    %483 = tpu.matmul %481, %482, %cst_163 {dimension_numbers = #tpu.dot_dimension_numbers<[1], [0], [0], [1], [0, 0, 1, 1], [], []>} : vector<16x16xf32>, vector<16x8xf32>, vector<16x8xf32> -> vector<16x8xf32>
    %484 = vector.extract_strided_slice %440 {offsets = [0, 16], sizes = [16, 8], strides = [1, 1]} : vector<16x32xf32> to vector<16x8xf32>
    %485 = vector.extract_strided_slice %446 {offsets = [0, 16], sizes = [16, 8], strides = [1, 1]} : vector<16x32xf32> to vector<16x8xf32>
    %cst_164 = arith.constant dense<0.000000e+00> : vector<16x16xf32>
    %486 = tpu.matmul %484, %485, %cst_164 {dimension_numbers = #tpu.dot_dimension_numbers<[1], [1], [0], [0], [0, 0, 1, 0], [], []>} : vector<16x8xf32>, vector<16x8xf32>, vector<16x16xf32> -> vector<16x16xf32>
    %cst_165 = arith.constant 0.353553385 : f32
    %487 = vector.broadcast %cst_165 : f32 to vector<16x16xf32>
    %488 = arith.mulf %486, %487 : vector<16x16xf32>
    %489 = arith.addf %488, %322 : vector<16x16xf32>
    %cst_166 = arith.constant dense<0xFF800000> : vector<16xf32>
    %490 = vector.multi_reduction <maximumf>, %489, %cst_166 [1] : vector<16x16xf32> to vector<16xf32>
    %491 = vector.shape_cast %490 : vector<16xf32> to vector<16x1xf32>
    %492 = vector.broadcast %491 : vector<16x1xf32> to vector<16x16xf32>
    %493 = arith.subf %489, %492 : vector<16x16xf32>
    %494 = math.exp %493 : vector<16x16xf32>
    %cst_167 = arith.constant dense<0.000000e+00> : vector<16xf32>
    %495 = vector.multi_reduction <add>, %494, %cst_167 [1] : vector<16x16xf32> to vector<16xf32>
    %496 = vector.shape_cast %495 : vector<16xf32> to vector<16x1xf32>
    %497 = tpu.reciprocal %496 {approx = true} : vector<16x1xf32> -> vector<16x1xf32>
    %498 = vector.broadcast %497 : vector<16x1xf32> to vector<16x16xf32>
    %499 = arith.mulf %494, %498 : vector<16x16xf32>
    %500 = vector.extract_strided_slice %447 {offsets = [0, 16], sizes = [16, 8], strides = [1, 1]} : vector<16x32xf32> to vector<16x8xf32>
    %cst_168 = arith.constant dense<0.000000e+00> : vector<16x8xf32>
    %501 = tpu.matmul %499, %500, %cst_168 {dimension_numbers = #tpu.dot_dimension_numbers<[1], [0], [0], [1], [0, 0, 1, 1], [], []>} : vector<16x16xf32>, vector<16x8xf32>, vector<16x8xf32> -> vector<16x8xf32>
    %502 = vector.extract_strided_slice %440 {offsets = [0, 24], sizes = [16, 8], strides = [1, 1]} : vector<16x32xf32> to vector<16x8xf32>
    %503 = vector.extract_strided_slice %446 {offsets = [0, 24], sizes = [16, 8], strides = [1, 1]} : vector<16x32xf32> to vector<16x8xf32>
    %cst_169 = arith.constant dense<0.000000e+00> : vector<16x16xf32>
    %504 = tpu.matmul %502, %503, %cst_169 {dimension_numbers = #tpu.dot_dimension_numbers<[1], [1], [0], [0], [0, 0, 1, 0], [], []>} : vector<16x8xf32>, vector<16x8xf32>, vector<16x16xf32> -> vector<16x16xf32>
    %cst_170 = arith.constant 0.353553385 : f32
    %505 = vector.broadcast %cst_170 : f32 to vector<16x16xf32>
    %506 = arith.mulf %504, %505 : vector<16x16xf32>
    %507 = arith.addf %506, %322 : vector<16x16xf32>
    %cst_171 = arith.constant dense<0xFF800000> : vector<16xf32>
    %508 = vector.multi_reduction <maximumf>, %507, %cst_171 [1] : vector<16x16xf32> to vector<16xf32>
    %509 = vector.shape_cast %508 : vector<16xf32> to vector<16x1xf32>
    %510 = vector.broadcast %509 : vector<16x1xf32> to vector<16x16xf32>
    %511 = arith.subf %507, %510 : vector<16x16xf32>
    %512 = math.exp %511 : vector<16x16xf32>
    %cst_172 = arith.constant dense<0.000000e+00> : vector<16xf32>
    %513 = vector.multi_reduction <add>, %512, %cst_172 [1] : vector<16x16xf32> to vector<16xf32>
    %514 = vector.shape_cast %513 : vector<16xf32> to vector<16x1xf32>
    %515 = tpu.reciprocal %514 {approx = true} : vector<16x1xf32> -> vector<16x1xf32>
    %516 = vector.broadcast %515 : vector<16x1xf32> to vector<16x16xf32>
    %517 = arith.mulf %512, %516 : vector<16x16xf32>
    %518 = vector.extract_strided_slice %447 {offsets = [0, 24], sizes = [16, 8], strides = [1, 1]} : vector<16x32xf32> to vector<16x8xf32>
    %cst_173 = arith.constant dense<0.000000e+00> : vector<16x8xf32>
    %519 = tpu.matmul %517, %518, %cst_173 {dimension_numbers = #tpu.dot_dimension_numbers<[1], [0], [0], [1], [0, 0, 1, 1], [], []>} : vector<16x16xf32>, vector<16x8xf32>, vector<16x8xf32> -> vector<16x8xf32>
    %520 = tpu.concatenate %465, %483, %501, %519 in 1 : vector<16x8xf32>, vector<16x8xf32>, vector<16x8xf32>, vector<16x8xf32> -> vector<16x32xf32>
    %c0_174 = arith.constant 0 : index
    %c1152 = arith.constant 1152 : index
    %521 = vector.load %arg7[%c0_174, %c1152] : memref<32x2304xf32, #tpu.memory_space<vmem>>, vector<32x32xf32>
    %cst_175 = arith.constant dense<0.000000e+00> : vector<16x32xf32>
    %522 = tpu.matmul %520, %521, %cst_175 {dimension_numbers = #tpu.dot_dimension_numbers<[1], [0], [0], [1], [0, 0, 1, 1], [], []>} : vector<16x32xf32>, vector<32x32xf32>, vector<16x32xf32> -> vector<16x32xf32>
    %c19 = arith.constant 19 : index
    %c0_176 = arith.constant 0 : index
    %523 = vector.load %arg9[%c19, %c0_176] : memref<41x128xf32, #tpu.memory_space<vmem>>, vector<1x32xf32>
    %524 = vector.broadcast %523 : vector<1x32xf32> to vector<16x32xf32>
    %525 = arith.addf %522, %524 : vector<16x32xf32>
    %526 = arith.addf %525, %433 : vector<16x32xf32>
    %c24 = arith.constant 24 : index
    %c0_177 = arith.constant 0 : index
    %527 = vector.load %arg9[%c24, %c0_177] : memref<41x128xf32, #tpu.memory_space<vmem>>, vector<1x32xf32>
    %c25 = arith.constant 25 : index
    %c0_178 = arith.constant 0 : index
    %528 = vector.load %arg9[%c25, %c0_178] : memref<41x128xf32, #tpu.memory_space<vmem>>, vector<1x32xf32>
    %cst_179 = arith.constant dense<0.000000e+00> : vector<16xf32>
    %529 = vector.multi_reduction <add>, %526, %cst_179 [1] : vector<16x32xf32> to vector<16xf32>
    %530 = vector.shape_cast %529 : vector<16xf32> to vector<16x1xf32>
    %cst_180 = arith.constant 3.200000e+01 : f32
    %531 = vector.broadcast %cst_180 : f32 to vector<16x1xf32>
    %532 = arith.divf %530, %531 : vector<16x1xf32>
    %533 = vector.broadcast %532 : vector<16x1xf32> to vector<16x32xf32>
    %534 = arith.subf %526, %533 : vector<16x32xf32>
    %535 = arith.mulf %534, %534 : vector<16x32xf32>
    %cst_181 = arith.constant dense<0.000000e+00> : vector<16xf32>
    %536 = vector.multi_reduction <add>, %535, %cst_181 [1] : vector<16x32xf32> to vector<16xf32>
    %537 = vector.shape_cast %536 : vector<16xf32> to vector<16x1xf32>
    %cst_182 = arith.constant 3.200000e+01 : f32
    %538 = vector.broadcast %cst_182 : f32 to vector<16x1xf32>
    %539 = arith.divf %537, %538 : vector<16x1xf32>
    %540 = vector.broadcast %532 : vector<16x1xf32> to vector<16x32xf32>
    %541 = arith.subf %526, %540 : vector<16x32xf32>
    %cst_183 = arith.constant 9.99999974E-6 : f32
    %542 = vector.broadcast %cst_183 : f32 to vector<16x1xf32>
    %543 = arith.addf %539, %542 : vector<16x1xf32>
    %544 = math.rsqrt %543 : vector<16x1xf32>
    %545 = vector.broadcast %544 : vector<16x1xf32> to vector<16x32xf32>
    %546 = arith.mulf %541, %545 : vector<16x32xf32>
    %547 = vector.broadcast %527 : vector<1x32xf32> to vector<16x32xf32>
    %548 = arith.mulf %546, %547 : vector<16x32xf32>
    %549 = vector.broadcast %528 : vector<1x32xf32> to vector<16x32xf32>
    %550 = arith.addf %548, %549 : vector<16x32xf32>
    %c0_184 = arith.constant 0 : index
    %c1280 = arith.constant 1280 : index
    %551 = vector.load %arg7[%c0_184, %c1280] : memref<32x2304xf32, #tpu.memory_space<vmem>>, vector<32x64xf32>
    %cst_185 = arith.constant dense<0.000000e+00> : vector<16x64xf32>
    %552 = tpu.matmul %550, %551, %cst_185 {dimension_numbers = #tpu.dot_dimension_numbers<[1], [0], [0], [1], [0, 0, 1, 1], [], []>} : vector<16x32xf32>, vector<32x64xf32>, vector<16x64xf32> -> vector<16x64xf32>
    %c20 = arith.constant 20 : index
    %c0_186 = arith.constant 0 : index
    %553 = vector.load %arg9[%c20, %c0_186] : memref<41x128xf32, #tpu.memory_space<vmem>>, vector<1x64xf32>
    %554 = vector.broadcast %553 : vector<1x64xf32> to vector<16x64xf32>
    %555 = arith.addf %552, %554 : vector<16x64xf32>
    %cst_187 = arith.constant 0.000000e+00 : f32
    %556 = vector.broadcast %cst_187 : f32 to vector<16x64xf32>
    %557 = arith.maximumf %555, %556 : vector<16x64xf32>
    %c0_188 = arith.constant 0 : index
    %c256_189 = arith.constant 256 : index
    %558 = vector.load %arg8[%c0_188, %c256_189] : memref<64x512xf32, #tpu.memory_space<vmem>>, vector<64x32xf32>
    %cst_190 = arith.constant dense<0.000000e+00> : vector<16x32xf32>
    %559 = tpu.matmul %557, %558, %cst_190 {dimension_numbers = #tpu.dot_dimension_numbers<[1], [0], [0], [1], [0, 0, 1, 1], [], []>} : vector<16x64xf32>, vector<64x32xf32>, vector<16x32xf32> -> vector<16x32xf32>
    %c21 = arith.constant 21 : index
    %c0_191 = arith.constant 0 : index
    %560 = vector.load %arg9[%c21, %c0_191] : memref<41x128xf32, #tpu.memory_space<vmem>>, vector<1x32xf32>
    %561 = vector.broadcast %560 : vector<1x32xf32> to vector<16x32xf32>
    %562 = arith.addf %559, %561 : vector<16x32xf32>
    %563 = arith.addf %562, %550 : vector<16x32xf32>
    %c26 = arith.constant 26 : index
    %c0_192 = arith.constant 0 : index
    %564 = vector.load %arg9[%c26, %c0_192] : memref<41x128xf32, #tpu.memory_space<vmem>>, vector<1x32xf32>
    %c27 = arith.constant 27 : index
    %c0_193 = arith.constant 0 : index
    %565 = vector.load %arg9[%c27, %c0_193] : memref<41x128xf32, #tpu.memory_space<vmem>>, vector<1x32xf32>
    %cst_194 = arith.constant dense<0.000000e+00> : vector<16xf32>
    %566 = vector.multi_reduction <add>, %563, %cst_194 [1] : vector<16x32xf32> to vector<16xf32>
    %567 = vector.shape_cast %566 : vector<16xf32> to vector<16x1xf32>
    %cst_195 = arith.constant 3.200000e+01 : f32
    %568 = vector.broadcast %cst_195 : f32 to vector<16x1xf32>
    %569 = arith.divf %567, %568 : vector<16x1xf32>
    %570 = vector.broadcast %569 : vector<16x1xf32> to vector<16x32xf32>
    %571 = arith.subf %563, %570 : vector<16x32xf32>
    %572 = arith.mulf %571, %571 : vector<16x32xf32>
    %cst_196 = arith.constant dense<0.000000e+00> : vector<16xf32>
    %573 = vector.multi_reduction <add>, %572, %cst_196 [1] : vector<16x32xf32> to vector<16xf32>
    %574 = vector.shape_cast %573 : vector<16xf32> to vector<16x1xf32>
    %cst_197 = arith.constant 3.200000e+01 : f32
    %575 = vector.broadcast %cst_197 : f32 to vector<16x1xf32>
    %576 = arith.divf %574, %575 : vector<16x1xf32>
    %577 = vector.broadcast %569 : vector<16x1xf32> to vector<16x32xf32>
    %578 = arith.subf %563, %577 : vector<16x32xf32>
    %cst_198 = arith.constant 9.99999974E-6 : f32
    %579 = vector.broadcast %cst_198 : f32 to vector<16x1xf32>
    %580 = arith.addf %576, %579 : vector<16x1xf32>
    %581 = math.rsqrt %580 : vector<16x1xf32>
    %582 = vector.broadcast %581 : vector<16x1xf32> to vector<16x32xf32>
    %583 = arith.mulf %578, %582 : vector<16x32xf32>
    %584 = vector.broadcast %564 : vector<1x32xf32> to vector<16x32xf32>
    %585 = arith.mulf %583, %584 : vector<16x32xf32>
    %586 = vector.broadcast %565 : vector<1x32xf32> to vector<16x32xf32>
    %587 = arith.addf %585, %586 : vector<16x32xf32>
    %c0_199 = arith.constant 0 : index
    %c1408 = arith.constant 1408 : index
    %588 = vector.load %arg7[%c0_199, %c1408] : memref<32x2304xf32, #tpu.memory_space<vmem>>, vector<32x96xf32>
    %c28 = arith.constant 28 : index
    %c0_200 = arith.constant 0 : index
    %589 = vector.load %arg9[%c28, %c0_200] : memref<41x128xf32, #tpu.memory_space<vmem>>, vector<1x96xf32>
    %cst_201 = arith.constant dense<0.000000e+00> : vector<16x96xf32>
    %590 = tpu.matmul %587, %588, %cst_201 {dimension_numbers = #tpu.dot_dimension_numbers<[1], [0], [0], [1], [0, 0, 1, 1], [], []>} : vector<16x32xf32>, vector<32x96xf32>, vector<16x96xf32> -> vector<16x96xf32>
    %591 = vector.broadcast %589 : vector<1x96xf32> to vector<16x96xf32>
    %592 = arith.addf %590, %591 : vector<16x96xf32>
    %593 = vector.extract_strided_slice %592 {offsets = [0, 0], sizes = [16, 32], strides = [1, 1]} : vector<16x96xf32> to vector<16x32xf32>
    %594 = vector.extract_strided_slice %592 {offsets = [0, 32], sizes = [16, 32], strides = [1, 1]} : vector<16x96xf32> to vector<16x32xf32>
    %595 = vector.extract_strided_slice %592 {offsets = [0, 64], sizes = [16, 32], strides = [1, 1]} : vector<16x96xf32> to vector<16x32xf32>
    %596 = vector.extract_strided_slice %593 {offsets = [0, 0], sizes = [16, 8], strides = [1, 1]} : vector<16x32xf32> to vector<16x8xf32>
    %597 = vector.extract_strided_slice %594 {offsets = [0, 0], sizes = [16, 8], strides = [1, 1]} : vector<16x32xf32> to vector<16x8xf32>
    %cst_202 = arith.constant dense<0.000000e+00> : vector<16x16xf32>
    %598 = tpu.matmul %596, %597, %cst_202 {dimension_numbers = #tpu.dot_dimension_numbers<[1], [1], [0], [0], [0, 0, 1, 0], [], []>} : vector<16x8xf32>, vector<16x8xf32>, vector<16x16xf32> -> vector<16x16xf32>
    %cst_203 = arith.constant 0.353553385 : f32
    %599 = vector.broadcast %cst_203 : f32 to vector<16x16xf32>
    %600 = arith.mulf %598, %599 : vector<16x16xf32>
    %601 = arith.addf %600, %321 : vector<16x16xf32>
    %cst_204 = arith.constant dense<0xFF800000> : vector<16xf32>
    %602 = vector.multi_reduction <maximumf>, %601, %cst_204 [1] : vector<16x16xf32> to vector<16xf32>
    %603 = vector.shape_cast %602 : vector<16xf32> to vector<16x1xf32>
    %604 = vector.broadcast %603 : vector<16x1xf32> to vector<16x16xf32>
    %605 = arith.subf %601, %604 : vector<16x16xf32>
    %606 = math.exp %605 : vector<16x16xf32>
    %cst_205 = arith.constant dense<0.000000e+00> : vector<16xf32>
    %607 = vector.multi_reduction <add>, %606, %cst_205 [1] : vector<16x16xf32> to vector<16xf32>
    %608 = vector.shape_cast %607 : vector<16xf32> to vector<16x1xf32>
    %609 = tpu.reciprocal %608 {approx = true} : vector<16x1xf32> -> vector<16x1xf32>
    %610 = vector.broadcast %609 : vector<16x1xf32> to vector<16x16xf32>
    %611 = arith.mulf %606, %610 : vector<16x16xf32>
    %612 = vector.extract_strided_slice %595 {offsets = [0, 0], sizes = [16, 8], strides = [1, 1]} : vector<16x32xf32> to vector<16x8xf32>
    %cst_206 = arith.constant dense<0.000000e+00> : vector<16x8xf32>
    %613 = tpu.matmul %611, %612, %cst_206 {dimension_numbers = #tpu.dot_dimension_numbers<[1], [0], [0], [1], [0, 0, 1, 1], [], []>} : vector<16x16xf32>, vector<16x8xf32>, vector<16x8xf32> -> vector<16x8xf32>
    %614 = vector.extract_strided_slice %593 {offsets = [0, 8], sizes = [16, 8], strides = [1, 1]} : vector<16x32xf32> to vector<16x8xf32>
    %615 = vector.extract_strided_slice %594 {offsets = [0, 8], sizes = [16, 8], strides = [1, 1]} : vector<16x32xf32> to vector<16x8xf32>
    %cst_207 = arith.constant dense<0.000000e+00> : vector<16x16xf32>
    %616 = tpu.matmul %614, %615, %cst_207 {dimension_numbers = #tpu.dot_dimension_numbers<[1], [1], [0], [0], [0, 0, 1, 0], [], []>} : vector<16x8xf32>, vector<16x8xf32>, vector<16x16xf32> -> vector<16x16xf32>
    %cst_208 = arith.constant 0.353553385 : f32
    %617 = vector.broadcast %cst_208 : f32 to vector<16x16xf32>
    %618 = arith.mulf %616, %617 : vector<16x16xf32>
    %619 = arith.addf %618, %321 : vector<16x16xf32>
    %cst_209 = arith.constant dense<0xFF800000> : vector<16xf32>
    %620 = vector.multi_reduction <maximumf>, %619, %cst_209 [1] : vector<16x16xf32> to vector<16xf32>
    %621 = vector.shape_cast %620 : vector<16xf32> to vector<16x1xf32>
    %622 = vector.broadcast %621 : vector<16x1xf32> to vector<16x16xf32>
    %623 = arith.subf %619, %622 : vector<16x16xf32>
    %624 = math.exp %623 : vector<16x16xf32>
    %cst_210 = arith.constant dense<0.000000e+00> : vector<16xf32>
    %625 = vector.multi_reduction <add>, %624, %cst_210 [1] : vector<16x16xf32> to vector<16xf32>
    %626 = vector.shape_cast %625 : vector<16xf32> to vector<16x1xf32>
    %627 = tpu.reciprocal %626 {approx = true} : vector<16x1xf32> -> vector<16x1xf32>
    %628 = vector.broadcast %627 : vector<16x1xf32> to vector<16x16xf32>
    %629 = arith.mulf %624, %628 : vector<16x16xf32>
    %630 = vector.extract_strided_slice %595 {offsets = [0, 8], sizes = [16, 8], strides = [1, 1]} : vector<16x32xf32> to vector<16x8xf32>
    %cst_211 = arith.constant dense<0.000000e+00> : vector<16x8xf32>
    %631 = tpu.matmul %629, %630, %cst_211 {dimension_numbers = #tpu.dot_dimension_numbers<[1], [0], [0], [1], [0, 0, 1, 1], [], []>} : vector<16x16xf32>, vector<16x8xf32>, vector<16x8xf32> -> vector<16x8xf32>
    %632 = vector.extract_strided_slice %593 {offsets = [0, 16], sizes = [16, 8], strides = [1, 1]} : vector<16x32xf32> to vector<16x8xf32>
    %633 = vector.extract_strided_slice %594 {offsets = [0, 16], sizes = [16, 8], strides = [1, 1]} : vector<16x32xf32> to vector<16x8xf32>
    %cst_212 = arith.constant dense<0.000000e+00> : vector<16x16xf32>
    %634 = tpu.matmul %632, %633, %cst_212 {dimension_numbers = #tpu.dot_dimension_numbers<[1], [1], [0], [0], [0, 0, 1, 0], [], []>} : vector<16x8xf32>, vector<16x8xf32>, vector<16x16xf32> -> vector<16x16xf32>
    %cst_213 = arith.constant 0.353553385 : f32
    %635 = vector.broadcast %cst_213 : f32 to vector<16x16xf32>
    %636 = arith.mulf %634, %635 : vector<16x16xf32>
    %637 = arith.addf %636, %321 : vector<16x16xf32>
    %cst_214 = arith.constant dense<0xFF800000> : vector<16xf32>
    %638 = vector.multi_reduction <maximumf>, %637, %cst_214 [1] : vector<16x16xf32> to vector<16xf32>
    %639 = vector.shape_cast %638 : vector<16xf32> to vector<16x1xf32>
    %640 = vector.broadcast %639 : vector<16x1xf32> to vector<16x16xf32>
    %641 = arith.subf %637, %640 : vector<16x16xf32>
    %642 = math.exp %641 : vector<16x16xf32>
    %cst_215 = arith.constant dense<0.000000e+00> : vector<16xf32>
    %643 = vector.multi_reduction <add>, %642, %cst_215 [1] : vector<16x16xf32> to vector<16xf32>
    %644 = vector.shape_cast %643 : vector<16xf32> to vector<16x1xf32>
    %645 = tpu.reciprocal %644 {approx = true} : vector<16x1xf32> -> vector<16x1xf32>
    %646 = vector.broadcast %645 : vector<16x1xf32> to vector<16x16xf32>
    %647 = arith.mulf %642, %646 : vector<16x16xf32>
    %648 = vector.extract_strided_slice %595 {offsets = [0, 16], sizes = [16, 8], strides = [1, 1]} : vector<16x32xf32> to vector<16x8xf32>
    %cst_216 = arith.constant dense<0.000000e+00> : vector<16x8xf32>
    %649 = tpu.matmul %647, %648, %cst_216 {dimension_numbers = #tpu.dot_dimension_numbers<[1], [0], [0], [1], [0, 0, 1, 1], [], []>} : vector<16x16xf32>, vector<16x8xf32>, vector<16x8xf32> -> vector<16x8xf32>
    %650 = vector.extract_strided_slice %593 {offsets = [0, 24], sizes = [16, 8], strides = [1, 1]} : vector<16x32xf32> to vector<16x8xf32>
    %651 = vector.extract_strided_slice %594 {offsets = [0, 24], sizes = [16, 8], strides = [1, 1]} : vector<16x32xf32> to vector<16x8xf32>
    %cst_217 = arith.constant dense<0.000000e+00> : vector<16x16xf32>
    %652 = tpu.matmul %650, %651, %cst_217 {dimension_numbers = #tpu.dot_dimension_numbers<[1], [1], [0], [0], [0, 0, 1, 0], [], []>} : vector<16x8xf32>, vector<16x8xf32>, vector<16x16xf32> -> vector<16x16xf32>
    %cst_218 = arith.constant 0.353553385 : f32
    %653 = vector.broadcast %cst_218 : f32 to vector<16x16xf32>
    %654 = arith.mulf %652, %653 : vector<16x16xf32>
    %655 = arith.addf %654, %321 : vector<16x16xf32>
    %cst_219 = arith.constant dense<0xFF800000> : vector<16xf32>
    %656 = vector.multi_reduction <maximumf>, %655, %cst_219 [1] : vector<16x16xf32> to vector<16xf32>
    %657 = vector.shape_cast %656 : vector<16xf32> to vector<16x1xf32>
    %658 = vector.broadcast %657 : vector<16x1xf32> to vector<16x16xf32>
    %659 = arith.subf %655, %658 : vector<16x16xf32>
    %660 = math.exp %659 : vector<16x16xf32>
    %cst_220 = arith.constant dense<0.000000e+00> : vector<16xf32>
    %661 = vector.multi_reduction <add>, %660, %cst_220 [1] : vector<16x16xf32> to vector<16xf32>
    %662 = vector.shape_cast %661 : vector<16xf32> to vector<16x1xf32>
    %663 = tpu.reciprocal %662 {approx = true} : vector<16x1xf32> -> vector<16x1xf32>
    %664 = vector.broadcast %663 : vector<16x1xf32> to vector<16x16xf32>
    %665 = arith.mulf %660, %664 : vector<16x16xf32>
    %666 = vector.extract_strided_slice %595 {offsets = [0, 24], sizes = [16, 8], strides = [1, 1]} : vector<16x32xf32> to vector<16x8xf32>
    %cst_221 = arith.constant dense<0.000000e+00> : vector<16x8xf32>
    %667 = tpu.matmul %665, %666, %cst_221 {dimension_numbers = #tpu.dot_dimension_numbers<[1], [0], [0], [1], [0, 0, 1, 1], [], []>} : vector<16x16xf32>, vector<16x8xf32>, vector<16x8xf32> -> vector<16x8xf32>
    %668 = tpu.concatenate %613, %631, %649, %667 in 1 : vector<16x8xf32>, vector<16x8xf32>, vector<16x8xf32>, vector<16x8xf32> -> vector<16x32xf32>
    %c0_222 = arith.constant 0 : index
    %c1536 = arith.constant 1536 : index
    %669 = vector.load %arg7[%c0_222, %c1536] : memref<32x2304xf32, #tpu.memory_space<vmem>>, vector<32x32xf32>
    %cst_223 = arith.constant dense<0.000000e+00> : vector<16x32xf32>
    %670 = tpu.matmul %668, %669, %cst_223 {dimension_numbers = #tpu.dot_dimension_numbers<[1], [0], [0], [1], [0, 0, 1, 1], [], []>} : vector<16x32xf32>, vector<32x32xf32>, vector<16x32xf32> -> vector<16x32xf32>
    %c29 = arith.constant 29 : index
    %c0_224 = arith.constant 0 : index
    %671 = vector.load %arg9[%c29, %c0_224] : memref<41x128xf32, #tpu.memory_space<vmem>>, vector<1x32xf32>
    %672 = vector.broadcast %671 : vector<1x32xf32> to vector<16x32xf32>
    %673 = arith.addf %670, %672 : vector<16x32xf32>
    %674 = arith.addf %673, %587 : vector<16x32xf32>
    %c34 = arith.constant 34 : index
    %c0_225 = arith.constant 0 : index
    %675 = vector.load %arg9[%c34, %c0_225] : memref<41x128xf32, #tpu.memory_space<vmem>>, vector<1x32xf32>
    %c35 = arith.constant 35 : index
    %c0_226 = arith.constant 0 : index
    %676 = vector.load %arg9[%c35, %c0_226] : memref<41x128xf32, #tpu.memory_space<vmem>>, vector<1x32xf32>
    %cst_227 = arith.constant dense<0.000000e+00> : vector<16xf32>
    %677 = vector.multi_reduction <add>, %674, %cst_227 [1] : vector<16x32xf32> to vector<16xf32>
    %678 = vector.shape_cast %677 : vector<16xf32> to vector<16x1xf32>
    %cst_228 = arith.constant 3.200000e+01 : f32
    %679 = vector.broadcast %cst_228 : f32 to vector<16x1xf32>
    %680 = arith.divf %678, %679 : vector<16x1xf32>
    %681 = vector.broadcast %680 : vector<16x1xf32> to vector<16x32xf32>
    %682 = arith.subf %674, %681 : vector<16x32xf32>
    %683 = arith.mulf %682, %682 : vector<16x32xf32>
    %cst_229 = arith.constant dense<0.000000e+00> : vector<16xf32>
    %684 = vector.multi_reduction <add>, %683, %cst_229 [1] : vector<16x32xf32> to vector<16xf32>
    %685 = vector.shape_cast %684 : vector<16xf32> to vector<16x1xf32>
    %cst_230 = arith.constant 3.200000e+01 : f32
    %686 = vector.broadcast %cst_230 : f32 to vector<16x1xf32>
    %687 = arith.divf %685, %686 : vector<16x1xf32>
    %688 = vector.broadcast %680 : vector<16x1xf32> to vector<16x32xf32>
    %689 = arith.subf %674, %688 : vector<16x32xf32>
    %cst_231 = arith.constant 9.99999974E-6 : f32
    %690 = vector.broadcast %cst_231 : f32 to vector<16x1xf32>
    %691 = arith.addf %687, %690 : vector<16x1xf32>
    %692 = math.rsqrt %691 : vector<16x1xf32>
    %693 = vector.broadcast %692 : vector<16x1xf32> to vector<16x32xf32>
    %694 = arith.mulf %689, %693 : vector<16x32xf32>
    %695 = vector.broadcast %675 : vector<1x32xf32> to vector<16x32xf32>
    %696 = arith.mulf %694, %695 : vector<16x32xf32>
    %697 = vector.broadcast %676 : vector<1x32xf32> to vector<16x32xf32>
    %698 = arith.addf %696, %697 : vector<16x32xf32>
    %c0_232 = arith.constant 0 : index
    %c1664 = arith.constant 1664 : index
    %699 = vector.load %arg7[%c0_232, %c1664] : memref<32x2304xf32, #tpu.memory_space<vmem>>, vector<32x96xf32>
    %c30 = arith.constant 30 : index
    %c0_233 = arith.constant 0 : index
    %700 = vector.load %arg9[%c30, %c0_233] : memref<41x128xf32, #tpu.memory_space<vmem>>, vector<1x96xf32>
    %701 = vector.extract_strided_slice %699 {offsets = [0, 0], sizes = [32, 32], strides = [1, 1]} : vector<32x96xf32> to vector<32x32xf32>
    %cst_234 = arith.constant dense<0.000000e+00> : vector<16x32xf32>
    %702 = tpu.matmul %698, %701, %cst_234 {dimension_numbers = #tpu.dot_dimension_numbers<[1], [0], [0], [1], [0, 0, 1, 1], [], []>} : vector<16x32xf32>, vector<32x32xf32>, vector<16x32xf32> -> vector<16x32xf32>
    %703 = vector.extract_strided_slice %700 {offsets = [0, 0], sizes = [1, 32], strides = [1, 1]} : vector<1x96xf32> to vector<1x32xf32>
    %704 = vector.broadcast %703 : vector<1x32xf32> to vector<16x32xf32>
    %705 = arith.addf %702, %704 : vector<16x32xf32>
    %706 = vector.extract_strided_slice %699 {offsets = [0, 32], sizes = [32, 64], strides = [1, 1]} : vector<32x96xf32> to vector<32x64xf32>
    %cst_235 = arith.constant dense<0.000000e+00> : vector<16x64xf32>
    %707 = tpu.matmul %308, %706, %cst_235 {dimension_numbers = #tpu.dot_dimension_numbers<[1], [0], [0], [1], [0, 0, 1, 1], [], []>} : vector<16x32xf32>, vector<32x64xf32>, vector<16x64xf32> -> vector<16x64xf32>
    %708 = vector.extract_strided_slice %700 {offsets = [0, 32], sizes = [1, 64], strides = [1, 1]} : vector<1x96xf32> to vector<1x64xf32>
    %709 = vector.broadcast %708 : vector<1x64xf32> to vector<16x64xf32>
    %710 = arith.addf %707, %709 : vector<16x64xf32>
    %711 = vector.extract_strided_slice %710 {offsets = [0, 0], sizes = [16, 32], strides = [1, 1]} : vector<16x64xf32> to vector<16x32xf32>
    %712 = vector.extract_strided_slice %710 {offsets = [0, 32], sizes = [16, 32], strides = [1, 1]} : vector<16x64xf32> to vector<16x32xf32>
    %713 = vector.extract_strided_slice %705 {offsets = [0, 0], sizes = [16, 8], strides = [1, 1]} : vector<16x32xf32> to vector<16x8xf32>
    %714 = vector.extract_strided_slice %711 {offsets = [0, 0], sizes = [16, 8], strides = [1, 1]} : vector<16x32xf32> to vector<16x8xf32>
    %cst_236 = arith.constant dense<0.000000e+00> : vector<16x16xf32>
    %715 = tpu.matmul %713, %714, %cst_236 {dimension_numbers = #tpu.dot_dimension_numbers<[1], [1], [0], [0], [0, 0, 1, 0], [], []>} : vector<16x8xf32>, vector<16x8xf32>, vector<16x16xf32> -> vector<16x16xf32>
    %cst_237 = arith.constant 0.353553385 : f32
    %716 = vector.broadcast %cst_237 : f32 to vector<16x16xf32>
    %717 = arith.mulf %715, %716 : vector<16x16xf32>
    %718 = arith.addf %717, %322 : vector<16x16xf32>
    %cst_238 = arith.constant dense<0xFF800000> : vector<16xf32>
    %719 = vector.multi_reduction <maximumf>, %718, %cst_238 [1] : vector<16x16xf32> to vector<16xf32>
    %720 = vector.shape_cast %719 : vector<16xf32> to vector<16x1xf32>
    %721 = vector.broadcast %720 : vector<16x1xf32> to vector<16x16xf32>
    %722 = arith.subf %718, %721 : vector<16x16xf32>
    %723 = math.exp %722 : vector<16x16xf32>
    %cst_239 = arith.constant dense<0.000000e+00> : vector<16xf32>
    %724 = vector.multi_reduction <add>, %723, %cst_239 [1] : vector<16x16xf32> to vector<16xf32>
    %725 = vector.shape_cast %724 : vector<16xf32> to vector<16x1xf32>
    %726 = tpu.reciprocal %725 {approx = true} : vector<16x1xf32> -> vector<16x1xf32>
    %727 = vector.broadcast %726 : vector<16x1xf32> to vector<16x16xf32>
    %728 = arith.mulf %723, %727 : vector<16x16xf32>
    %729 = vector.extract_strided_slice %712 {offsets = [0, 0], sizes = [16, 8], strides = [1, 1]} : vector<16x32xf32> to vector<16x8xf32>
    %cst_240 = arith.constant dense<0.000000e+00> : vector<16x8xf32>
    %730 = tpu.matmul %728, %729, %cst_240 {dimension_numbers = #tpu.dot_dimension_numbers<[1], [0], [0], [1], [0, 0, 1, 1], [], []>} : vector<16x16xf32>, vector<16x8xf32>, vector<16x8xf32> -> vector<16x8xf32>
    %731 = vector.extract_strided_slice %705 {offsets = [0, 8], sizes = [16, 8], strides = [1, 1]} : vector<16x32xf32> to vector<16x8xf32>
    %732 = vector.extract_strided_slice %711 {offsets = [0, 8], sizes = [16, 8], strides = [1, 1]} : vector<16x32xf32> to vector<16x8xf32>
    %cst_241 = arith.constant dense<0.000000e+00> : vector<16x16xf32>
    %733 = tpu.matmul %731, %732, %cst_241 {dimension_numbers = #tpu.dot_dimension_numbers<[1], [1], [0], [0], [0, 0, 1, 0], [], []>} : vector<16x8xf32>, vector<16x8xf32>, vector<16x16xf32> -> vector<16x16xf32>
    %cst_242 = arith.constant 0.353553385 : f32
    %734 = vector.broadcast %cst_242 : f32 to vector<16x16xf32>
    %735 = arith.mulf %733, %734 : vector<16x16xf32>
    %736 = arith.addf %735, %322 : vector<16x16xf32>
    %cst_243 = arith.constant dense<0xFF800000> : vector<16xf32>
    %737 = vector.multi_reduction <maximumf>, %736, %cst_243 [1] : vector<16x16xf32> to vector<16xf32>
    %738 = vector.shape_cast %737 : vector<16xf32> to vector<16x1xf32>
    %739 = vector.broadcast %738 : vector<16x1xf32> to vector<16x16xf32>
    %740 = arith.subf %736, %739 : vector<16x16xf32>
    %741 = math.exp %740 : vector<16x16xf32>
    %cst_244 = arith.constant dense<0.000000e+00> : vector<16xf32>
    %742 = vector.multi_reduction <add>, %741, %cst_244 [1] : vector<16x16xf32> to vector<16xf32>
    %743 = vector.shape_cast %742 : vector<16xf32> to vector<16x1xf32>
    %744 = tpu.reciprocal %743 {approx = true} : vector<16x1xf32> -> vector<16x1xf32>
    %745 = vector.broadcast %744 : vector<16x1xf32> to vector<16x16xf32>
    %746 = arith.mulf %741, %745 : vector<16x16xf32>
    %747 = vector.extract_strided_slice %712 {offsets = [0, 8], sizes = [16, 8], strides = [1, 1]} : vector<16x32xf32> to vector<16x8xf32>
    %cst_245 = arith.constant dense<0.000000e+00> : vector<16x8xf32>
    %748 = tpu.matmul %746, %747, %cst_245 {dimension_numbers = #tpu.dot_dimension_numbers<[1], [0], [0], [1], [0, 0, 1, 1], [], []>} : vector<16x16xf32>, vector<16x8xf32>, vector<16x8xf32> -> vector<16x8xf32>
    %749 = vector.extract_strided_slice %705 {offsets = [0, 16], sizes = [16, 8], strides = [1, 1]} : vector<16x32xf32> to vector<16x8xf32>
    %750 = vector.extract_strided_slice %711 {offsets = [0, 16], sizes = [16, 8], strides = [1, 1]} : vector<16x32xf32> to vector<16x8xf32>
    %cst_246 = arith.constant dense<0.000000e+00> : vector<16x16xf32>
    %751 = tpu.matmul %749, %750, %cst_246 {dimension_numbers = #tpu.dot_dimension_numbers<[1], [1], [0], [0], [0, 0, 1, 0], [], []>} : vector<16x8xf32>, vector<16x8xf32>, vector<16x16xf32> -> vector<16x16xf32>
    %cst_247 = arith.constant 0.353553385 : f32
    %752 = vector.broadcast %cst_247 : f32 to vector<16x16xf32>
    %753 = arith.mulf %751, %752 : vector<16x16xf32>
    %754 = arith.addf %753, %322 : vector<16x16xf32>
    %cst_248 = arith.constant dense<0xFF800000> : vector<16xf32>
    %755 = vector.multi_reduction <maximumf>, %754, %cst_248 [1] : vector<16x16xf32> to vector<16xf32>
    %756 = vector.shape_cast %755 : vector<16xf32> to vector<16x1xf32>
    %757 = vector.broadcast %756 : vector<16x1xf32> to vector<16x16xf32>
    %758 = arith.subf %754, %757 : vector<16x16xf32>
    %759 = math.exp %758 : vector<16x16xf32>
    %cst_249 = arith.constant dense<0.000000e+00> : vector<16xf32>
    %760 = vector.multi_reduction <add>, %759, %cst_249 [1] : vector<16x16xf32> to vector<16xf32>
    %761 = vector.shape_cast %760 : vector<16xf32> to vector<16x1xf32>
    %762 = tpu.reciprocal %761 {approx = true} : vector<16x1xf32> -> vector<16x1xf32>
    %763 = vector.broadcast %762 : vector<16x1xf32> to vector<16x16xf32>
    %764 = arith.mulf %759, %763 : vector<16x16xf32>
    %765 = vector.extract_strided_slice %712 {offsets = [0, 16], sizes = [16, 8], strides = [1, 1]} : vector<16x32xf32> to vector<16x8xf32>
    %cst_250 = arith.constant dense<0.000000e+00> : vector<16x8xf32>
    %766 = tpu.matmul %764, %765, %cst_250 {dimension_numbers = #tpu.dot_dimension_numbers<[1], [0], [0], [1], [0, 0, 1, 1], [], []>} : vector<16x16xf32>, vector<16x8xf32>, vector<16x8xf32> -> vector<16x8xf32>
    %767 = vector.extract_strided_slice %705 {offsets = [0, 24], sizes = [16, 8], strides = [1, 1]} : vector<16x32xf32> to vector<16x8xf32>
    %768 = vector.extract_strided_slice %711 {offsets = [0, 24], sizes = [16, 8], strides = [1, 1]} : vector<16x32xf32> to vector<16x8xf32>
    %cst_251 = arith.constant dense<0.000000e+00> : vector<16x16xf32>
    %769 = tpu.matmul %767, %768, %cst_251 {dimension_numbers = #tpu.dot_dimension_numbers<[1], [1], [0], [0], [0, 0, 1, 0], [], []>} : vector<16x8xf32>, vector<16x8xf32>, vector<16x16xf32> -> vector<16x16xf32>
    %cst_252 = arith.constant 0.353553385 : f32
    %770 = vector.broadcast %cst_252 : f32 to vector<16x16xf32>
    %771 = arith.mulf %769, %770 : vector<16x16xf32>
    %772 = arith.addf %771, %322 : vector<16x16xf32>
    %cst_253 = arith.constant dense<0xFF800000> : vector<16xf32>
    %773 = vector.multi_reduction <maximumf>, %772, %cst_253 [1] : vector<16x16xf32> to vector<16xf32>
    %774 = vector.shape_cast %773 : vector<16xf32> to vector<16x1xf32>
    %775 = vector.broadcast %774 : vector<16x1xf32> to vector<16x16xf32>
    %776 = arith.subf %772, %775 : vector<16x16xf32>
    %777 = math.exp %776 : vector<16x16xf32>
    %cst_254 = arith.constant dense<0.000000e+00> : vector<16xf32>
    %778 = vector.multi_reduction <add>, %777, %cst_254 [1] : vector<16x16xf32> to vector<16xf32>
    %779 = vector.shape_cast %778 : vector<16xf32> to vector<16x1xf32>
    %780 = tpu.reciprocal %779 {approx = true} : vector<16x1xf32> -> vector<16x1xf32>
    %781 = vector.broadcast %780 : vector<16x1xf32> to vector<16x16xf32>
    %782 = arith.mulf %777, %781 : vector<16x16xf32>
    %783 = vector.extract_strided_slice %712 {offsets = [0, 24], sizes = [16, 8], strides = [1, 1]} : vector<16x32xf32> to vector<16x8xf32>
    %cst_255 = arith.constant dense<0.000000e+00> : vector<16x8xf32>
    %784 = tpu.matmul %782, %783, %cst_255 {dimension_numbers = #tpu.dot_dimension_numbers<[1], [0], [0], [1], [0, 0, 1, 1], [], []>} : vector<16x16xf32>, vector<16x8xf32>, vector<16x8xf32> -> vector<16x8xf32>
    %785 = tpu.concatenate %730, %748, %766, %784 in 1 : vector<16x8xf32>, vector<16x8xf32>, vector<16x8xf32>, vector<16x8xf32> -> vector<16x32xf32>
    %c0_256 = arith.constant 0 : index
    %c1792 = arith.constant 1792 : index
    %786 = vector.load %arg7[%c0_256, %c1792] : memref<32x2304xf32, #tpu.memory_space<vmem>>, vector<32x32xf32>
    %cst_257 = arith.constant dense<0.000000e+00> : vector<16x32xf32>
    %787 = tpu.matmul %785, %786, %cst_257 {dimension_numbers = #tpu.dot_dimension_numbers<[1], [0], [0], [1], [0, 0, 1, 1], [], []>} : vector<16x32xf32>, vector<32x32xf32>, vector<16x32xf32> -> vector<16x32xf32>
    %c31 = arith.constant 31 : index
    %c0_258 = arith.constant 0 : index
    %788 = vector.load %arg9[%c31, %c0_258] : memref<41x128xf32, #tpu.memory_space<vmem>>, vector<1x32xf32>
    %789 = vector.broadcast %788 : vector<1x32xf32> to vector<16x32xf32>
    %790 = arith.addf %787, %789 : vector<16x32xf32>
    %791 = arith.addf %790, %698 : vector<16x32xf32>
    %c36 = arith.constant 36 : index
    %c0_259 = arith.constant 0 : index
    %792 = vector.load %arg9[%c36, %c0_259] : memref<41x128xf32, #tpu.memory_space<vmem>>, vector<1x32xf32>
    %c37 = arith.constant 37 : index
    %c0_260 = arith.constant 0 : index
    %793 = vector.load %arg9[%c37, %c0_260] : memref<41x128xf32, #tpu.memory_space<vmem>>, vector<1x32xf32>
    %cst_261 = arith.constant dense<0.000000e+00> : vector<16xf32>
    %794 = vector.multi_reduction <add>, %791, %cst_261 [1] : vector<16x32xf32> to vector<16xf32>
    %795 = vector.shape_cast %794 : vector<16xf32> to vector<16x1xf32>
    %cst_262 = arith.constant 3.200000e+01 : f32
    %796 = vector.broadcast %cst_262 : f32 to vector<16x1xf32>
    %797 = arith.divf %795, %796 : vector<16x1xf32>
    %798 = vector.broadcast %797 : vector<16x1xf32> to vector<16x32xf32>
    %799 = arith.subf %791, %798 : vector<16x32xf32>
    %800 = arith.mulf %799, %799 : vector<16x32xf32>
    %cst_263 = arith.constant dense<0.000000e+00> : vector<16xf32>
    %801 = vector.multi_reduction <add>, %800, %cst_263 [1] : vector<16x32xf32> to vector<16xf32>
    %802 = vector.shape_cast %801 : vector<16xf32> to vector<16x1xf32>
    %cst_264 = arith.constant 3.200000e+01 : f32
    %803 = vector.broadcast %cst_264 : f32 to vector<16x1xf32>
    %804 = arith.divf %802, %803 : vector<16x1xf32>
    %805 = vector.broadcast %797 : vector<16x1xf32> to vector<16x32xf32>
    %806 = arith.subf %791, %805 : vector<16x32xf32>
    %cst_265 = arith.constant 9.99999974E-6 : f32
    %807 = vector.broadcast %cst_265 : f32 to vector<16x1xf32>
    %808 = arith.addf %804, %807 : vector<16x1xf32>
    %809 = math.rsqrt %808 : vector<16x1xf32>
    %810 = vector.broadcast %809 : vector<16x1xf32> to vector<16x32xf32>
    %811 = arith.mulf %806, %810 : vector<16x32xf32>
    %812 = vector.broadcast %792 : vector<1x32xf32> to vector<16x32xf32>
    %813 = arith.mulf %811, %812 : vector<16x32xf32>
    %814 = vector.broadcast %793 : vector<1x32xf32> to vector<16x32xf32>
    %815 = arith.addf %813, %814 : vector<16x32xf32>
    %c0_266 = arith.constant 0 : index
    %c1920 = arith.constant 1920 : index
    %816 = vector.load %arg7[%c0_266, %c1920] : memref<32x2304xf32, #tpu.memory_space<vmem>>, vector<32x64xf32>
    %cst_267 = arith.constant dense<0.000000e+00> : vector<16x64xf32>
    %817 = tpu.matmul %815, %816, %cst_267 {dimension_numbers = #tpu.dot_dimension_numbers<[1], [0], [0], [1], [0, 0, 1, 1], [], []>} : vector<16x32xf32>, vector<32x64xf32>, vector<16x64xf32> -> vector<16x64xf32>
    %c32 = arith.constant 32 : index
    %c0_268 = arith.constant 0 : index
    %818 = vector.load %arg9[%c32, %c0_268] : memref<41x128xf32, #tpu.memory_space<vmem>>, vector<1x64xf32>
    %819 = vector.broadcast %818 : vector<1x64xf32> to vector<16x64xf32>
    %820 = arith.addf %817, %819 : vector<16x64xf32>
    %cst_269 = arith.constant 0.000000e+00 : f32
    %821 = vector.broadcast %cst_269 : f32 to vector<16x64xf32>
    %822 = arith.maximumf %820, %821 : vector<16x64xf32>
    %c0_270 = arith.constant 0 : index
    %c384_271 = arith.constant 384 : index
    %823 = vector.load %arg8[%c0_270, %c384_271] : memref<64x512xf32, #tpu.memory_space<vmem>>, vector<64x32xf32>
    %cst_272 = arith.constant dense<0.000000e+00> : vector<16x32xf32>
    %824 = tpu.matmul %822, %823, %cst_272 {dimension_numbers = #tpu.dot_dimension_numbers<[1], [0], [0], [1], [0, 0, 1, 1], [], []>} : vector<16x64xf32>, vector<64x32xf32>, vector<16x32xf32> -> vector<16x32xf32>
    %c33 = arith.constant 33 : index
    %c0_273 = arith.constant 0 : index
    %825 = vector.load %arg9[%c33, %c0_273] : memref<41x128xf32, #tpu.memory_space<vmem>>, vector<1x32xf32>
    %826 = vector.broadcast %825 : vector<1x32xf32> to vector<16x32xf32>
    %827 = arith.addf %824, %826 : vector<16x32xf32>
    %828 = arith.addf %827, %815 : vector<16x32xf32>
    %c38 = arith.constant 38 : index
    %c0_274 = arith.constant 0 : index
    %829 = vector.load %arg9[%c38, %c0_274] : memref<41x128xf32, #tpu.memory_space<vmem>>, vector<1x32xf32>
    %c39 = arith.constant 39 : index
    %c0_275 = arith.constant 0 : index
    %830 = vector.load %arg9[%c39, %c0_275] : memref<41x128xf32, #tpu.memory_space<vmem>>, vector<1x32xf32>
    %cst_276 = arith.constant dense<0.000000e+00> : vector<16xf32>
    %831 = vector.multi_reduction <add>, %828, %cst_276 [1] : vector<16x32xf32> to vector<16xf32>
    %832 = vector.shape_cast %831 : vector<16xf32> to vector<16x1xf32>
    %cst_277 = arith.constant 3.200000e+01 : f32
    %833 = vector.broadcast %cst_277 : f32 to vector<16x1xf32>
    %834 = arith.divf %832, %833 : vector<16x1xf32>
    %835 = vector.broadcast %834 : vector<16x1xf32> to vector<16x32xf32>
    %836 = arith.subf %828, %835 : vector<16x32xf32>
    %837 = arith.mulf %836, %836 : vector<16x32xf32>
    %cst_278 = arith.constant dense<0.000000e+00> : vector<16xf32>
    %838 = vector.multi_reduction <add>, %837, %cst_278 [1] : vector<16x32xf32> to vector<16xf32>
    %839 = vector.shape_cast %838 : vector<16xf32> to vector<16x1xf32>
    %cst_279 = arith.constant 3.200000e+01 : f32
    %840 = vector.broadcast %cst_279 : f32 to vector<16x1xf32>
    %841 = arith.divf %839, %840 : vector<16x1xf32>
    %842 = vector.broadcast %834 : vector<16x1xf32> to vector<16x32xf32>
    %843 = arith.subf %828, %842 : vector<16x32xf32>
    %cst_280 = arith.constant 9.99999974E-6 : f32
    %844 = vector.broadcast %cst_280 : f32 to vector<16x1xf32>
    %845 = arith.addf %841, %844 : vector<16x1xf32>
    %846 = math.rsqrt %845 : vector<16x1xf32>
    %847 = vector.broadcast %846 : vector<16x1xf32> to vector<16x32xf32>
    %848 = arith.mulf %843, %847 : vector<16x32xf32>
    %849 = vector.broadcast %829 : vector<1x32xf32> to vector<16x32xf32>
    %850 = arith.mulf %848, %849 : vector<16x32xf32>
    %851 = vector.broadcast %830 : vector<1x32xf32> to vector<16x32xf32>
    %852 = arith.addf %850, %851 : vector<16x32xf32>
    %c0_281 = arith.constant 0 : index
    %c2048 = arith.constant 2048 : index
    %853 = vector.load %arg7[%c0_281, %c2048] : memref<32x2304xf32, #tpu.memory_space<vmem>>, vector<32x128xf32>
    %cst_282 = arith.constant dense<0.000000e+00> : vector<16x128xf32>
    %854 = tpu.matmul %852, %853, %cst_282 {dimension_numbers = #tpu.dot_dimension_numbers<[1], [0], [0], [1], [0, 0, 1, 1], [], []>} : vector<16x32xf32>, vector<32x128xf32>, vector<16x128xf32> -> vector<16x128xf32>
    %c40 = arith.constant 40 : index
    %c0_283 = arith.constant 0 : index
    %855 = vector.load %arg9[%c40, %c0_283] : memref<41x128xf32, #tpu.memory_space<vmem>>, vector<1x128xf32>
    %856 = vector.broadcast %855 : vector<1x128xf32> to vector<16x128xf32>
    %857 = arith.addf %854, %856 : vector<16x128xf32>
    %cst_284 = arith.constant dense<0xFF800000> : vector<16xf32>
    %858 = vector.multi_reduction <maximumf>, %857, %cst_284 [1] : vector<16x128xf32> to vector<16xf32>
    %859 = vector.shape_cast %858 : vector<16xf32> to vector<16x1xf32>
    %860 = vector.broadcast %859 : vector<16x1xf32> to vector<16x128xf32>
    %861 = arith.subf %857, %860 : vector<16x128xf32>
    %862 = math.exp %861 : vector<16x128xf32>
    %cst_285 = arith.constant dense<0.000000e+00> : vector<16xf32>
    %863 = vector.multi_reduction <add>, %862, %cst_285 [1] : vector<16x128xf32> to vector<16xf32>
    %864 = vector.shape_cast %863 : vector<16xf32> to vector<16x1xf32>
    %865 = math.log %864 : vector<16x1xf32>
    %866 = vector.broadcast %865 : vector<16x1xf32> to vector<16x128xf32>
    %867 = arith.subf %861, %866 : vector<16x128xf32>
    %c0_286 = arith.constant 0 : index
    %c0_287 = arith.constant 0 : index
    %868 = vector.load %arg10[%c0_286, %c0_287] : memref<16x128xf32, #tpu.memory_space<vmem>>, vector<16x128xf32>
    tpu.vector_store %arg10[%c0_286, %c0_287], %867 {strides = array<i32>} : memref<16x128xf32, #tpu.memory_space<vmem>>, vector<16x128xf32>,
    return
  }
}

</mosaic_0001>

<llo_original>
// kernel: transformer_forward.1
$region0: #{transformer_forward.1}
  #allocation0 [shape = 'u32[]', space=smem, size = 0x4, offset = 0x4, fixed_abs, tag = 'smem constant byte address 0x4 - core index']
  #allocation1 [shape = 'u32[72,128]{1,0:T(1,128)}', space=vmem, size = 0x9000, scoped, tag = 'internal scratch']
  %s0 = inlined_call_operand.vmem [shape: s32[16,1], index: 0, kind: input, shape index: {}]
  %s1 = inlined_call_operand.vmem [shape: s32[16,1], index: 1, kind: input, shape index: {}]
  %s2 = inlined_call_operand.vmem [shape: f32[16,32], index: 2, kind: input, shape index: {}, may-alias: {2,3}]
  %s3 = inlined_call_operand.vmem [shape: f32[16,32], index: 3, kind: input, shape index: {}, may-alias: {2,3}]
  %s4 = inlined_call_operand.vmem [shape: f32[16,16], index: 4, kind: input, shape index: {}, may-alias: {4,6}]
  %s5 = inlined_call_operand.vmem [shape: f32[16,16], index: 5, kind: input, shape index: {}]
  %s6 = inlined_call_operand.vmem [shape: f32[16,16], index: 6, kind: input, shape index: {}, may-alias: {4,6}]
  %s7 = inlined_call_operand.hbm [shape: f32[32,2304], index: 7, kind: input, shape index: {}]
  %s8 = inlined_call_operand.hbm [shape: f32[64,512], index: 8, kind: input, shape index: {}]
  %s9 = inlined_call_operand.vmem [shape: f32[41,128], index: 9, kind: input, shape index: {}]
  %s10 = inlined_call_operand.hbm [shape: f32[16,128], index: 10, kind: output, shape index: {}]
  %s11 = sld [smem:[#allocation0]]
  $region58: #{transformer_forward.1} parent=0
    _
  %s13 = ssub.s32 1, %s11
  %s14 = scalar_select 0, %s13, %s11
  $region1: #{transformer_forward.1} parent=0
    #allocation2 [shape = 'u8[294912]{0}', space=vmem, size = 0x48000, scoped, tag = 'input window, operand 7, single buffered']
    #allocation3 [shape = 's32[1]{0}', space=sflag, size = 0x4, scoped, tag = 'scoped memory for transformer_forward.1']
    #allocation4 [shape = 's32[1]{0}', space=sflag, size = 0x4, scoped, tag = 'scoped memory for transformer_forward.1']
    #allocation5 [shape = 'u8[131072]{0}', space=vmem, size = 0x20000, scoped, tag = 'input window, operand 8, single buffered']
    #allocation6 [shape = 's32[1]{0}', space=sflag, size = 0x4, scoped, tag = 'scoped memory for transformer_forward.1']
    #allocation7 [shape = 'u8[8192]{0}', space=vmem, size = 0x2000, scoped, tag = 'output window, operand 0, single buffered']
    %15 = vsyncpa [#allocation3], 0
    %16 = vsyncpa [#allocation6], 0
    %17 = vsyncpa [#allocation4], 0
    // Predicated region
    $region2: #{transformer_forward.1} parent=1 // pred_check
      _
    $region3: #{transformer_forward.1} parent=1 // pred_check_branch
      %19 = sbr.rel (0) target = $region5
    $region4: #{transformer_forward.1} parent=1 // pred_region
      _
    $region5: #{transformer_forward.1} parent=1 // pred_fallthru
      _
    // Predicated region
    $region6: #{transformer_forward.1} parent=1 // pred_check
      _
    $region7: #{transformer_forward.1} parent=1 // pred_check_branch
      %21 = sbr.rel (0) target = $region9
    $region8: #{transformer_forward.1} parent=1 // pred_region
      _
    $region9: #{transformer_forward.1} parent=1 // pred_fallthru
      _
    // Predicated region
    $region10: #{transformer_forward.1} parent=1 // pred_check
      _
    $region11: #{transformer_forward.1} parent=1 // pred_check_branch
      %23 = sbr.rel (0) target = $region13
    $region12: #{transformer_forward.1} parent=1 // pred_region
      _
    $region13: #{transformer_forward.1} parent=1 // pred_fallthru
      _
    // Predicated region
    $region14: #{transformer_forward.1} parent=1 // pred_check
      _
    $region15: #{transformer_forward.1} parent=1 // pred_check_branch
      %25 = sbr.rel (0) target = $region17
    $region16: #{transformer_forward.1} parent=1 // pred_region
      _
    $region17: #{transformer_forward.1} parent=1 // pred_fallthru
      _
    // Predicated region
    $region18: #{transformer_forward.1} parent=1 // pred_check
      _
    $region19: #{transformer_forward.1} parent=1 // pred_check_branch
      %27 = sbr.rel (0) target = $region21
    $region20: #{transformer_forward.1} parent=1 // pred_region
      _
    $region21: #{transformer_forward.1} parent=1 // pred_fallthru
      _
    // Predicated region
    $region22: #{transformer_forward.1} parent=1 // pred_check
      _
    $region23: #{transformer_forward.1} parent=1 // pred_check_branch
      %29 = sbr.rel (0) target = $region25
    $region24: #{transformer_forward.1} parent=1 // pred_region
      _
    $region25: #{transformer_forward.1} parent=1 // pred_fallthru
      _
    // Predicated region
    $region26: #{transformer_forward.1} parent=1 // pred_check
      _
    $region27: #{transformer_forward.1} parent=1 // pred_check_branch
      %31 = sbr.rel (0) target = $region29
    $region28: #{transformer_forward.1} parent=1 // pred_region
      _
    $region29: #{transformer_forward.1} parent=1 // pred_fallthru
      _
    // Predicated region
    $region30: #{transformer_forward.1} parent=1 // pred_check
      _
    $region31: #{transformer_forward.1} parent=1 // pred_check_branch
      %33 = sbr.rel (0) target = $region33
    $region32: #{transformer_forward.1} parent=1 // pred_region
      %35 = vsyncadd [#allocation3], 0
      %s36 = sshll.u32 %s7, 4
      %s37 = int_to_ptr.hbm [resolvable:$true] %s36
      %s38 = sshll.u32 [#allocation2], 4
      %s39 = int_to_ptr.vmem [resolvable:$true] %s38
      %44 = dma.hbm_to_vmem [thread:$0]  %s37, 9216, %s39, [#allocation3], 2304, 2304, 144
    $region33: #{transformer_forward.1} parent=1 // pred_fallthru
      _
    // Predicated region
    $region34: #{transformer_forward.1} parent=1 // pred_check
      _
    $region35: #{transformer_forward.1} parent=1 // pred_check_branch
      %46 = sbr.rel (0) target = $region37
    $region36: #{transformer_forward.1} parent=1 // pred_region
      %48 = vsyncadd [#allocation6], 0
      %s49 = sshll.u32 %s8, 4
      %s50 = int_to_ptr.hbm [resolvable:$true] %s49
      %s51 = sshll.u32 [#allocation5], 4
      %s52 = int_to_ptr.vmem [resolvable:$true] %s51
      %57 = dma.hbm_to_vmem [thread:$0]  %s50, 4096, %s52, [#allocation6], 512, 512, 32
    $region37: #{transformer_forward.1} parent=1 // pred_fallthru
      _
    // Predicated region
    $region38: #{transformer_forward.1} parent=1 // pred_check
      _
    $region39: #{transformer_forward.1} parent=1 // pred_check_branch
      %59 = sbr.rel (0) target = $region41
    $region40: #{transformer_forward.1} parent=1 // pred_region
      _
    $region41: #{transformer_forward.1} parent=1 // pred_fallthru
      _
    // Predicated region
    $region42: #{transformer_forward.1} parent=1 // pred_check
      _
    $region43: #{transformer_forward.1} parent=1 // pred_check_branch
      %61 = sbr.rel (0) target = $region45
    $region44: #{transformer_forward.1} parent=1 // pred_region
      %63 = dma.done [#allocation3], 9216
    $region45: #{transformer_forward.1} parent=1 // pred_fallthru
      _
    // Predicated region
    $region46: #{transformer_forward.1} parent=1 // pred_check
      _
    $region47: #{transformer_forward.1} parent=1 // pred_check_branch
      %65 = sbr.rel (0) target = $region49
    $region48: #{transformer_forward.1} parent=1 // pred_region
      %67 = dma.done [#allocation6], 4096
    $region49: #{transformer_forward.1} parent=1 // pred_fallthru
      _
    %v68 = vld [vmem:[%s0] sm:$0xff]
    %v69 = vld [vmem:[%s0 + $0x8] sm:$0xff]
    %v70 = vlaneseq
    %v71 = vand.u32 %v70, 127
    %72 = vset.pattern.permute.xlu0 0
    %73 = vperm.xlu0 %72, %v68
    %v74 = vpop.permute.xlu0 %73
    %75 = vset.pattern.permute.xlu0 0
    %76 = vperm.xlu0 %75, %v69
    %v77 = vpop.permute.xlu0 %76
    %vm78 = vcmp.eq.s32.totalorder %v71, %v74
    %vm79 = vcmp.eq.s32.totalorder %v71, %v77
    %v80 = vsel %vm78, 1, 0
    %v81 = vsel %vm79, 1, 0
    %v82 = vcvt.s32.f32 %v80
    %v83 = vcvt.s32.f32 %v81
    %v84 = vld [vmem:[#allocation2 + $0x88] sm:$0xff]
    %v85 = vld [vmem:[#allocation2 + $0x118] sm:$0xff]
    %v86 = vld [vmem:[#allocation2 + $0x1a8] sm:$0xff]
    %v87 = vld [vmem:[#allocation2 + $0x238] sm:$0xff]
    %vm88 = vcmask 261120
    %v90 = vsel %vm88, %v82, 0
    %v93 = vsel %vm88, %v83, 0
    %95 = vmatpush.msra.mxu0 0.0
    %96 = vmatpush.msra.mxu0 0.0
    %97 = vmatpush.msra.mxu0 0.0
    %98 = vmatpush.msra.mxu0 0.0
    %99 = vmatpush.msra.mxu0 0.0
    %100 = vmatpush.msra.mxu0 0.0
    %101 = vmatpush.msra.mxu0 0.0
    %102 = vmatpush.msra.mxu0 0.0
    %103 = vmatpush.msra.mxu0 0.0
    %104 = vmatpush.msra.mxu0 0.0
    %105 = vmatpush.msra.mxu0 0.0
    %106 = vmatpush.msra.mxu0 0.0
    %107 = vmatpush.msra.mxu0 %v87
    %108 = vmatpush.msra.mxu0 %v86
    %109 = vmatpush.msra.mxu0 %v85
    %110 = vmatpush.msra.mxu0 %v84
    %111 = vmatmul.f32.gmra.mxu0 %v90
    %v112 = vpop.f32.mrf.mxu0
    %v113 = vadd.f32 0.0, %v112
    %114 = vmatmul.f32.gmra.mxu0 %v93
    %v115 = vpop.f32.mrf.mxu0
    %v116 = vadd.f32 0.0, %v115
    %117 = vdwg.mxu0
    %v118 = vmul.f32 %v113, 5.656854
    %v119 = vmul.f32 %v116, 5.656854
    %v120 = vld [vmem:[%s2] sm:$0xff]
    %v121 = vld [vmem:[%s2 + $0x8] sm:$0xff]
    %v122 = vadd.f32 %v118, %v120
    %v123 = vadd.f32 %v119, %v121
    %v124 = vld [vmem:[%s4] sm:$0xff]
    %v125 = vld [vmem:[%s4 + $0x8] sm:$0xff]
    %v126 = vld [vmem:[#allocation2] sm:$0xff]
    %v127 = vld [vmem:[#allocation2 + $0x90] sm:$0xff]
    %v128 = vld [vmem:[#allocation2 + $0x120] sm:$0xff]
    %v129 = vld [vmem:[#allocation2 + $0x1b0] sm:$0xff]
    %v130 = vld [vmem:[%s9] sm:$0x1]
    %v131 = vperm.slane %v130, 0
    %v133 = vsel %vm88, %v122, 0
    %v136 = vsel %vm88, %v123, 0
    %138 = vmatpush.msra.mxu0 0.0
    %139 = vmatpush.msra.mxu0 0.0
    %140 = vmatpush.msra.mxu0 0.0
    %141 = vmatpush.msra.mxu0 0.0
    %142 = vmatpush.msra.mxu0 0.0
    %143 = vmatpush.msra.mxu0 0.0
    %144 = vmatpush.msra.mxu0 0.0
    %145 = vmatpush.msra.mxu0 0.0
    %146 = vmatpush.msra.mxu0 0.0
    %147 = vmatpush.msra.mxu0 0.0
    %148 = vmatpush.msra.mxu0 0.0
    %149 = vmatpush.msra.mxu0 0.0
    %150 = vmatpush.msra.mxu0 %v129
    %151 = vmatpush.msra.mxu0 %v128
    %152 = vmatpush.msra.mxu0 %v127
    %153 = vmatpush.msra.mxu0 %v126
    %154 = vmatmul.f32.gmra.mxu0 %v133
    %v155 = vpop.f32.mrf.mxu0
    %v156 = vadd.f32 %v131, %v155
    %157 = vmatmul.f32.gmra.mxu0 %v136
    %v158 = vpop.f32.mrf.mxu0
    %v159 = vadd.f32 %v131, %v158
    %160 = vdwg.mxu0
    %163 = vrot.lane.b32.xlu0 %v156, 96
    %v164 = vpop.permute.xlu0 %163
    %165 = vrot.lane.b32.xlu0 %v159, 96
    %v166 = vpop.permute.xlu0 %165
    %vm167 = vcmask 64512
    %v168 = vsel %vm167, %v156, 0
    %v170 = vsel %vm167, %v159, 0
    %v172 = vsel %vm167, %v164, 0
    %v174 = vsel %vm167, %v166, 0
    %176 = vmatpush.xpose.msra.mxu0 0.0
    %177 = vmatpush.xpose.msra.mxu0 0.0
    %178 = vmatpush.xpose.msra.mxu0 0.0
    %179 = vmatpush.xpose.msra.mxu0 0.0
    %180 = vmatpush.xpose.msra.mxu0 0.0
    %181 = vmatpush.xpose.msra.mxu0 0.0
    %182 = vmatpush.xpose.msra.mxu0 0.0
    %183 = vmatpush.xpose.msra.mxu0 0.0
    %184 = vmatpush.xpose.msra.mxu0 0.0
    %185 = vmatpush.xpose.msra.mxu0 0.0
    %186 = vmatpush.xpose.msra.mxu0 0.0
    %187 = vmatpush.xpose.msra.mxu0 0.0
    %188 = vmatpush.xpose.msra.mxu0 0.0
    %189 = vmatpush.xpose.msra.mxu0 0.0
    %190 = vmatpush.xpose.msra.mxu0 %v174
    %191 = vmatpush.xpose.msra.mxu0 %v172
    %192 = vmatmul.f32.gmra.mxu0 %v168
    %v193 = vpop.f32.mrf.mxu0
    %v194 = vadd.f32 0.0, %v193
    %195 = vmatmul.f32.gmra.mxu0 %v170
    %v196 = vpop.f32.mrf.mxu0
    %v197 = vadd.f32 0.0, %v196
    %198 = vdwg.mxu0
    %v199 = vmul.f32 %v194, 0.35355338
    %v200 = vmul.f32 %v197, 0.35355338
    %v201 = vadd.f32 %v199, %v124
    %v202 = vadd.f32 %v200, %v125
    %vm203 = vcmask 130048
    %v204 = vsel %vm203, %v201, -inf
    %205 = vmax.xlane.f32.xlu0 %v204
    %v206 = vpop.xlane.xlu0 %205
    %v207 = vsel %vm203, %v202, -inf
    %208 = vmax.xlane.f32.xlu0 %v207
    %v209 = vpop.xlane.xlu0 %208
    %v210 = vsub.f32 %v201, %v206
    %v211 = vsub.f32 %v202, %v209
    %v212 = vmul.f32 %v210, 1.442695
    %v213 = vpow.pop %v212
    %v214 = vmul.f32 %v211, 1.442695
    %v215 = vpow.pop %v214
    %v216 = vsel %vm203, %v213, 0.0
    %217 = vadd.xlane.f32.xlu0 %v216
    %v218 = vpop.xlane.xlu0 %217
    %v219 = vsel %vm203, %v215, 0.0
    %220 = vadd.xlane.f32.xlu0 %v219
    %v221 = vpop.xlane.xlu0 %220
    %v222 = vrcp.pop %v218
    %v223 = vrcp.pop %v221
    %v224 = vmul.f32 %v213, %v222
    %v225 = vmul.f32 %v215, %v223
    %226 = vrot.lane.b32.xlu0 %v156, 64
    %v227 = vpop.permute.xlu0 %226
    %228 = vrot.lane.b32.xlu0 %v159, 64
    %v229 = vpop.permute.xlu0 %228
    %v233 = vsel %vm203, %v224, 0
    %v236 = vsel %vm203, %v225, 0
    %238 = vmatpush.msra.mxu0 0.0
    %239 = vmatpush.msra.mxu0 0.0
    %240 = vmatpush.msra.mxu0 0.0
    %241 = vmatpush.msra.mxu0 0.0
    %242 = vmatpush.msra.mxu0 0.0
    %243 = vmatpush.msra.mxu0 0.0
    %244 = vmatpush.msra.mxu0 0.0
    %245 = vmatpush.msra.mxu0 0.0
    %246 = vmatpush.msra.mxu0 0.0
    %247 = vmatpush.msra.mxu0 0.0
    %248 = vmatpush.msra.mxu0 0.0
    %249 = vmatpush.msra.mxu0 0.0
    %250 = vmatpush.msra.mxu0 0.0
    %251 = vmatpush.msra.mxu0 0.0
    %252 = vmatpush.msra.mxu0 %v229
    %253 = vmatpush.msra.mxu0 %v227
    %254 = vmatmul.f32.gmra.mxu0 %v233
    %v255 = vpop.f32.mrf.mxu0
    %v256 = vadd.f32 0.0, %v255
    %257 = vmatmul.f32.gmra.mxu0 %v236
    %v258 = vpop.f32.mrf.mxu0
    %v259 = vadd.f32 0.0, %v258
    %260 = vdwg.mxu0
    %261 = vrot.lane.b32.xlu0 %v156, 120
    %v262 = vpop.permute.xlu0 %261
    %263 = vrot.lane.b32.xlu0 %v159, 120
    %v264 = vpop.permute.xlu0 %263
    %265 = vrot.lane.b32.xlu0 %v156, 88
    %v266 = vpop.permute.xlu0 %265
    %267 = vrot.lane.b32.xlu0 %v159, 88
    %v268 = vpop.permute.xlu0 %267
    %v269 = vsel %vm167, %v262, 0
    %v271 = vsel %vm167, %v264, 0
    %v273 = vsel %vm167, %v266, 0
    %v275 = vsel %vm167, %v268, 0
    %277 = vmatpush.xpose.msra.mxu0 0.0
    %278 = vmatpush.xpose.msra.mxu0 0.0
    %279 = vmatpush.xpose.msra.mxu0 0.0
    %280 = vmatpush.xpose.msra.mxu0 0.0
    %281 = vmatpush.xpose.msra.mxu0 0.0
    %282 = vmatpush.xpose.msra.mxu0 0.0
    %283 = vmatpush.xpose.msra.mxu0 0.0
    %284 = vmatpush.xpose.msra.mxu0 0.0
    %285 = vmatpush.xpose.msra.mxu0 0.0
    %286 = vmatpush.xpose.msra.mxu0 0.0
    %287 = vmatpush.xpose.msra.mxu0 0.0
    %288 = vmatpush.xpose.msra.mxu0 0.0
    %289 = vmatpush.xpose.msra.mxu0 0.0
    %290 = vmatpush.xpose.msra.mxu0 0.0
    %291 = vmatpush.xpose.msra.mxu0 %v275
    %292 = vmatpush.xpose.msra.mxu0 %v273
    %293 = vmatmul.f32.gmra.mxu0 %v269
    %v294 = vpop.f32.mrf.mxu0
    %v295 = vadd.f32 0.0, %v294
    %296 = vmatmul.f32.gmra.mxu0 %v271
    %v297 = vpop.f32.mrf.mxu0
    %v298 = vadd.f32 0.0, %v297
    %299 = vdwg.mxu0
    %v300 = vmul.f32 %v295, 0.35355338
    %v301 = vmul.f32 %v298, 0.35355338
    %v302 = vadd.f32 %v300, %v124
    %v303 = vadd.f32 %v301, %v125
    %v304 = vsel %vm203, %v302, -inf
    %305 = vmax.xlane.f32.xlu0 %v304
    %v306 = vpop.xlane.xlu0 %305
    %v307 = vsel %vm203, %v303, -inf
    %308 = vmax.xlane.f32.xlu0 %v307
    %v309 = vpop.xlane.xlu0 %308
    %v310 = vsub.f32 %v302, %v306
    %v311 = vsub.f32 %v303, %v309
    %v312 = vmul.f32 %v310, 1.442695
    %v313 = vpow.pop %v312
    %v314 = vmul.f32 %v311, 1.442695
    %v315 = vpow.pop %v314
    %v316 = vsel %vm203, %v313, 0.0
    %317 = vadd.xlane.f32.xlu0 %v316
    %v318 = vpop.xlane.xlu0 %317
    %v319 = vsel %vm203, %v315, 0.0
    %320 = vadd.xlane.f32.xlu0 %v319
    %v321 = vpop.xlane.xlu0 %320
    %v322 = vrcp.pop %v318
    %v323 = vrcp.pop %v321
    %v324 = vmul.f32 %v313, %v322
    %v325 = vmul.f32 %v315, %v323
    %326 = vrot.lane.b32.xlu0 %v156, 56
    %v327 = vpop.permute.xlu0 %326
    %328 = vrot.lane.b32.xlu0 %v159, 56
    %v329 = vpop.permute.xlu0 %328
    %v333 = vsel %vm203, %v324, 0
    %v336 = vsel %vm203, %v325, 0
    %338 = vmatpush.msra.mxu0 0.0
    %339 = vmatpush.msra.mxu0 0.0
    %340 = vmatpush.msra.mxu0 0.0
    %341 = vmatpush.msra.mxu0 0.0
    %342 = vmatpush.msra.mxu0 0.0
    %343 = vmatpush.msra.mxu0 0.0
    %344 = vmatpush.msra.mxu0 0.0
    %345 = vmatpush.msra.mxu0 0.0
    %346 = vmatpush.msra.mxu0 0.0
    %347 = vmatpush.msra.mxu0 0.0
    %348 = vmatpush.msra.mxu0 0.0
    %349 = vmatpush.msra.mxu0 0.0
    %350 = vmatpush.msra.mxu0 0.0
    %351 = vmatpush.msra.mxu0 0.0
    %352 = vmatpush.msra.mxu0 %v329
    %353 = vmatpush.msra.mxu0 %v327
    %354 = vmatmul.f32.gmra.mxu0 %v333
    %v355 = vpop.f32.mrf.mxu0
    %v356 = vadd.f32 0.0, %v355
    %357 = vmatmul.f32.gmra.mxu0 %v336
    %v358 = vpop.f32.mrf.mxu0
    %v359 = vadd.f32 0.0, %v358
    %360 = vdwg.mxu0
    %361 = vrot.lane.b32.xlu0 %v156, 112
    %v362 = vpop.permute.xlu0 %361
    %363 = vrot.lane.b32.xlu0 %v159, 112
    %v364 = vpop.permute.xlu0 %363
    %365 = vrot.lane.b32.xlu0 %v156, 80
    %v366 = vpop.permute.xlu0 %365
    %367 = vrot.lane.b32.xlu0 %v159, 80
    %v368 = vpop.permute.xlu0 %367
    %v369 = vsel %vm167, %v362, 0
    %v371 = vsel %vm167, %v364, 0
    %v373 = vsel %vm167, %v366, 0
    %v375 = vsel %vm167, %v368, 0
    %377 = vmatpush.xpose.msra.mxu0 0.0
    %378 = vmatpush.xpose.msra.mxu0 0.0
    %379 = vmatpush.xpose.msra.mxu0 0.0
    %380 = vmatpush.xpose.msra.mxu0 0.0
    %381 = vmatpush.xpose.msra.mxu0 0.0
    %382 = vmatpush.xpose.msra.mxu0 0.0
    %383 = vmatpush.xpose.msra.mxu0 0.0
    %384 = vmatpush.xpose.msra.mxu0 0.0
    %385 = vmatpush.xpose.msra.mxu0 0.0
    %386 = vmatpush.xpose.msra.mxu0 0.0
    %387 = vmatpush.xpose.msra.mxu0 0.0
    %388 = vmatpush.xpose.msra.mxu0 0.0
    %389 = vmatpush.xpose.msra.mxu0 0.0
    %390 = vmatpush.xpose.msra.mxu0 0.0
    %391 = vmatpush.xpose.msra.mxu0 %v375
    %392 = vmatpush.xpose.msra.mxu0 %v373
    %393 = vmatmul.f32.gmra.mxu0 %v369
    %v394 = vpop.f32.mrf.mxu0
    %v395 = vadd.f32 0.0, %v394
    %396 = vmatmul.f32.gmra.mxu0 %v371
    %v397 = vpop.f32.mrf.mxu0
    %v398 = vadd.f32 0.0, %v397
    %399 = vdwg.mxu0
    %v400 = vmul.f32 %v395, 0.35355338
    %v401 = vmul.f32 %v398, 0.35355338
    %v402 = vadd.f32 %v400, %v124
    %v403 = vadd.f32 %v401, %v125
    %v404 = vsel %vm203, %v402, -inf
    %405 = vmax.xlane.f32.xlu0 %v404
    %v406 = vpop.xlane.xlu0 %405
    %v407 = vsel %vm203, %v403, -inf
    %408 = vmax.xlane.f32.xlu0 %v407
    %v409 = vpop.xlane.xlu0 %408
    %v410 = vsub.f32 %v402, %v406
    %v411 = vsub.f32 %v403, %v409
    %v412 = vmul.f32 %v410, 1.442695
    %v413 = vpow.pop %v412
    %v414 = vmul.f32 %v411, 1.442695
    %v415 = vpow.pop %v414
    %v416 = vsel %vm203, %v413, 0.0
    %417 = vadd.xlane.f32.xlu0 %v416
    %v418 = vpop.xlane.xlu0 %417
    %v419 = vsel %vm203, %v415, 0.0
    %420 = vadd.xlane.f32.xlu0 %v419
    %v421 = vpop.xlane.xlu0 %420
    %v422 = vrcp.pop %v418
    %v423 = vrcp.pop %v421
    %v424 = vmul.f32 %v413, %v422
    %v425 = vmul.f32 %v415, %v423
    %426 = vrot.lane.b32.xlu0 %v156, 48
    %v427 = vpop.permute.xlu0 %426
    %428 = vrot.lane.b32.xlu0 %v159, 48
    %v429 = vpop.permute.xlu0 %428
    %v433 = vsel %vm203, %v424, 0
    %v436 = vsel %vm203, %v425, 0
    %438 = vmatpush.msra.mxu0 0.0
    %439 = vmatpush.msra.mxu0 0.0
    %440 = vmatpush.msra.mxu0 0.0
    %441 = vmatpush.msra.mxu0 0.0
    %442 = vmatpush.msra.mxu0 0.0
    %443 = vmatpush.msra.mxu0 0.0
    %444 = vmatpush.msra.mxu0 0.0
    %445 = vmatpush.msra.mxu0 0.0
    %446 = vmatpush.msra.mxu0 0.0
    %447 = vmatpush.msra.mxu0 0.0
    %448 = vmatpush.msra.mxu0 0.0
    %449 = vmatpush.msra.mxu0 0.0
    %450 = vmatpush.msra.mxu0 0.0
    %451 = vmatpush.msra.mxu0 0.0
    %452 = vmatpush.msra.mxu0 %v429
    %453 = vmatpush.msra.mxu0 %v427
    %454 = vmatmul.f32.gmra.mxu0 %v433
    %v455 = vpop.f32.mrf.mxu0
    %v456 = vadd.f32 0.0, %v455
    %457 = vmatmul.f32.gmra.mxu0 %v436
    %v458 = vpop.f32.mrf.mxu0
    %v459 = vadd.f32 0.0, %v458
    %460 = vdwg.mxu0
    %461 = vrot.lane.b32.xlu0 %v156, 104
    %v462 = vpop.permute.xlu0 %461
    %463 = vrot.lane.b32.xlu0 %v159, 104
    %v464 = vpop.permute.xlu0 %463
    %465 = vrot.lane.b32.xlu0 %v156, 72
    %v466 = vpop.permute.xlu0 %465
    %467 = vrot.lane.b32.xlu0 %v159, 72
    %v468 = vpop.permute.xlu0 %467
    %v469 = vsel %vm167, %v462, 0
    %v471 = vsel %vm167, %v464, 0
    %v473 = vsel %vm167, %v466, 0
    %v475 = vsel %vm167, %v468, 0
    %477 = vmatpush.xpose.msra.mxu0 0.0
    %478 = vmatpush.xpose.msra.mxu0 0.0
    %479 = vmatpush.xpose.msra.mxu0 0.0
    %480 = vmatpush.xpose.msra.mxu0 0.0
    %481 = vmatpush.xpose.msra.mxu0 0.0
    %482 = vmatpush.xpose.msra.mxu0 0.0
    %483 = vmatpush.xpose.msra.mxu0 0.0
    %484 = vmatpush.xpose.msra.mxu0 0.0
    %485 = vmatpush.xpose.msra.mxu0 0.0
    %486 = vmatpush.xpose.msra.mxu0 0.0
    %487 = vmatpush.xpose.msra.mxu0 0.0
    %488 = vmatpush.xpose.msra.mxu0 0.0
    %489 = vmatpush.xpose.msra.mxu0 0.0
    %490 = vmatpush.xpose.msra.mxu0 0.0
    %491 = vmatpush.xpose.msra.mxu0 %v475
    %492 = vmatpush.xpose.msra.mxu0 %v473
    %493 = vmatmul.f32.gmra.mxu0 %v469
    %v494 = vpop.f32.mrf.mxu0
    %v495 = vadd.f32 0.0, %v494
    %496 = vmatmul.f32.gmra.mxu0 %v471
    %v497 = vpop.f32.mrf.mxu0
    %v498 = vadd.f32 0.0, %v497
    %499 = vdwg.mxu0
    %v500 = vmul.f32 %v495, 0.35355338
    %v501 = vmul.f32 %v498, 0.35355338
    %v502 = vadd.f32 %v500, %v124
    %v503 = vadd.f32 %v501, %v125
    %v504 = vsel %vm203, %v502, -inf
    %505 = vmax.xlane.f32.xlu0 %v504
    %v506 = vpop.xlane.xlu0 %505
    %v507 = vsel %vm203, %v503, -inf
    %508 = vmax.xlane.f32.xlu0 %v507
    %v509 = vpop.xlane.xlu0 %508
    %v510 = vsub.f32 %v502, %v506
    %v511 = vsub.f32 %v503, %v509
    %v512 = vmul.f32 %v510, 1.442695
    %v513 = vpow.pop %v512
    %v514 = vmul.f32 %v511, 1.442695
    %v515 = vpow.pop %v514
    %v516 = vsel %vm203, %v513, 0.0
    %517 = vadd.xlane.f32.xlu0 %v516
    %v518 = vpop.xlane.xlu0 %517
    %v519 = vsel %vm203, %v515, 0.0
    %520 = vadd.xlane.f32.xlu0 %v519
    %v521 = vpop.xlane.xlu0 %520
    %v522 = vrcp.pop %v518
    %v523 = vrcp.pop %v521
    %v524 = vmul.f32 %v513, %v522
    %v525 = vmul.f32 %v515, %v523
    %526 = vrot.lane.b32.xlu0 %v156, 40
    %v527 = vpop.permute.xlu0 %526
    %528 = vrot.lane.b32.xlu0 %v159, 40
    %v529 = vpop.permute.xlu0 %528
    %v533 = vsel %vm203, %v524, 0
    %v536 = vsel %vm203, %v525, 0
    %538 = vmatpush.msra.mxu0 0.0
    %539 = vmatpush.msra.mxu0 0.0
    %540 = vmatpush.msra.mxu0 0.0
    %541 = vmatpush.msra.mxu0 0.0
    %542 = vmatpush.msra.mxu0 0.0
    %543 = vmatpush.msra.mxu0 0.0
    %544 = vmatpush.msra.mxu0 0.0
    %545 = vmatpush.msra.mxu0 0.0
    %546 = vmatpush.msra.mxu0 0.0
    %547 = vmatpush.msra.mxu0 0.0
    %548 = vmatpush.msra.mxu0 0.0
    %549 = vmatpush.msra.mxu0 0.0
    %550 = vmatpush.msra.mxu0 0.0
    %551 = vmatpush.msra.mxu0 0.0
    %552 = vmatpush.msra.mxu0 %v529
    %553 = vmatpush.msra.mxu0 %v527
    %554 = vmatmul.f32.gmra.mxu0 %v533
    %v555 = vpop.f32.mrf.mxu0
    %v556 = vadd.f32 0.0, %v555
    %557 = vmatmul.f32.gmra.mxu0 %v536
    %v558 = vpop.f32.mrf.mxu0
    %v559 = vadd.f32 0.0, %v558
    %560 = vdwg.mxu0
    %563 = vrot.lane.b32.xlu0 %v356, 8
    %v564 = vpop.permute.xlu0 %563
    %565 = vrot.lane.b32.xlu0 %v359, 8
    %v566 = vpop.permute.xlu0 %565
    %571 = vrot.lane.b32.xlu0 %v456, 16
    %v572 = vpop.permute.xlu0 %571
    %573 = vrot.lane.b32.xlu0 %v459, 16
    %v574 = vpop.permute.xlu0 %573
    %579 = vrot.lane.b32.xlu0 %v556, 24
    %v580 = vpop.permute.xlu0 %579
    %581 = vrot.lane.b32.xlu0 %v559, 24
    %v582 = vpop.permute.xlu0 %581
    %v585 = vsel %vm167, %v256, %v564
    %v586 = vsel %vm167, %v259, %v566
    %v587 = vsel %vm203, %v585, %v572
    %v588 = vsel %vm203, %v586, %v574
    %vm589 = vcmask 195584
    %v590 = vsel %vm589, %v587, %v580
    %v591 = vsel %vm589, %v588, %v582
    %v592 = vld [vmem:[#allocation2 + $0x8] sm:$0xff]
    %v593 = vld [vmem:[#allocation2 + $0x98] sm:$0xff]
    %v594 = vld [vmem:[#allocation2 + $0x128] sm:$0xff]
    %v595 = vld [vmem:[#allocation2 + $0x1b8] sm:$0xff]
    %v596 = vld [vmem:[%s9 + $0x1] sm:$0x1]
    %v597 = vperm.slane %v596, 0
    %v599 = vsel %vm88, %v590, 0
    %v602 = vsel %vm88, %v591, 0
    %604 = vmatpush.msra.mxu0 0.0
    %605 = vmatpush.msra.mxu0 0.0
    %606 = vmatpush.msra.mxu0 0.0
    %607 = vmatpush.msra.mxu0 0.0
    %608 = vmatpush.msra.mxu0 0.0
    %609 = vmatpush.msra.mxu0 0.0
    %610 = vmatpush.msra.mxu0 0.0
    %611 = vmatpush.msra.mxu0 0.0
    %612 = vmatpush.msra.mxu0 0.0
    %613 = vmatpush.msra.mxu0 0.0
    %614 = vmatpush.msra.mxu0 0.0
    %615 = vmatpush.msra.mxu0 0.0
    %616 = vmatpush.msra.mxu0 %v595
    %617 = vmatpush.msra.mxu0 %v594
    %618 = vmatpush.msra.mxu0 %v593
    %619 = vmatpush.msra.mxu0 %v592
    %620 = vmatmul.f32.gmra.mxu0 %v599
    %v621 = vpop.f32.mrf.mxu0
    %v622 = vadd.f32 %v597, %v621
    %623 = vmatmul.f32.gmra.mxu0 %v602
    %v624 = vpop.f32.mrf.mxu0
    %v625 = vadd.f32 %v597, %v624
    %626 = vdwg.mxu0
    %v627 = vadd.f32 %v622, %v122
    %v628 = vadd.f32 %v625, %v123
    %v629 = vld [vmem:[%s9 + $0x4] sm:$0x1]
    %v630 = vld [vmem:[%s9 + $0x5] sm:$0x1]
    %v631 = vsel %vm88, %v627, 0.0
    %632 = vadd.xlane.f32.xlu0 %v631
    %v633 = vpop.xlane.xlu0 %632
    %v634 = vsel %vm88, %v628, 0.0
    %635 = vadd.xlane.f32.xlu0 %v634
    %v636 = vpop.xlane.xlu0 %635
    %v637 = vrcp.pop 32.0
    %v638 = vmul.f32 32.0, %v637
    %v639 = vsub.f32 1.0, %v638
    %v640 = vmul.f32 %v637, %v639
    %v641 = vadd.f32 %v637, %v640
    %vm642 = vweird.f32 %v637
    %v643 = vsel %vm642, %v637, %v641
    %v644 = vmul.f32 %v633, %v643
    %v645 = vmul.f32 %v636, %v643
    %v646 = vsub.f32 %v627, %v644
    %v647 = vsub.f32 %v628, %v645
    %v648 = vmul.f32 %v646, %v646
    %v649 = vmul.f32 %v647, %v647
    %v650 = vsel %vm88, %v648, 0.0
    %651 = vadd.xlane.f32.xlu0 %v650
    %v652 = vpop.xlane.xlu0 %651
    %v653 = vsel %vm88, %v649, 0.0
    %654 = vadd.xlane.f32.xlu0 %v653
    %v655 = vpop.xlane.xlu0 %654
    %v656 = vmul.f32 %v652, %v643
    %v657 = vmul.f32 %v655, %v643
    %v658 = vadd.f32 %v656, 1e-05
    %v659 = vadd.f32 %v657, 1e-05
    %v660 = vrsqrt.pop %v658
    %v661 = vmul.f32 %v660, %v658
    %v662 = vmul.f32 %v661, %v660
    %v663 = vmul.f32 0.5, %v662
    %v664 = vsub.f32 1.5, %v663
    %v665 = vmul.f32 %v660, %v664
    %vm666 = vweird.f32 %v658
    %vm667 = vweird.f32 %v660
    %vm668 = vmor %vm666, %vm667
    %v669 = vsel %vm668, %v660, %v665
    %v670 = vrsqrt.pop %v659
    %v671 = vmul.f32 %v670, %v659
    %v672 = vmul.f32 %v671, %v670
    %v673 = vmul.f32 0.5, %v672
    %v674 = vsub.f32 1.5, %v673
    %v675 = vmul.f32 %v670, %v674
    %vm676 = vweird.f32 %v659
    %vm677 = vweird.f32 %v670
    %vm678 = vmor %vm676, %vm677
    %v679 = vsel %vm678, %v670, %v675
    %v680 = vmul.f32 %v646, %v669
    %v681 = vmul.f32 %v647, %v679
    %v682 = vperm.slane %v629, 0
    %v683 = vmul.f32 %v680, %v682
    %v684 = vmul.f32 %v681, %v682
    %v685 = vperm.slane %v630, 0
    %v686 = vadd.f32 %v683, %v685
    %v687 = vadd.f32 %v684, %v685
    %v688 = vld [vmem:[#allocation2 + $0x10] sm:$0xff]
    %v689 = vld [vmem:[#allocation2 + $0xa0] sm:$0xff]
    %v690 = vld [vmem:[#allocation2 + $0x130] sm:$0xff]
    %v691 = vld [vmem:[#allocation2 + $0x1c0] sm:$0xff]
    %v692 = vld [vmem:[%s9 + $0x2] sm:$0x1]
    %v693 = vperm.slane %v692, 0
    %v695 = vsel %vm88, %v686, 0
    %v698 = vsel %vm88, %v687, 0
    %700 = vmatpush.msra.mxu0 0.0
    %701 = vmatpush.msra.mxu0 0.0
    %702 = vmatpush.msra.mxu0 0.0
    %703 = vmatpush.msra.mxu0 0.0
    %704 = vmatpush.msra.mxu0 0.0
    %705 = vmatpush.msra.mxu0 0.0
    %706 = vmatpush.msra.mxu0 0.0
    %707 = vmatpush.msra.mxu0 0.0
    %708 = vmatpush.msra.mxu0 0.0
    %709 = vmatpush.msra.mxu0 0.0
    %710 = vmatpush.msra.mxu0 0.0
    %711 = vmatpush.msra.mxu0 0.0
    %712 = vmatpush.msra.mxu0 %v691
    %713 = vmatpush.msra.mxu0 %v690
    %714 = vmatpush.msra.mxu0 %v689
    %715 = vmatpush.msra.mxu0 %v688
    %716 = vmatmul.f32.gmra.mxu0 %v695
    %v717 = vpop.f32.mrf.mxu0
    %v718 = vadd.f32 %v693, %v717
    %719 = vmatmul.f32.gmra.mxu0 %v698
    %v720 = vpop.f32.mrf.mxu0
    %v721 = vadd.f32 %v693, %v720
    %722 = vdwg.mxu0
    %v723 = vmax.f32 %v718, 0.0
    %v724 = vmax.f32 %v721, 0.0
    %v725 = vld [vmem:[#allocation5] sm:$0xff]
    %v726 = vld [vmem:[#allocation5 + $0x20] sm:$0xff]
    %v727 = vld [vmem:[#allocation5 + $0x40] sm:$0xff]
    %v728 = vld [vmem:[#allocation5 + $0x60] sm:$0xff]
    %v729 = vld [vmem:[#allocation5 + $0x80] sm:$0xff]
    %v730 = vld [vmem:[#allocation5 + $0xa0] sm:$0xff]
    %v731 = vld [vmem:[#allocation5 + $0xc0] sm:$0xff]
    %v732 = vld [vmem:[#allocation5 + $0xe0] sm:$0xff]
    %v733 = vld [vmem:[%s9 + $0x3] sm:$0x1]
    %v734 = vperm.slane %v733, 0
    %vm735 = vcmask 523264
    %v737 = vsel %vm735, %v723, 0
    %v740 = vsel %vm735, %v724, 0
    %742 = vmatpush.msra.mxu0 0.0
    %743 = vmatpush.msra.mxu0 0.0
    %744 = vmatpush.msra.mxu0 0.0
    %745 = vmatpush.msra.mxu0 0.0
    %746 = vmatpush.msra.mxu0 0.0
    %747 = vmatpush.msra.mxu0 0.0
    %748 = vmatpush.msra.mxu0 0.0
    %749 = vmatpush.msra.mxu0 0.0
    %750 = vmatpush.msra.mxu0 %v732
    %751 = vmatpush.msra.mxu0 %v731
    %752 = vmatpush.msra.mxu0 %v730
    %753 = vmatpush.msra.mxu0 %v729
    %754 = vmatpush.msra.mxu0 %v728
    %755 = vmatpush.msra.mxu0 %v727
    %756 = vmatpush.msra.mxu0 %v726
    %757 = vmatpush.msra.mxu0 %v725
    %758 = vmatmul.f32.gmra.mxu0 %v737
    %v759 = vpop.f32.mrf.mxu0
    %v760 = vadd.f32 %v734, %v759
    %761 = vmatmul.f32.gmra.mxu0 %v740
    %v762 = vpop.f32.mrf.mxu0
    %v763 = vadd.f32 %v734, %v762
    %764 = vdwg.mxu0
    %v765 = vadd.f32 %v760, %v686
    %v766 = vadd.f32 %v763, %v687
    %v767 = vld [vmem:[%s9 + $0x6] sm:$0x1]
    %v768 = vld [vmem:[%s9 + $0x7] sm:$0x1]
    %v769 = vsel %vm88, %v765, 0.0
    %770 = vadd.xlane.f32.xlu0 %v769
    %v771 = vpop.xlane.xlu0 %770
    %v772 = vsel %vm88, %v766, 0.0
    %773 = vadd.xlane.f32.xlu0 %v772
    %v774 = vpop.xlane.xlu0 %773
    %v775 = vmul.f32 %v771, %v643
    %v776 = vmul.f32 %v774, %v643
    %v777 = vsub.f32 %v765, %v775
    %v778 = vsub.f32 %v766, %v776
    %v779 = vmul.f32 %v777, %v777
    %v780 = vmul.f32 %v778, %v778
    %v781 = vsel %vm88, %v779, 0.0
    %782 = vadd.xlane.f32.xlu0 %v781
    %v783 = vpop.xlane.xlu0 %782
    %v784 = vsel %vm88, %v780, 0.0
    %785 = vadd.xlane.f32.xlu0 %v784
    %v786 = vpop.xlane.xlu0 %785
    %v787 = vmul.f32 %v783, %v643
    %v788 = vmul.f32 %v786, %v643
    %v789 = vadd.f32 %v787, 1e-05
    %v790 = vadd.f32 %v788, 1e-05
    %v791 = vrsqrt.pop %v789
    %v792 = vmul.f32 %v791, %v789
    %v793 = vmul.f32 %v792, %v791
    %v794 = vmul.f32 0.5, %v793
    %v795 = vsub.f32 1.5, %v794
    %v796 = vmul.f32 %v791, %v795
    %vm797 = vweird.f32 %v789
    %vm798 = vweird.f32 %v791
    %vm799 = vmor %vm797, %vm798
    %v800 = vsel %vm799, %v791, %v796
    %v801 = vrsqrt.pop %v790
    %v802 = vmul.f32 %v801, %v790
    %v803 = vmul.f32 %v802, %v801
    %v804 = vmul.f32 0.5, %v803
    %v805 = vsub.f32 1.5, %v804
    %v806 = vmul.f32 %v801, %v805
    %vm807 = vweird.f32 %v790
    %vm808 = vweird.f32 %v801
    %vm809 = vmor %vm807, %vm808
    %v810 = vsel %vm809, %v801, %v806
    %v811 = vmul.f32 %v777, %v800
    %v812 = vmul.f32 %v778, %v810
    %v813 = vperm.slane %v767, 0
    %v814 = vmul.f32 %v811, %v813
    %v815 = vmul.f32 %v812, %v813
    %v816 = vperm.slane %v768, 0
    %v817 = vadd.f32 %v814, %v816
    %v818 = vadd.f32 %v815, %v816
    %v819 = vld [vmem:[#allocation2 + $0x18] sm:$0xff]
    %v820 = vld [vmem:[#allocation2 + $0xa8] sm:$0xff]
    %v821 = vld [vmem:[#allocation2 + $0x138] sm:$0xff]
    %v822 = vld [vmem:[#allocation2 + $0x1c8] sm:$0xff]
    %v823 = vld [vmem:[%s9 + $0x8] sm:$0x1]
    %v824 = vperm.slane %v823, 0
    %v826 = vsel %vm88, %v817, 0
    %v829 = vsel %vm88, %v818, 0
    %831 = vmatpush.msra.mxu0 0.0
    %832 = vmatpush.msra.mxu0 0.0
    %833 = vmatpush.msra.mxu0 0.0
    %834 = vmatpush.msra.mxu0 0.0
    %835 = vmatpush.msra.mxu0 0.0
    %836 = vmatpush.msra.mxu0 0.0
    %837 = vmatpush.msra.mxu0 0.0
    %838 = vmatpush.msra.mxu0 0.0
    %839 = vmatpush.msra.mxu0 0.0
    %840 = vmatpush.msra.mxu0 0.0
    %841 = vmatpush.msra.mxu0 0.0
    %842 = vmatpush.msra.mxu0 0.0
    %843 = vmatpush.msra.mxu0 %v822
    %844 = vmatpush.msra.mxu0 %v821
    %845 = vmatpush.msra.mxu0 %v820
    %846 = vmatpush.msra.mxu0 %v819
    %847 = vmatmul.f32.gmra.mxu0 %v826
    %v848 = vpop.f32.mrf.mxu0
    %v849 = vadd.f32 %v824, %v848
    %850 = vmatmul.f32.gmra.mxu0 %v829
    %v851 = vpop.f32.mrf.mxu0
    %v852 = vadd.f32 %v824, %v851
    %853 = vdwg.mxu0
    %856 = vrot.lane.b32.xlu0 %v849, 96
    %v857 = vpop.permute.xlu0 %856
    %858 = vrot.lane.b32.xlu0 %v852, 96
    %v859 = vpop.permute.xlu0 %858
    %v860 = vsel %vm167, %v849, 0
    %v862 = vsel %vm167, %v852, 0
    %v864 = vsel %vm167, %v857, 0
    %v866 = vsel %vm167, %v859, 0
    %868 = vmatpush.xpose.msra.mxu0 0.0
    %869 = vmatpush.xpose.msra.mxu0 0.0
    %870 = vmatpush.xpose.msra.mxu0 0.0
    %871 = vmatpush.xpose.msra.mxu0 0.0
    %872 = vmatpush.xpose.msra.mxu0 0.0
    %873 = vmatpush.xpose.msra.mxu0 0.0
    %874 = vmatpush.xpose.msra.mxu0 0.0
    %875 = vmatpush.xpose.msra.mxu0 0.0
    %876 = vmatpush.xpose.msra.mxu0 0.0
    %877 = vmatpush.xpose.msra.mxu0 0.0
    %878 = vmatpush.xpose.msra.mxu0 0.0
    %879 = vmatpush.xpose.msra.mxu0 0.0
    %880 = vmatpush.xpose.msra.mxu0 0.0
    %881 = vmatpush.xpose.msra.mxu0 0.0
    %882 = vmatpush.xpose.msra.mxu0 %v866
    %883 = vmatpush.xpose.msra.mxu0 %v864
    %884 = vmatmul.f32.gmra.mxu0 %v860
    %v885 = vpop.f32.mrf.mxu0
    %v886 = vadd.f32 0.0, %v885
    %887 = vmatmul.f32.gmra.mxu0 %v862
    %v888 = vpop.f32.mrf.mxu0
    %v889 = vadd.f32 0.0, %v888
    %890 = vdwg.mxu0
    %v891 = vmul.f32 %v886, 0.35355338
    %v892 = vmul.f32 %v889, 0.35355338
    %v893 = vadd.f32 %v891, %v124
    %v894 = vadd.f32 %v892, %v125
    %v895 = vsel %vm203, %v893, -inf
    %896 = vmax.xlane.f32.xlu0 %v895
    %v897 = vpop.xlane.xlu0 %896
    %v898 = vsel %vm203, %v894, -inf
    %899 = vmax.xlane.f32.xlu0 %v898
    %v900 = vpop.xlane.xlu0 %899
    %v901 = vsub.f32 %v893, %v897
    %v902 = vsub.f32 %v894, %v900
    %v903 = vmul.f32 %v901, 1.442695
    %v904 = vpow.pop %v903
    %v905 = vmul.f32 %v902, 1.442695
    %v906 = vpow.pop %v905
    %v907 = vsel %vm203, %v904, 0.0
    %908 = vadd.xlane.f32.xlu0 %v907
    %v909 = vpop.xlane.xlu0 %908
    %v910 = vsel %vm203, %v906, 0.0
    %911 = vadd.xlane.f32.xlu0 %v910
    %v912 = vpop.xlane.xlu0 %911
    %v913 = vrcp.pop %v909
    %v914 = vrcp.pop %v912
    %v915 = vmul.f32 %v904, %v913
    %v916 = vmul.f32 %v906, %v914
    %917 = vrot.lane.b32.xlu0 %v849, 64
    %v918 = vpop.permute.xlu0 %917
    %919 = vrot.lane.b32.xlu0 %v852, 64
    %v920 = vpop.permute.xlu0 %919
    %v924 = vsel %vm203, %v915, 0
    %v927 = vsel %vm203, %v916, 0
    %929 = vmatpush.msra.mxu0 0.0
    %930 = vmatpush.msra.mxu0 0.0
    %931 = vmatpush.msra.mxu0 0.0
    %932 = vmatpush.msra.mxu0 0.0
    %933 = vmatpush.msra.mxu0 0.0
    %934 = vmatpush.msra.mxu0 0.0
    %935 = vmatpush.msra.mxu0 0.0
    %936 = vmatpush.msra.mxu0 0.0
    %937 = vmatpush.msra.mxu0 0.0
    %938 = vmatpush.msra.mxu0 0.0
    %939 = vmatpush.msra.mxu0 0.0
    %940 = vmatpush.msra.mxu0 0.0
    %941 = vmatpush.msra.mxu0 0.0
    %942 = vmatpush.msra.mxu0 0.0
    %943 = vmatpush.msra.mxu0 %v920
    %944 = vmatpush.msra.mxu0 %v918
    %945 = vmatmul.f32.gmra.mxu0 %v924
    %v946 = vpop.f32.mrf.mxu0
    %v947 = vadd.f32 0.0, %v946
    %948 = vmatmul.f32.gmra.mxu0 %v927
    %v949 = vpop.f32.mrf.mxu0
    %v950 = vadd.f32 0.0, %v949
    %951 = vdwg.mxu0
    %952 = vrot.lane.b32.xlu0 %v849, 120
    %v953 = vpop.permute.xlu0 %952
    %954 = vrot.lane.b32.xlu0 %v852, 120
    %v955 = vpop.permute.xlu0 %954
    %956 = vrot.lane.b32.xlu0 %v849, 88
    %v957 = vpop.permute.xlu0 %956
    %958 = vrot.lane.b32.xlu0 %v852, 88
    %v959 = vpop.permute.xlu0 %958
    %v960 = vsel %vm167, %v953, 0
    %v962 = vsel %vm167, %v955, 0
    %v964 = vsel %vm167, %v957, 0
    %v966 = vsel %vm167, %v959, 0
    %968 = vmatpush.xpose.msra.mxu0 0.0
    %969 = vmatpush.xpose.msra.mxu0 0.0
    %970 = vmatpush.xpose.msra.mxu0 0.0
    %971 = vmatpush.xpose.msra.mxu0 0.0
    %972 = vmatpush.xpose.msra.mxu0 0.0
    %973 = vmatpush.xpose.msra.mxu0 0.0
    %974 = vmatpush.xpose.msra.mxu0 0.0
    %975 = vmatpush.xpose.msra.mxu0 0.0
    %976 = vmatpush.xpose.msra.mxu0 0.0
    %977 = vmatpush.xpose.msra.mxu0 0.0
    %978 = vmatpush.xpose.msra.mxu0 0.0
    %979 = vmatpush.xpose.msra.mxu0 0.0
    %980 = vmatpush.xpose.msra.mxu0 0.0
    %981 = vmatpush.xpose.msra.mxu0 0.0
    %982 = vmatpush.xpose.msra.mxu0 %v966
    %983 = vmatpush.xpose.msra.mxu0 %v964
    %984 = vmatmul.f32.gmra.mxu0 %v960
    %v985 = vpop.f32.mrf.mxu0
    %v986 = vadd.f32 0.0, %v985
    %987 = vmatmul.f32.gmra.mxu0 %v962
    %v988 = vpop.f32.mrf.mxu0
    %v989 = vadd.f32 0.0, %v988
    %990 = vdwg.mxu0
    %v991 = vmul.f32 %v986, 0.35355338
    %v992 = vmul.f32 %v989, 0.35355338
    %v993 = vadd.f32 %v991, %v124
    %v994 = vadd.f32 %v992, %v125
    %v995 = vsel %vm203, %v993, -inf
    %996 = vmax.xlane.f32.xlu0 %v995
    %v997 = vpop.xlane.xlu0 %996
    %v998 = vsel %vm203, %v994, -inf
    %999 = vmax.xlane.f32.xlu0 %v998
    %v1000 = vpop.xlane.xlu0 %999
    %v1001 = vsub.f32 %v993, %v997
    %v1002 = vsub.f32 %v994, %v1000
    %v1003 = vmul.f32 %v1001, 1.442695
    %v1004 = vpow.pop %v1003
    %v1005 = vmul.f32 %v1002, 1.442695
    %v1006 = vpow.pop %v1005
    %v1007 = vsel %vm203, %v1004, 0.0
    %1008 = vadd.xlane.f32.xlu0 %v1007
    %v1009 = vpop.xlane.xlu0 %1008
    %v1010 = vsel %vm203, %v1006, 0.0
    %1011 = vadd.xlane.f32.xlu0 %v1010
    %v1012 = vpop.xlane.xlu0 %1011
    %v1013 = vrcp.pop %v1009
    %v1014 = vrcp.pop %v1012
    %v1015 = vmul.f32 %v1004, %v1013
    %v1016 = vmul.f32 %v1006, %v1014
    %1017 = vrot.lane.b32.xlu0 %v849, 56
    %v1018 = vpop.permute.xlu0 %1017
    %1019 = vrot.lane.b32.xlu0 %v852, 56
    %v1020 = vpop.permute.xlu0 %1019
    %v1024 = vsel %vm203, %v1015, 0
    %v1027 = vsel %vm203, %v1016, 0
    %1029 = vmatpush.msra.mxu0 0.0
    %1030 = vmatpush.msra.mxu0 0.0
    %1031 = vmatpush.msra.mxu0 0.0
    %1032 = vmatpush.msra.mxu0 0.0
    %1033 = vmatpush.msra.mxu0 0.0
    %1034 = vmatpush.msra.mxu0 0.0
    %1035 = vmatpush.msra.mxu0 0.0
    %1036 = vmatpush.msra.mxu0 0.0
    %1037 = vmatpush.msra.mxu0 0.0
    %1038 = vmatpush.msra.mxu0 0.0
    %1039 = vmatpush.msra.mxu0 0.0
    %1040 = vmatpush.msra.mxu0 0.0
    %1041 = vmatpush.msra.mxu0 0.0
    %1042 = vmatpush.msra.mxu0 0.0
    %1043 = vmatpush.msra.mxu0 %v1020
    %1044 = vmatpush.msra.mxu0 %v1018
    %1045 = vmatmul.f32.gmra.mxu0 %v1024
    %v1046 = vpop.f32.mrf.mxu0
    %v1047 = vadd.f32 0.0, %v1046
    %1048 = vmatmul.f32.gmra.mxu0 %v1027
    %v1049 = vpop.f32.mrf.mxu0
    %v1050 = vadd.f32 0.0, %v1049
    %1051 = vdwg.mxu0
    %1052 = vrot.lane.b32.xlu0 %v849, 112
    %v1053 = vpop.permute.xlu0 %1052
    %1054 = vrot.lane.b32.xlu0 %v852, 112
    %v1055 = vpop.permute.xlu0 %1054
    %1056 = vrot.lane.b32.xlu0 %v849, 80
    %v1057 = vpop.permute.xlu0 %1056
    %1058 = vrot.lane.b32.xlu0 %v852, 80
    %v1059 = vpop.permute.xlu0 %1058
    %v1060 = vsel %vm167, %v1053, 0
    %v1062 = vsel %vm167, %v1055, 0
    %v1064 = vsel %vm167, %v1057, 0
    %v1066 = vsel %vm167, %v1059, 0
    %1068 = vmatpush.xpose.msra.mxu0 0.0
    %1069 = vmatpush.xpose.msra.mxu0 0.0
    %1070 = vmatpush.xpose.msra.mxu0 0.0
    %1071 = vmatpush.xpose.msra.mxu0 0.0
    %1072 = vmatpush.xpose.msra.mxu0 0.0
    %1073 = vmatpush.xpose.msra.mxu0 0.0
    %1074 = vmatpush.xpose.msra.mxu0 0.0
    %1075 = vmatpush.xpose.msra.mxu0 0.0
    %1076 = vmatpush.xpose.msra.mxu0 0.0
    %1077 = vmatpush.xpose.msra.mxu0 0.0
    %1078 = vmatpush.xpose.msra.mxu0 0.0
    %1079 = vmatpush.xpose.msra.mxu0 0.0
    %1080 = vmatpush.xpose.msra.mxu0 0.0
    %1081 = vmatpush.xpose.msra.mxu0 0.0
    %1082 = vmatpush.xpose.msra.mxu0 %v1066
    %1083 = vmatpush.xpose.msra.mxu0 %v1064
    %1084 = vmatmul.f32.gmra.mxu0 %v1060
    %v1085 = vpop.f32.mrf.mxu0
    %v1086 = vadd.f32 0.0, %v1085
    %1087 = vmatmul.f32.gmra.mxu0 %v1062
    %v1088 = vpop.f32.mrf.mxu0
    %v1089 = vadd.f32 0.0, %v1088
    %1090 = vdwg.mxu0
    %v1091 = vmul.f32 %v1086, 0.35355338
    %v1092 = vmul.f32 %v1089, 0.35355338
    %v1093 = vadd.f32 %v1091, %v124
    %v1094 = vadd.f32 %v1092, %v125
    %v1095 = vsel %vm203, %v1093, -inf
    %1096 = vmax.xlane.f32.xlu0 %v1095
    %v1097 = vpop.xlane.xlu0 %1096
    %v1098 = vsel %vm203, %v1094, -inf
    %1099 = vmax.xlane.f32.xlu0 %v1098
    %v1100 = vpop.xlane.xlu0 %1099
    %v1101 = vsub.f32 %v1093, %v1097
    %v1102 = vsub.f32 %v1094, %v1100
    %v1103 = vmul.f32 %v1101, 1.442695
    %v1104 = vpow.pop %v1103
    %v1105 = vmul.f32 %v1102, 1.442695
    %v1106 = vpow.pop %v1105
    %v1107 = vsel %vm203, %v1104, 0.0
    %1108 = vadd.xlane.f32.xlu0 %v1107
    %v1109 = vpop.xlane.xlu0 %1108
    %v1110 = vsel %vm203, %v1106, 0.0
    %1111 = vadd.xlane.f32.xlu0 %v1110
    %v1112 = vpop.xlane.xlu0 %1111
    %v1113 = vrcp.pop %v1109
    %v1114 = vrcp.pop %v1112
    %v1115 = vmul.f32 %v1104, %v1113
    %v1116 = vmul.f32 %v1106, %v1114
    %1117 = vrot.lane.b32.xlu0 %v849, 48
    %v1118 = vpop.permute.xlu0 %1117
    %1119 = vrot.lane.b32.xlu0 %v852, 48
    %v1120 = vpop.permute.xlu0 %1119
    %v1124 = vsel %vm203, %v1115, 0
    %v1127 = vsel %vm203, %v1116, 0
    %1129 = vmatpush.msra.mxu0 0.0
    %1130 = vmatpush.msra.mxu0 0.0
    %1131 = vmatpush.msra.mxu0 0.0
    %1132 = vmatpush.msra.mxu0 0.0
    %1133 = vmatpush.msra.mxu0 0.0
    %1134 = vmatpush.msra.mxu0 0.0
    %1135 = vmatpush.msra.mxu0 0.0
    %1136 = vmatpush.msra.mxu0 0.0
    %1137 = vmatpush.msra.mxu0 0.0
    %1138 = vmatpush.msra.mxu0 0.0
    %1139 = vmatpush.msra.mxu0 0.0
    %1140 = vmatpush.msra.mxu0 0.0
    %1141 = vmatpush.msra.mxu0 0.0
    %1142 = vmatpush.msra.mxu0 0.0
    %1143 = vmatpush.msra.mxu0 %v1120
    %1144 = vmatpush.msra.mxu0 %v1118
    %1145 = vmatmul.f32.gmra.mxu0 %v1124
    %v1146 = vpop.f32.mrf.mxu0
    %v1147 = vadd.f32 0.0, %v1146
    %1148 = vmatmul.f32.gmra.mxu0 %v1127
    %v1149 = vpop.f32.mrf.mxu0
    %v1150 = vadd.f32 0.0, %v1149
    %1151 = vdwg.mxu0
    %1152 = vrot.lane.b32.xlu0 %v849, 104
    %v1153 = vpop.permute.xlu0 %1152
    %1154 = vrot.lane.b32.xlu0 %v852, 104
    %v1155 = vpop.permute.xlu0 %1154
    %1156 = vrot.lane.b32.xlu0 %v849, 72
    %v1157 = vpop.permute.xlu0 %1156
    %1158 = vrot.lane.b32.xlu0 %v852, 72
    %v1159 = vpop.permute.xlu0 %1158
    %v1160 = vsel %vm167, %v1153, 0
    %v1162 = vsel %vm167, %v1155, 0
    %v1164 = vsel %vm167, %v1157, 0
    %v1166 = vsel %vm167, %v1159, 0
    %1168 = vmatpush.xpose.msra.mxu0 0.0
    %1169 = vmatpush.xpose.msra.mxu0 0.0
    %1170 = vmatpush.xpose.msra.mxu0 0.0
    %1171 = vmatpush.xpose.msra.mxu0 0.0
    %1172 = vmatpush.xpose.msra.mxu0 0.0
    %1173 = vmatpush.xpose.msra.mxu0 0.0
    %1174 = vmatpush.xpose.msra.mxu0 0.0
    %1175 = vmatpush.xpose.msra.mxu0 0.0
    %1176 = vmatpush.xpose.msra.mxu0 0.0
    %1177 = vmatpush.xpose.msra.mxu0 0.0
    %1178 = vmatpush.xpose.msra.mxu0 0.0
    %1179 = vmatpush.xpose.msra.mxu0 0.0
    %1180 = vmatpush.xpose.msra.mxu0 0.0
    %1181 = vmatpush.xpose.msra.mxu0 0.0
    %1182 = vmatpush.xpose.msra.mxu0 %v1166
    %1183 = vmatpush.xpose.msra.mxu0 %v1164
    %1184 = vmatmul.f32.gmra.mxu0 %v1160
    %v1185 = vpop.f32.mrf.mxu0
    %v1186 = vadd.f32 0.0, %v1185
    %1187 = vmatmul.f32.gmra.mxu0 %v1162
    %v1188 = vpop.f32.mrf.mxu0
    %v1189 = vadd.f32 0.0, %v1188
    %1190 = vdwg.mxu0
    %v1191 = vmul.f32 %v1186, 0.35355338
    %v1192 = vmul.f32 %v1189, 0.35355338
    %v1193 = vadd.f32 %v1191, %v124
    %v1194 = vadd.f32 %v1192, %v125
    %v1195 = vsel %vm203, %v1193, -inf
    %1196 = vmax.xlane.f32.xlu0 %v1195
    %v1197 = vpop.xlane.xlu0 %1196
    %v1198 = vsel %vm203, %v1194, -inf
    %1199 = vmax.xlane.f32.xlu0 %v1198
    %v1200 = vpop.xlane.xlu0 %1199
    %v1201 = vsub.f32 %v1193, %v1197
    %v1202 = vsub.f32 %v1194, %v1200
    %v1203 = vmul.f32 %v1201, 1.442695
    %v1204 = vpow.pop %v1203
    %v1205 = vmul.f32 %v1202, 1.442695
    %v1206 = vpow.pop %v1205
    %v1207 = vsel %vm203, %v1204, 0.0
    %1208 = vadd.xlane.f32.xlu0 %v1207
    %v1209 = vpop.xlane.xlu0 %1208
    %v1210 = vsel %vm203, %v1206, 0.0
    %1211 = vadd.xlane.f32.xlu0 %v1210
    %v1212 = vpop.xlane.xlu0 %1211
    %v1213 = vrcp.pop %v1209
    %v1214 = vrcp.pop %v1212
    %v1215 = vmul.f32 %v1204, %v1213
    %v1216 = vmul.f32 %v1206, %v1214
    %1217 = vrot.lane.b32.xlu0 %v849, 40
    %v1218 = vpop.permute.xlu0 %1217
    %1219 = vrot.lane.b32.xlu0 %v852, 40
    %v1220 = vpop.permute.xlu0 %1219
    %v1224 = vsel %vm203, %v1215, 0
    %v1227 = vsel %vm203, %v1216, 0
    %1229 = vmatpush.msra.mxu0 0.0
    %1230 = vmatpush.msra.mxu0 0.0
    %1231 = vmatpush.msra.mxu0 0.0
    %1232 = vmatpush.msra.mxu0 0.0
    %1233 = vmatpush.msra.mxu0 0.0
    %1234 = vmatpush.msra.mxu0 0.0
    %1235 = vmatpush.msra.mxu0 0.0
    %1236 = vmatpush.msra.mxu0 0.0
    %1237 = vmatpush.msra.mxu0 0.0
    %1238 = vmatpush.msra.mxu0 0.0
    %1239 = vmatpush.msra.mxu0 0.0
    %1240 = vmatpush.msra.mxu0 0.0
    %1241 = vmatpush.msra.mxu0 0.0
    %1242 = vmatpush.msra.mxu0 0.0
    %1243 = vmatpush.msra.mxu0 %v1220
    %1244 = vmatpush.msra.mxu0 %v1218
    %1245 = vmatmul.f32.gmra.mxu0 %v1224
    %v1246 = vpop.f32.mrf.mxu0
    %v1247 = vadd.f32 0.0, %v1246
    %1248 = vmatmul.f32.gmra.mxu0 %v1227
    %v1249 = vpop.f32.mrf.mxu0
    %v1250 = vadd.f32 0.0, %v1249
    %1251 = vdwg.mxu0
    %1254 = vrot.lane.b32.xlu0 %v1047, 8
    %v1255 = vpop.permute.xlu0 %1254
    %1256 = vrot.lane.b32.xlu0 %v1050, 8
    %v1257 = vpop.permute.xlu0 %1256
    %1262 = vrot.lane.b32.xlu0 %v1147, 16
    %v1263 = vpop.permute.xlu0 %1262
    %1264 = vrot.lane.b32.xlu0 %v1150, 16
    %v1265 = vpop.permute.xlu0 %1264
    %1270 = vrot.lane.b32.xlu0 %v1247, 24
    %v1271 = vpop.permute.xlu0 %1270
    %1272 = vrot.lane.b32.xlu0 %v1250, 24
    %v1273 = vpop.permute.xlu0 %1272
    %v1276 = vsel %vm167, %v947, %v1255
    %v1277 = vsel %vm167, %v950, %v1257
    %v1278 = vsel %vm203, %v1276, %v1263
    %v1279 = vsel %vm203, %v1277, %v1265
    %v1280 = vsel %vm589, %v1278, %v1271
    %v1281 = vsel %vm589, %v1279, %v1273
    %v1282 = vld [vmem:[#allocation2 + $0x20] sm:$0xff]
    %v1283 = vld [vmem:[#allocation2 + $0xb0] sm:$0xff]
    %v1284 = vld [vmem:[#allocation2 + $0x140] sm:$0xff]
    %v1285 = vld [vmem:[#allocation2 + $0x1d0] sm:$0xff]
    %v1286 = vld [vmem:[%s9 + $0x9] sm:$0x1]
    %v1287 = vperm.slane %v1286, 0
    %v1289 = vsel %vm88, %v1280, 0
    %v1292 = vsel %vm88, %v1281, 0
    %1294 = vmatpush.msra.mxu0 0.0
    %1295 = vmatpush.msra.mxu0 0.0
    %1296 = vmatpush.msra.mxu0 0.0
    %1297 = vmatpush.msra.mxu0 0.0
    %1298 = vmatpush.msra.mxu0 0.0
    %1299 = vmatpush.msra.mxu0 0.0
    %1300 = vmatpush.msra.mxu0 0.0
    %1301 = vmatpush.msra.mxu0 0.0
    %1302 = vmatpush.msra.mxu0 0.0
    %1303 = vmatpush.msra.mxu0 0.0
    %1304 = vmatpush.msra.mxu0 0.0
    %1305 = vmatpush.msra.mxu0 0.0
    %1306 = vmatpush.msra.mxu0 %v1285
    %1307 = vmatpush.msra.mxu0 %v1284
    %1308 = vmatpush.msra.mxu0 %v1283
    %1309 = vmatpush.msra.mxu0 %v1282
    %1310 = vmatmul.f32.gmra.mxu0 %v1289
    %v1311 = vpop.f32.mrf.mxu0
    %v1312 = vadd.f32 %v1287, %v1311
    %1313 = vmatmul.f32.gmra.mxu0 %v1292
    %v1314 = vpop.f32.mrf.mxu0
    %v1315 = vadd.f32 %v1287, %v1314
    %1316 = vdwg.mxu0
    %v1317 = vadd.f32 %v1312, %v817
    %v1318 = vadd.f32 %v1315, %v818
    %v1319 = vld [vmem:[%s9 + $0xc] sm:$0x1]
    %v1320 = vld [vmem:[%s9 + $0xd] sm:$0x1]
    %v1321 = vsel %vm88, %v1317, 0.0
    %1322 = vadd.xlane.f32.xlu0 %v1321
    %v1323 = vpop.xlane.xlu0 %1322
    %v1324 = vsel %vm88, %v1318, 0.0
    %1325 = vadd.xlane.f32.xlu0 %v1324
    %v1326 = vpop.xlane.xlu0 %1325
    %v1327 = vmul.f32 %v1323, %v643
    %v1328 = vmul.f32 %v1326, %v643
    %v1329 = vsub.f32 %v1317, %v1327
    %v1330 = vsub.f32 %v1318, %v1328
    %v1331 = vmul.f32 %v1329, %v1329
    %v1332 = vmul.f32 %v1330, %v1330
    %v1333 = vsel %vm88, %v1331, 0.0
    %1334 = vadd.xlane.f32.xlu0 %v1333
    %v1335 = vpop.xlane.xlu0 %1334
    %v1336 = vsel %vm88, %v1332, 0.0
    %1337 = vadd.xlane.f32.xlu0 %v1336
    %v1338 = vpop.xlane.xlu0 %1337
    %v1339 = vmul.f32 %v1335, %v643
    %v1340 = vmul.f32 %v1338, %v643
    %v1341 = vadd.f32 %v1339, 1e-05
    %v1342 = vadd.f32 %v1340, 1e-05
    %v1343 = vrsqrt.pop %v1341
    %v1344 = vmul.f32 %v1343, %v1341
    %v1345 = vmul.f32 %v1344, %v1343
    %v1346 = vmul.f32 0.5, %v1345
    %v1347 = vsub.f32 1.5, %v1346
    %v1348 = vmul.f32 %v1343, %v1347
    %vm1349 = vweird.f32 %v1341
    %vm1350 = vweird.f32 %v1343
    %vm1351 = vmor %vm1349, %vm1350
    %v1352 = vsel %vm1351, %v1343, %v1348
    %v1353 = vrsqrt.pop %v1342
    %v1354 = vmul.f32 %v1353, %v1342
    %v1355 = vmul.f32 %v1354, %v1353
    %v1356 = vmul.f32 0.5, %v1355
    %v1357 = vsub.f32 1.5, %v1356
    %v1358 = vmul.f32 %v1353, %v1357
    %vm1359 = vweird.f32 %v1342
    %vm1360 = vweird.f32 %v1353
    %vm1361 = vmor %vm1359, %vm1360
    %v1362 = vsel %vm1361, %v1353, %v1358
    %v1363 = vmul.f32 %v1329, %v1352
    %v1364 = vmul.f32 %v1330, %v1362
    %v1365 = vperm.slane %v1319, 0
    %v1366 = vmul.f32 %v1363, %v1365
    %v1367 = vmul.f32 %v1364, %v1365
    %v1368 = vperm.slane %v1320, 0
    %v1369 = vadd.f32 %v1366, %v1368
    %v1370 = vadd.f32 %v1367, %v1368
    %v1371 = vld [vmem:[#allocation2 + $0x28] sm:$0xff]
    %v1372 = vld [vmem:[#allocation2 + $0xb8] sm:$0xff]
    %v1373 = vld [vmem:[#allocation2 + $0x148] sm:$0xff]
    %v1374 = vld [vmem:[#allocation2 + $0x1d8] sm:$0xff]
    %v1375 = vld [vmem:[%s9 + $0xa] sm:$0x1]
    %v1376 = vperm.slane %v1375, 0
    %v1378 = vsel %vm88, %v1369, 0
    %v1381 = vsel %vm88, %v1370, 0
    %1383 = vmatpush.msra.mxu0 0.0
    %1384 = vmatpush.msra.mxu0 0.0
    %1385 = vmatpush.msra.mxu0 0.0
    %1386 = vmatpush.msra.mxu0 0.0
    %1387 = vmatpush.msra.mxu0 0.0
    %1388 = vmatpush.msra.mxu0 0.0
    %1389 = vmatpush.msra.mxu0 0.0
    %1390 = vmatpush.msra.mxu0 0.0
    %1391 = vmatpush.msra.mxu0 0.0
    %1392 = vmatpush.msra.mxu0 0.0
    %1393 = vmatpush.msra.mxu0 0.0
    %1394 = vmatpush.msra.mxu0 0.0
    %1395 = vmatpush.msra.mxu0 %v1374
    %1396 = vmatpush.msra.mxu0 %v1373
    %1397 = vmatpush.msra.mxu0 %v1372
    %1398 = vmatpush.msra.mxu0 %v1371
    %1399 = vmatmul.f32.gmra.mxu0 %v1378
    %v1400 = vpop.f32.mrf.mxu0
    %v1401 = vadd.f32 %v1376, %v1400
    %1402 = vmatmul.f32.gmra.mxu0 %v1381
    %v1403 = vpop.f32.mrf.mxu0
    %v1404 = vadd.f32 %v1376, %v1403
    %1405 = vdwg.mxu0
    %v1406 = vmax.f32 %v1401, 0.0
    %v1407 = vmax.f32 %v1404, 0.0
    %v1408 = vld [vmem:[#allocation5 + $0x8] sm:$0xff]
    %v1409 = vld [vmem:[#allocation5 + $0x28] sm:$0xff]
    %v1410 = vld [vmem:[#allocation5 + $0x48] sm:$0xff]
    %v1411 = vld [vmem:[#allocation5 + $0x68] sm:$0xff]
    %v1412 = vld [vmem:[#allocation5 + $0x88] sm:$0xff]
    %v1413 = vld [vmem:[#allocation5 + $0xa8] sm:$0xff]
    %v1414 = vld [vmem:[#allocation5 + $0xc8] sm:$0xff]
    %v1415 = vld [vmem:[#allocation5 + $0xe8] sm:$0xff]
    %v1416 = vld [vmem:[%s9 + $0xb] sm:$0x1]
    %v1417 = vperm.slane %v1416, 0
    %v1419 = vsel %vm735, %v1406, 0
    %v1422 = vsel %vm735, %v1407, 0
    %1424 = vmatpush.msra.mxu0 0.0
    %1425 = vmatpush.msra.mxu0 0.0
    %1426 = vmatpush.msra.mxu0 0.0
    %1427 = vmatpush.msra.mxu0 0.0
    %1428 = vmatpush.msra.mxu0 0.0
    %1429 = vmatpush.msra.mxu0 0.0
    %1430 = vmatpush.msra.mxu0 0.0
    %1431 = vmatpush.msra.mxu0 0.0
    %1432 = vmatpush.msra.mxu0 %v1415
    %1433 = vmatpush.msra.mxu0 %v1414
    %1434 = vmatpush.msra.mxu0 %v1413
    %1435 = vmatpush.msra.mxu0 %v1412
    %1436 = vmatpush.msra.mxu0 %v1411
    %1437 = vmatpush.msra.mxu0 %v1410
    %1438 = vmatpush.msra.mxu0 %v1409
    %1439 = vmatpush.msra.mxu0 %v1408
    %1440 = vmatmul.f32.gmra.mxu0 %v1419
    %v1441 = vpop.f32.mrf.mxu0
    %v1442 = vadd.f32 %v1417, %v1441
    %1443 = vmatmul.f32.gmra.mxu0 %v1422
    %v1444 = vpop.f32.mrf.mxu0
    %v1445 = vadd.f32 %v1417, %v1444
    %1446 = vdwg.mxu0
    %v1447 = vadd.f32 %v1442, %v1369
    %v1448 = vadd.f32 %v1445, %v1370
    %v1449 = vld [vmem:[%s9 + $0xe] sm:$0x1]
    %v1450 = vld [vmem:[%s9 + $0xf] sm:$0x1]
    %v1451 = vsel %vm88, %v1447, 0.0
    %1452 = vadd.xlane.f32.xlu0 %v1451
    %v1453 = vpop.xlane.xlu0 %1452
    %v1454 = vsel %vm88, %v1448, 0.0
    %1455 = vadd.xlane.f32.xlu0 %v1454
    %v1456 = vpop.xlane.xlu0 %1455
    %v1457 = vmul.f32 %v1453, %v643
    %v1458 = vmul.f32 %v1456, %v643
    %v1459 = vsub.f32 %v1447, %v1457
    %v1460 = vsub.f32 %v1448, %v1458
    %v1461 = vmul.f32 %v1459, %v1459
    %v1462 = vmul.f32 %v1460, %v1460
    %v1463 = vsel %vm88, %v1461, 0.0
    %1464 = vadd.xlane.f32.xlu0 %v1463
    %v1465 = vpop.xlane.xlu0 %1464
    %v1466 = vsel %vm88, %v1462, 0.0
    %1467 = vadd.xlane.f32.xlu0 %v1466
    %v1468 = vpop.xlane.xlu0 %1467
    %v1469 = vmul.f32 %v1465, %v643
    %v1470 = vmul.f32 %v1468, %v643
    %v1471 = vadd.f32 %v1469, 1e-05
    %v1472 = vadd.f32 %v1470, 1e-05
    %v1473 = vrsqrt.pop %v1471
    %v1474 = vmul.f32 %v1473, %v1471
    %v1475 = vmul.f32 %v1474, %v1473
    %v1476 = vmul.f32 0.5, %v1475
    %v1477 = vsub.f32 1.5, %v1476
    %v1478 = vmul.f32 %v1473, %v1477
    %vm1479 = vweird.f32 %v1471
    %vm1480 = vweird.f32 %v1473
    %vm1481 = vmor %vm1479, %vm1480
    %v1482 = vsel %vm1481, %v1473, %v1478
    %v1483 = vrsqrt.pop %v1472
    %v1484 = vmul.f32 %v1483, %v1472
    %v1485 = vmul.f32 %v1484, %v1483
    %v1486 = vmul.f32 0.5, %v1485
    %v1487 = vsub.f32 1.5, %v1486
    %v1488 = vmul.f32 %v1483, %v1487
    %vm1489 = vweird.f32 %v1472
    %vm1490 = vweird.f32 %v1483
    %vm1491 = vmor %vm1489, %vm1490
    %v1492 = vsel %vm1491, %v1483, %v1488
    %v1493 = vmul.f32 %v1459, %v1482
    %v1494 = vmul.f32 %v1460, %v1492
    %v1495 = vperm.slane %v1449, 0
    %v1496 = vmul.f32 %v1493, %v1495
    %v1497 = vmul.f32 %v1494, %v1495
    %v1498 = vperm.slane %v1450, 0
    %v1499 = vadd.f32 %v1496, %v1498
    %v1500 = vadd.f32 %v1497, %v1498
    %v1501 = vld [vmem:[%s1] sm:$0xff]
    %v1502 = vld [vmem:[%s1 + $0x8] sm:$0xff]
    %1503 = vset.pattern.permute.xlu0 0
    %1504 = vperm.xlu0 %1503, %v1501
    %v1505 = vpop.permute.xlu0 %1504
    %1506 = vset.pattern.permute.xlu0 0
    %1507 = vperm.xlu0 %1506, %v1502
    %v1508 = vpop.permute.xlu0 %1507
    %vm1509 = vcmp.eq.s32.totalorder %v71, %v1505
    %vm1510 = vcmp.eq.s32.totalorder %v71, %v1508
    %v1511 = vsel %vm1509, 1, 0
    %v1512 = vsel %vm1510, 1, 0
    %v1513 = vcvt.s32.f32 %v1511
    %v1514 = vcvt.s32.f32 %v1512
    %v1516 = vsel %vm88, %v1513, 0
    %v1519 = vsel %vm88, %v1514, 0
    %1521 = vmatpush.msra.mxu0 0.0
    %1522 = vmatpush.msra.mxu0 0.0
    %1523 = vmatpush.msra.mxu0 0.0
    %1524 = vmatpush.msra.mxu0 0.0
    %1525 = vmatpush.msra.mxu0 0.0
    %1526 = vmatpush.msra.mxu0 0.0
    %1527 = vmatpush.msra.mxu0 0.0
    %1528 = vmatpush.msra.mxu0 0.0
    %1529 = vmatpush.msra.mxu0 0.0
    %1530 = vmatpush.msra.mxu0 0.0
    %1531 = vmatpush.msra.mxu0 0.0
    %1532 = vmatpush.msra.mxu0 0.0
    %1533 = vmatpush.msra.mxu0 %v87
    %1534 = vmatpush.msra.mxu0 %v86
    %1535 = vmatpush.msra.mxu0 %v85
    %1536 = vmatpush.msra.mxu0 %v84
    %1537 = vmatmul.f32.gmra.mxu0 %v1516
    %v1538 = vpop.f32.mrf.mxu0
    %v1539 = vadd.f32 0.0, %v1538
    %1540 = vmatmul.f32.gmra.mxu0 %v1519
    %v1541 = vpop.f32.mrf.mxu0
    %v1542 = vadd.f32 0.0, %v1541
    %1543 = vdwg.mxu0
    %v1544 = vmul.f32 %v1539, 5.656854
    %v1545 = vmul.f32 %v1542, 5.656854
    %v1546 = vld [vmem:[%s3] sm:$0xff]
    %v1547 = vld [vmem:[%s3 + $0x8] sm:$0xff]
    %v1548 = vadd.f32 %v1544, %v1546
    %v1549 = vadd.f32 %v1545, %v1547
    %v1550 = vld [vmem:[%s5] sm:$0xff]
    %v1551 = vld [vmem:[%s5 + $0x8] sm:$0xff]
    %v1552 = vld [vmem:[%s6] sm:$0xff]
    %v1553 = vld [vmem:[%s6 + $0x8] sm:$0xff]
    %v1554 = vld [vmem:[#allocation2 + $0x30] sm:$0xff]
    %v1555 = vld [vmem:[#allocation2 + $0xc0] sm:$0xff]
    %v1556 = vld [vmem:[#allocation2 + $0x150] sm:$0xff]
    %v1557 = vld [vmem:[#allocation2 + $0x1e0] sm:$0xff]
    %v1558 = vld [vmem:[%s9 + $0x10] sm:$0x1]
    %v1559 = vperm.slane %v1558, 0
    %v1561 = vsel %vm88, %v1548, 0
    %v1564 = vsel %vm88, %v1549, 0
    %1566 = vmatpush.msra.mxu0 0.0
    %1567 = vmatpush.msra.mxu0 0.0
    %1568 = vmatpush.msra.mxu0 0.0
    %1569 = vmatpush.msra.mxu0 0.0
    %1570 = vmatpush.msra.mxu0 0.0
    %1571 = vmatpush.msra.mxu0 0.0
    %1572 = vmatpush.msra.mxu0 0.0
    %1573 = vmatpush.msra.mxu0 0.0
    %1574 = vmatpush.msra.mxu0 0.0
    %1575 = vmatpush.msra.mxu0 0.0
    %1576 = vmatpush.msra.mxu0 0.0
    %1577 = vmatpush.msra.mxu0 0.0
    %1578 = vmatpush.msra.mxu0 %v1557
    %1579 = vmatpush.msra.mxu0 %v1556
    %1580 = vmatpush.msra.mxu0 %v1555
    %1581 = vmatpush.msra.mxu0 %v1554
    %1582 = vmatmul.f32.gmra.mxu0 %v1561
    %v1583 = vpop.f32.mrf.mxu0
    %v1584 = vadd.f32 %v1559, %v1583
    %1585 = vmatmul.f32.gmra.mxu0 %v1564
    %v1586 = vpop.f32.mrf.mxu0
    %v1587 = vadd.f32 %v1559, %v1586
    %1588 = vdwg.mxu0
    %1591 = vrot.lane.b32.xlu0 %v1584, 96
    %v1592 = vpop.permute.xlu0 %1591
    %1593 = vrot.lane.b32.xlu0 %v1587, 96
    %v1594 = vpop.permute.xlu0 %1593
    %v1595 = vsel %vm167, %v1584, 0
    %v1597 = vsel %vm167, %v1587, 0
    %v1599 = vsel %vm167, %v1592, 0
    %v1601 = vsel %vm167, %v1594, 0
    %1603 = vmatpush.xpose.msra.mxu0 0.0
    %1604 = vmatpush.xpose.msra.mxu0 0.0
    %1605 = vmatpush.xpose.msra.mxu0 0.0
    %1606 = vmatpush.xpose.msra.mxu0 0.0
    %1607 = vmatpush.xpose.msra.mxu0 0.0
    %1608 = vmatpush.xpose.msra.mxu0 0.0
    %1609 = vmatpush.xpose.msra.mxu0 0.0
    %1610 = vmatpush.xpose.msra.mxu0 0.0
    %1611 = vmatpush.xpose.msra.mxu0 0.0
    %1612 = vmatpush.xpose.msra.mxu0 0.0
    %1613 = vmatpush.xpose.msra.mxu0 0.0
    %1614 = vmatpush.xpose.msra.mxu0 0.0
    %1615 = vmatpush.xpose.msra.mxu0 0.0
    %1616 = vmatpush.xpose.msra.mxu0 0.0
    %1617 = vmatpush.xpose.msra.mxu0 %v1601
    %1618 = vmatpush.xpose.msra.mxu0 %v1599
    %1619 = vmatmul.f32.gmra.mxu0 %v1595
    %v1620 = vpop.f32.mrf.mxu0
    %v1621 = vadd.f32 0.0, %v1620
    %1622 = vmatmul.f32.gmra.mxu0 %v1597
    %v1623 = vpop.f32.mrf.mxu0
    %v1624 = vadd.f32 0.0, %v1623
    %1625 = vdwg.mxu0
    %v1626 = vmul.f32 %v1621, 0.35355338
    %v1627 = vmul.f32 %v1624, 0.35355338
    %v1628 = vadd.f32 %v1626, %v1550
    %v1629 = vadd.f32 %v1627, %v1551
    %v1630 = vsel %vm203, %v1628, -inf
    %1631 = vmax.xlane.f32.xlu0 %v1630
    %v1632 = vpop.xlane.xlu0 %1631
    %v1633 = vsel %vm203, %v1629, -inf
    %1634 = vmax.xlane.f32.xlu0 %v1633
    %v1635 = vpop.xlane.xlu0 %1634
    %v1636 = vsub.f32 %v1628, %v1632
    %v1637 = vsub.f32 %v1629, %v1635
    %v1638 = vmul.f32 %v1636, 1.442695
    %v1639 = vpow.pop %v1638
    %v1640 = vmul.f32 %v1637, 1.442695
    %v1641 = vpow.pop %v1640
    %v1642 = vsel %vm203, %v1639, 0.0
    %1643 = vadd.xlane.f32.xlu0 %v1642
    %v1644 = vpop.xlane.xlu0 %1643
    %v1645 = vsel %vm203, %v1641, 0.0
    %1646 = vadd.xlane.f32.xlu0 %v1645
    %v1647 = vpop.xlane.xlu0 %1646
    %v1648 = vrcp.pop %v1644
    %v1649 = vrcp.pop %v1647
    %v1650 = vmul.f32 %v1639, %v1648
    %v1651 = vmul.f32 %v1641, %v1649
    %1652 = vrot.lane.b32.xlu0 %v1584, 64
    %v1653 = vpop.permute.xlu0 %1652
    %1654 = vrot.lane.b32.xlu0 %v1587, 64
    %v1655 = vpop.permute.xlu0 %1654
    %v1659 = vsel %vm203, %v1650, 0
    %v1662 = vsel %vm203, %v1651, 0
    %1664 = vmatpush.msra.mxu0 0.0
    %1665 = vmatpush.msra.mxu0 0.0
    %1666 = vmatpush.msra.mxu0 0.0
    %1667 = vmatpush.msra.mxu0 0.0
    %1668 = vmatpush.msra.mxu0 0.0
    %1669 = vmatpush.msra.mxu0 0.0
    %1670 = vmatpush.msra.mxu0 0.0
    %1671 = vmatpush.msra.mxu0 0.0
    %1672 = vmatpush.msra.mxu0 0.0
    %1673 = vmatpush.msra.mxu0 0.0
    %1674 = vmatpush.msra.mxu0 0.0
    %1675 = vmatpush.msra.mxu0 0.0
    %1676 = vmatpush.msra.mxu0 0.0
    %1677 = vmatpush.msra.mxu0 0.0
    %1678 = vmatpush.msra.mxu0 %v1655
    %1679 = vmatpush.msra.mxu0 %v1653
    %1680 = vmatmul.f32.gmra.mxu0 %v1659
    %v1681 = vpop.f32.mrf.mxu0
    %v1682 = vadd.f32 0.0, %v1681
    %1683 = vmatmul.f32.gmra.mxu0 %v1662
    %v1684 = vpop.f32.mrf.mxu0
    %v1685 = vadd.f32 0.0, %v1684
    %1686 = vdwg.mxu0
    %1687 = vrot.lane.b32.xlu0 %v1584, 120
    %v1688 = vpop.permute.xlu0 %1687
    %1689 = vrot.lane.b32.xlu0 %v1587, 120
    %v1690 = vpop.permute.xlu0 %1689
    %1691 = vrot.lane.b32.xlu0 %v1584, 88
    %v1692 = vpop.permute.xlu0 %1691
    %1693 = vrot.lane.b32.xlu0 %v1587, 88
    %v1694 = vpop.permute.xlu0 %1693
    %v1695 = vsel %vm167, %v1688, 0
    %v1697 = vsel %vm167, %v1690, 0
    %v1699 = vsel %vm167, %v1692, 0
    %v1701 = vsel %vm167, %v1694, 0
    %1703 = vmatpush.xpose.msra.mxu0 0.0
    %1704 = vmatpush.xpose.msra.mxu0 0.0
    %1705 = vmatpush.xpose.msra.mxu0 0.0
    %1706 = vmatpush.xpose.msra.mxu0 0.0
    %1707 = vmatpush.xpose.msra.mxu0 0.0
    %1708 = vmatpush.xpose.msra.mxu0 0.0
    %1709 = vmatpush.xpose.msra.mxu0 0.0
    %1710 = vmatpush.xpose.msra.mxu0 0.0
    %1711 = vmatpush.xpose.msra.mxu0 0.0
    %1712 = vmatpush.xpose.msra.mxu0 0.0
    %1713 = vmatpush.xpose.msra.mxu0 0.0
    %1714 = vmatpush.xpose.msra.mxu0 0.0
    %1715 = vmatpush.xpose.msra.mxu0 0.0
    %1716 = vmatpush.xpose.msra.mxu0 0.0
    %1717 = vmatpush.xpose.msra.mxu0 %v1701
    %1718 = vmatpush.xpose.msra.mxu0 %v1699
    %1719 = vmatmul.f32.gmra.mxu0 %v1695
    %v1720 = vpop.f32.mrf.mxu0
    %v1721 = vadd.f32 0.0, %v1720
    %1722 = vmatmul.f32.gmra.mxu0 %v1697
    %v1723 = vpop.f32.mrf.mxu0
    %v1724 = vadd.f32 0.0, %v1723
    %1725 = vdwg.mxu0
    %v1726 = vmul.f32 %v1721, 0.35355338
    %v1727 = vmul.f32 %v1724, 0.35355338
    %v1728 = vadd.f32 %v1726, %v1550
    %v1729 = vadd.f32 %v1727, %v1551
    %v1730 = vsel %vm203, %v1728, -inf
    %1731 = vmax.xlane.f32.xlu0 %v1730
    %v1732 = vpop.xlane.xlu0 %1731
    %v1733 = vsel %vm203, %v1729, -inf
    %1734 = vmax.xlane.f32.xlu0 %v1733
    %v1735 = vpop.xlane.xlu0 %1734
    %v1736 = vsub.f32 %v1728, %v1732
    %v1737 = vsub.f32 %v1729, %v1735
    %v1738 = vmul.f32 %v1736, 1.442695
    %v1739 = vpow.pop %v1738
    %v1740 = vmul.f32 %v1737, 1.442695
    %v1741 = vpow.pop %v1740
    %v1742 = vsel %vm203, %v1739, 0.0
    %1743 = vadd.xlane.f32.xlu0 %v1742
    %v1744 = vpop.xlane.xlu0 %1743
    %v1745 = vsel %vm203, %v1741, 0.0
    %1746 = vadd.xlane.f32.xlu0 %v1745
    %v1747 = vpop.xlane.xlu0 %1746
    %v1748 = vrcp.pop %v1744
    %v1749 = vrcp.pop %v1747
    %v1750 = vmul.f32 %v1739, %v1748
    %v1751 = vmul.f32 %v1741, %v1749
    %1752 = vrot.lane.b32.xlu0 %v1584, 56
    %v1753 = vpop.permute.xlu0 %1752
    %1754 = vrot.lane.b32.xlu0 %v1587, 56
    %v1755 = vpop.permute.xlu0 %1754
    %v1759 = vsel %vm203, %v1750, 0
    %v1762 = vsel %vm203, %v1751, 0
    %1764 = vmatpush.msra.mxu0 0.0
    %1765 = vmatpush.msra.mxu0 0.0
    %1766 = vmatpush.msra.mxu0 0.0
    %1767 = vmatpush.msra.mxu0 0.0
    %1768 = vmatpush.msra.mxu0 0.0
    %1769 = vmatpush.msra.mxu0 0.0
    %1770 = vmatpush.msra.mxu0 0.0
    %1771 = vmatpush.msra.mxu0 0.0
    %1772 = vmatpush.msra.mxu0 0.0
    %1773 = vmatpush.msra.mxu0 0.0
    %1774 = vmatpush.msra.mxu0 0.0
    %1775 = vmatpush.msra.mxu0 0.0
    %1776 = vmatpush.msra.mxu0 0.0
    %1777 = vmatpush.msra.mxu0 0.0
    %1778 = vmatpush.msra.mxu0 %v1755
    %1779 = vmatpush.msra.mxu0 %v1753
    %1780 = vmatmul.f32.gmra.mxu0 %v1759
    %v1781 = vpop.f32.mrf.mxu0
    %v1782 = vadd.f32 0.0, %v1781
    %1783 = vmatmul.f32.gmra.mxu0 %v1762
    %v1784 = vpop.f32.mrf.mxu0
    %v1785 = vadd.f32 0.0, %v1784
    %1786 = vdwg.mxu0
    %1787 = vrot.lane.b32.xlu0 %v1584, 112
    %v1788 = vpop.permute.xlu0 %1787
    %1789 = vrot.lane.b32.xlu0 %v1587, 112
    %v1790 = vpop.permute.xlu0 %1789
    %1791 = vrot.lane.b32.xlu0 %v1584, 80
    %v1792 = vpop.permute.xlu0 %1791
    %1793 = vrot.lane.b32.xlu0 %v1587, 80
    %v1794 = vpop.permute.xlu0 %1793
    %v1795 = vsel %vm167, %v1788, 0
    %v1797 = vsel %vm167, %v1790, 0
    %v1799 = vsel %vm167, %v1792, 0
    %v1801 = vsel %vm167, %v1794, 0
    %1803 = vmatpush.xpose.msra.mxu0 0.0
    %1804 = vmatpush.xpose.msra.mxu0 0.0
    %1805 = vmatpush.xpose.msra.mxu0 0.0
    %1806 = vmatpush.xpose.msra.mxu0 0.0
    %1807 = vmatpush.xpose.msra.mxu0 0.0
    %1808 = vmatpush.xpose.msra.mxu0 0.0
    %1809 = vmatpush.xpose.msra.mxu0 0.0
    %1810 = vmatpush.xpose.msra.mxu0 0.0
    %1811 = vmatpush.xpose.msra.mxu0 0.0
    %1812 = vmatpush.xpose.msra.mxu0 0.0
    %1813 = vmatpush.xpose.msra.mxu0 0.0
    %1814 = vmatpush.xpose.msra.mxu0 0.0
    %1815 = vmatpush.xpose.msra.mxu0 0.0
    %1816 = vmatpush.xpose.msra.mxu0 0.0
    %1817 = vmatpush.xpose.msra.mxu0 %v1801
    %1818 = vmatpush.xpose.msra.mxu0 %v1799
    %1819 = vmatmul.f32.gmra.mxu0 %v1795
    %v1820 = vpop.f32.mrf.mxu0
    %v1821 = vadd.f32 0.0, %v1820
    %1822 = vmatmul.f32.gmra.mxu0 %v1797
    %v1823 = vpop.f32.mrf.mxu0
    %v1824 = vadd.f32 0.0, %v1823
    %1825 = vdwg.mxu0
    %v1826 = vmul.f32 %v1821, 0.35355338
    %v1827 = vmul.f32 %v1824, 0.35355338
    %v1828 = vadd.f32 %v1826, %v1550
    %v1829 = vadd.f32 %v1827, %v1551
    %v1830 = vsel %vm203, %v1828, -inf
    %1831 = vmax.xlane.f32.xlu0 %v1830
    %v1832 = vpop.xlane.xlu0 %1831
    %v1833 = vsel %vm203, %v1829, -inf
    %1834 = vmax.xlane.f32.xlu0 %v1833
    %v1835 = vpop.xlane.xlu0 %1834
    %v1836 = vsub.f32 %v1828, %v1832
    %v1837 = vsub.f32 %v1829, %v1835
    %v1838 = vmul.f32 %v1836, 1.442695
    %v1839 = vpow.pop %v1838
    %v1840 = vmul.f32 %v1837, 1.442695
    %v1841 = vpow.pop %v1840
    %v1842 = vsel %vm203, %v1839, 0.0
    %1843 = vadd.xlane.f32.xlu0 %v1842
    %v1844 = vpop.xlane.xlu0 %1843
    %v1845 = vsel %vm203, %v1841, 0.0
    %1846 = vadd.xlane.f32.xlu0 %v1845
    %v1847 = vpop.xlane.xlu0 %1846
    %v1848 = vrcp.pop %v1844
    %v1849 = vrcp.pop %v1847
    %v1850 = vmul.f32 %v1839, %v1848
    %v1851 = vmul.f32 %v1841, %v1849
    %1852 = vrot.lane.b32.xlu0 %v1584, 48
    %v1853 = vpop.permute.xlu0 %1852
    %1854 = vrot.lane.b32.xlu0 %v1587, 48
    %v1855 = vpop.permute.xlu0 %1854
    %v1859 = vsel %vm203, %v1850, 0
    %v1862 = vsel %vm203, %v1851, 0
    %1864 = vmatpush.msra.mxu0 0.0
    %1865 = vmatpush.msra.mxu0 0.0
    %1866 = vmatpush.msra.mxu0 0.0
    %1867 = vmatpush.msra.mxu0 0.0
    %1868 = vmatpush.msra.mxu0 0.0
    %1869 = vmatpush.msra.mxu0 0.0
    %1870 = vmatpush.msra.mxu0 0.0
    %1871 = vmatpush.msra.mxu0 0.0
    %1872 = vmatpush.msra.mxu0 0.0
    %1873 = vmatpush.msra.mxu0 0.0
    %1874 = vmatpush.msra.mxu0 0.0
    %1875 = vmatpush.msra.mxu0 0.0
    %1876 = vmatpush.msra.mxu0 0.0
    %1877 = vmatpush.msra.mxu0 0.0
    %1878 = vmatpush.msra.mxu0 %v1855
    %1879 = vmatpush.msra.mxu0 %v1853
    %1880 = vmatmul.f32.gmra.mxu0 %v1859
    %v1881 = vpop.f32.mrf.mxu0
    %v1882 = vadd.f32 0.0, %v1881
    %1883 = vmatmul.f32.gmra.mxu0 %v1862
    %v1884 = vpop.f32.mrf.mxu0
    %v1885 = vadd.f32 0.0, %v1884
    %1886 = vdwg.mxu0
    %1887 = vrot.lane.b32.xlu0 %v1584, 104
    %v1888 = vpop.permute.xlu0 %1887
    %1889 = vrot.lane.b32.xlu0 %v1587, 104
    %v1890 = vpop.permute.xlu0 %1889
    %1891 = vrot.lane.b32.xlu0 %v1584, 72
    %v1892 = vpop.permute.xlu0 %1891
    %1893 = vrot.lane.b32.xlu0 %v1587, 72
    %v1894 = vpop.permute.xlu0 %1893
    %v1895 = vsel %vm167, %v1888, 0
    %v1897 = vsel %vm167, %v1890, 0
    %v1899 = vsel %vm167, %v1892, 0
    %v1901 = vsel %vm167, %v1894, 0
    %1903 = vmatpush.xpose.msra.mxu0 0.0
    %1904 = vmatpush.xpose.msra.mxu0 0.0
    %1905 = vmatpush.xpose.msra.mxu0 0.0
    %1906 = vmatpush.xpose.msra.mxu0 0.0
    %1907 = vmatpush.xpose.msra.mxu0 0.0
    %1908 = vmatpush.xpose.msra.mxu0 0.0
    %1909 = vmatpush.xpose.msra.mxu0 0.0
    %1910 = vmatpush.xpose.msra.mxu0 0.0
    %1911 = vmatpush.xpose.msra.mxu0 0.0
    %1912 = vmatpush.xpose.msra.mxu0 0.0
    %1913 = vmatpush.xpose.msra.mxu0 0.0
    %1914 = vmatpush.xpose.msra.mxu0 0.0
    %1915 = vmatpush.xpose.msra.mxu0 0.0
    %1916 = vmatpush.xpose.msra.mxu0 0.0
    %1917 = vmatpush.xpose.msra.mxu0 %v1901
    %1918 = vmatpush.xpose.msra.mxu0 %v1899
    %1919 = vmatmul.f32.gmra.mxu0 %v1895
    %v1920 = vpop.f32.mrf.mxu0
    %v1921 = vadd.f32 0.0, %v1920
    %1922 = vmatmul.f32.gmra.mxu0 %v1897
    %v1923 = vpop.f32.mrf.mxu0
    %v1924 = vadd.f32 0.0, %v1923
    %1925 = vdwg.mxu0
    %v1926 = vmul.f32 %v1921, 0.35355338
    %v1927 = vmul.f32 %v1924, 0.35355338
    %v1928 = vadd.f32 %v1926, %v1550
    %v1929 = vadd.f32 %v1927, %v1551
    %v1930 = vsel %vm203, %v1928, -inf
    %1931 = vmax.xlane.f32.xlu0 %v1930
    %v1932 = vpop.xlane.xlu0 %1931
    %v1933 = vsel %vm203, %v1929, -inf
    %1934 = vmax.xlane.f32.xlu0 %v1933
    %v1935 = vpop.xlane.xlu0 %1934
    %v1936 = vsub.f32 %v1928, %v1932
    %v1937 = vsub.f32 %v1929, %v1935
    %v1938 = vmul.f32 %v1936, 1.442695
    %v1939 = vpow.pop %v1938
    %v1940 = vmul.f32 %v1937, 1.442695
    %v1941 = vpow.pop %v1940
    %v1942 = vsel %vm203, %v1939, 0.0
    %1943 = vadd.xlane.f32.xlu0 %v1942
    %v1944 = vpop.xlane.xlu0 %1943
    %v1945 = vsel %vm203, %v1941, 0.0
    %1946 = vadd.xlane.f32.xlu0 %v1945
    %v1947 = vpop.xlane.xlu0 %1946
    %v1948 = vrcp.pop %v1944
    %v1949 = vrcp.pop %v1947
    %v1950 = vmul.f32 %v1939, %v1948
    %v1951 = vmul.f32 %v1941, %v1949
    %1952 = vrot.lane.b32.xlu0 %v1584, 40
    %v1953 = vpop.permute.xlu0 %1952
    %1954 = vrot.lane.b32.xlu0 %v1587, 40
    %v1955 = vpop.permute.xlu0 %1954
    %v1959 = vsel %vm203, %v1950, 0
    %v1962 = vsel %vm203, %v1951, 0
    %1964 = vmatpush.msra.mxu0 0.0
    %1965 = vmatpush.msra.mxu0 0.0
    %1966 = vmatpush.msra.mxu0 0.0
    %1967 = vmatpush.msra.mxu0 0.0
    %1968 = vmatpush.msra.mxu0 0.0
    %1969 = vmatpush.msra.mxu0 0.0
    %1970 = vmatpush.msra.mxu0 0.0
    %1971 = vmatpush.msra.mxu0 0.0
    %1972 = vmatpush.msra.mxu0 0.0
    %1973 = vmatpush.msra.mxu0 0.0
    %1974 = vmatpush.msra.mxu0 0.0
    %1975 = vmatpush.msra.mxu0 0.0
    %1976 = vmatpush.msra.mxu0 0.0
    %1977 = vmatpush.msra.mxu0 0.0
    %1978 = vmatpush.msra.mxu0 %v1955
    %1979 = vmatpush.msra.mxu0 %v1953
    %1980 = vmatmul.f32.gmra.mxu0 %v1959
    %v1981 = vpop.f32.mrf.mxu0
    %v1982 = vadd.f32 0.0, %v1981
    %1983 = vmatmul.f32.gmra.mxu0 %v1962
    %v1984 = vpop.f32.mrf.mxu0
    %v1985 = vadd.f32 0.0, %v1984
    %1986 = vdwg.mxu0
    %1989 = vrot.lane.b32.xlu0 %v1782, 8
    %v1990 = vpop.permute.xlu0 %1989
    %1991 = vrot.lane.b32.xlu0 %v1785, 8
    %v1992 = vpop.permute.xlu0 %1991
    %1997 = vrot.lane.b32.xlu0 %v1882, 16
    %v1998 = vpop.permute.xlu0 %1997
    %1999 = vrot.lane.b32.xlu0 %v1885, 16
    %v2000 = vpop.permute.xlu0 %1999
    %2005 = vrot.lane.b32.xlu0 %v1982, 24
    %v2006 = vpop.permute.xlu0 %2005
    %2007 = vrot.lane.b32.xlu0 %v1985, 24
    %v2008 = vpop.permute.xlu0 %2007
    %v2011 = vsel %vm167, %v1682, %v1990
    %v2012 = vsel %vm167, %v1685, %v1992
    %v2013 = vsel %vm203, %v2011, %v1998
    %v2014 = vsel %vm203, %v2012, %v2000
    %v2015 = vsel %vm589, %v2013, %v2006
    %v2016 = vsel %vm589, %v2014, %v2008
    %v2017 = vld [vmem:[#allocation2 + $0x38] sm:$0xff]
    %v2018 = vld [vmem:[#allocation2 + $0xc8] sm:$0xff]
    %v2019 = vld [vmem:[#allocation2 + $0x158] sm:$0xff]
    %v2020 = vld [vmem:[#allocation2 + $0x1e8] sm:$0xff]
    %v2021 = vld [vmem:[%s9 + $0x11] sm:$0x1]
    %v2022 = vperm.slane %v2021, 0
    %v2024 = vsel %vm88, %v2015, 0
    %v2027 = vsel %vm88, %v2016, 0
    %2029 = vmatpush.msra.mxu0 0.0
    %2030 = vmatpush.msra.mxu0 0.0
    %2031 = vmatpush.msra.mxu0 0.0
    %2032 = vmatpush.msra.mxu0 0.0
    %2033 = vmatpush.msra.mxu0 0.0
    %2034 = vmatpush.msra.mxu0 0.0
    %2035 = vmatpush.msra.mxu0 0.0
    %2036 = vmatpush.msra.mxu0 0.0
    %2037 = vmatpush.msra.mxu0 0.0
    %2038 = vmatpush.msra.mxu0 0.0
    %2039 = vmatpush.msra.mxu0 0.0
    %2040 = vmatpush.msra.mxu0 0.0
    %2041 = vmatpush.msra.mxu0 %v2020
    %2042 = vmatpush.msra.mxu0 %v2019
    %2043 = vmatpush.msra.mxu0 %v2018
    %2044 = vmatpush.msra.mxu0 %v2017
    %2045 = vmatmul.f32.gmra.mxu0 %v2024
    %v2046 = vpop.f32.mrf.mxu0
    %v2047 = vadd.f32 %v2022, %v2046
    %2048 = vmatmul.f32.gmra.mxu0 %v2027
    %v2049 = vpop.f32.mrf.mxu0
    %v2050 = vadd.f32 %v2022, %v2049
    %2051 = vdwg.mxu0
    %v2052 = vadd.f32 %v2047, %v1548
    %v2053 = vadd.f32 %v2050, %v1549
    %v2054 = vld [vmem:[%s9 + $0x16] sm:$0x1]
    %v2055 = vld [vmem:[%s9 + $0x17] sm:$0x1]
    %v2056 = vsel %vm88, %v2052, 0.0
    %2057 = vadd.xlane.f32.xlu0 %v2056
    %v2058 = vpop.xlane.xlu0 %2057
    %v2059 = vsel %vm88, %v2053, 0.0
    %2060 = vadd.xlane.f32.xlu0 %v2059
    %v2061 = vpop.xlane.xlu0 %2060
    %v2062 = vmul.f32 %v2058, %v643
    %v2063 = vmul.f32 %v2061, %v643
    %v2064 = vsub.f32 %v2052, %v2062
    %v2065 = vsub.f32 %v2053, %v2063
    %v2066 = vmul.f32 %v2064, %v2064
    %v2067 = vmul.f32 %v2065, %v2065
    %v2068 = vsel %vm88, %v2066, 0.0
    %2069 = vadd.xlane.f32.xlu0 %v2068
    %v2070 = vpop.xlane.xlu0 %2069
    %v2071 = vsel %vm88, %v2067, 0.0
    %2072 = vadd.xlane.f32.xlu0 %v2071
    %v2073 = vpop.xlane.xlu0 %2072
    %v2074 = vmul.f32 %v2070, %v643
    %v2075 = vmul.f32 %v2073, %v643
    %v2076 = vadd.f32 %v2074, 1e-05
    %v2077 = vadd.f32 %v2075, 1e-05
    %v2078 = vrsqrt.pop %v2076
    %v2079 = vmul.f32 %v2078, %v2076
    %v2080 = vmul.f32 %v2079, %v2078
    %v2081 = vmul.f32 0.5, %v2080
    %v2082 = vsub.f32 1.5, %v2081
    %v2083 = vmul.f32 %v2078, %v2082
    %vm2084 = vweird.f32 %v2076
    %vm2085 = vweird.f32 %v2078
    %vm2086 = vmor %vm2084, %vm2085
    %v2087 = vsel %vm2086, %v2078, %v2083
    %v2088 = vrsqrt.pop %v2077
    %v2089 = vmul.f32 %v2088, %v2077
    %v2090 = vmul.f32 %v2089, %v2088
    %v2091 = vmul.f32 0.5, %v2090
    %v2092 = vsub.f32 1.5, %v2091
    %v2093 = vmul.f32 %v2088, %v2092
    %vm2094 = vweird.f32 %v2077
    %vm2095 = vweird.f32 %v2088
    %vm2096 = vmor %vm2094, %vm2095
    %v2097 = vsel %vm2096, %v2088, %v2093
    %v2098 = vmul.f32 %v2064, %v2087
    %v2099 = vmul.f32 %v2065, %v2097
    %v2100 = vperm.slane %v2054, 0
    %v2101 = vmul.f32 %v2098, %v2100
    %v2102 = vmul.f32 %v2099, %v2100
    %v2103 = vperm.slane %v2055, 0
    %v2104 = vadd.f32 %v2101, %v2103
    %v2105 = vadd.f32 %v2102, %v2103
    %v2106 = vld [vmem:[#allocation2 + $0x40] sm:$0xff]
    %v2107 = vld [vmem:[#allocation2 + $0xd0] sm:$0xff]
    %v2108 = vld [vmem:[#allocation2 + $0x160] sm:$0xff]
    %v2109 = vld [vmem:[#allocation2 + $0x1f0] sm:$0xff]
    %v2110 = vld [vmem:[%s9 + $0x12] sm:$0x1]
    %v2111 = vperm.slane %v2110, 0
    %v2113 = vsel %vm88, %v2104, 0
    %v2116 = vsel %vm88, %v2105, 0
    %2118 = vmatpush.msra.mxu0 0.0
    %2119 = vmatpush.msra.mxu0 0.0
    %2120 = vmatpush.msra.mxu0 0.0
    %2121 = vmatpush.msra.mxu0 0.0
    %2122 = vmatpush.msra.mxu0 0.0
    %2123 = vmatpush.msra.mxu0 0.0
    %2124 = vmatpush.msra.mxu0 0.0
    %2125 = vmatpush.msra.mxu0 0.0
    %2126 = vmatpush.msra.mxu0 0.0
    %2127 = vmatpush.msra.mxu0 0.0
    %2128 = vmatpush.msra.mxu0 0.0
    %2129 = vmatpush.msra.mxu0 0.0
    %2130 = vmatpush.msra.mxu0 %v2109
    %2131 = vmatpush.msra.mxu0 %v2108
    %2132 = vmatpush.msra.mxu0 %v2107
    %2133 = vmatpush.msra.mxu0 %v2106
    %2134 = vmatmul.f32.gmra.mxu0 %v2113
    %v2135 = vpop.f32.mrf.mxu0
    %v2136 = vadd.f32 %v2111, %v2135
    %2137 = vmatmul.f32.gmra.mxu0 %v2116
    %v2138 = vpop.f32.mrf.mxu0
    %v2139 = vadd.f32 %v2111, %v2138
    %2140 = vdwg.mxu0
    %2145 = vrot.lane.b32.xlu0 %v2106, 96
    %v2146 = vpop.permute.xlu0 %2145
    %2147 = vrot.lane.b32.xlu0 %v2107, 96
    %v2148 = vpop.permute.xlu0 %2147
    %2149 = vrot.lane.b32.xlu0 %v2108, 96
    %v2150 = vpop.permute.xlu0 %2149
    %2151 = vrot.lane.b32.xlu0 %v2109, 96
    %v2152 = vpop.permute.xlu0 %2151
    %2158 = vrot.lane.b32.xlu0 %v2111, 96
    %v2159 = vpop.permute.xlu0 %2158
    %v2162 = vsel %vm88, %v1499, 0
    %v2165 = vsel %vm88, %v1500, 0
    %2167 = vmatpush.msra.mxu0 0.0
    %2168 = vmatpush.msra.mxu0 0.0
    %2169 = vmatpush.msra.mxu0 0.0
    %2170 = vmatpush.msra.mxu0 0.0
    %2171 = vmatpush.msra.mxu0 0.0
    %2172 = vmatpush.msra.mxu0 0.0
    %2173 = vmatpush.msra.mxu0 0.0
    %2174 = vmatpush.msra.mxu0 0.0
    %2175 = vmatpush.msra.mxu0 0.0
    %2176 = vmatpush.msra.mxu0 0.0
    %2177 = vmatpush.msra.mxu0 0.0
    %2178 = vmatpush.msra.mxu0 0.0
    %2179 = vmatpush.msra.mxu0 %v2152
    %2180 = vmatpush.msra.mxu0 %v2150
    %2181 = vmatpush.msra.mxu0 %v2148
    %2182 = vmatpush.msra.mxu0 %v2146
    %2183 = vmatmul.f32.gmra.mxu0 %v2162
    %v2184 = vpop.f32.mrf.mxu0
    %v2185 = vadd.f32 %v2159, %v2184
    %2186 = vmatmul.f32.gmra.mxu0 %v2165
    %v2187 = vpop.f32.mrf.mxu0
    %v2188 = vadd.f32 %v2159, %v2187
    %2189 = vdwg.mxu0
    %v2191 = vsel %vm167, %v2136, 0
    %v2194 = vsel %vm167, %v2139, 0
    %v2197 = vsel %vm167, %v2185, 0
    %v2200 = vsel %vm167, %v2188, 0
    %2202 = vmatpush.xpose.msra.mxu0 0.0
    %2203 = vmatpush.xpose.msra.mxu0 0.0
    %2204 = vmatpush.xpose.msra.mxu0 0.0
    %2205 = vmatpush.xpose.msra.mxu0 0.0
    %2206 = vmatpush.xpose.msra.mxu0 0.0
    %2207 = vmatpush.xpose.msra.mxu0 0.0
    %2208 = vmatpush.xpose.msra.mxu0 0.0
    %2209 = vmatpush.xpose.msra.mxu0 0.0
    %2210 = vmatpush.xpose.msra.mxu0 0.0
    %2211 = vmatpush.xpose.msra.mxu0 0.0
    %2212 = vmatpush.xpose.msra.mxu0 0.0
    %2213 = vmatpush.xpose.msra.mxu0 0.0
    %2214 = vmatpush.xpose.msra.mxu0 0.0
    %2215 = vmatpush.xpose.msra.mxu0 0.0
    %2216 = vmatpush.xpose.msra.mxu0 %v2200
    %2217 = vmatpush.xpose.msra.mxu0 %v2197
    %2218 = vmatmul.f32.gmra.mxu0 %v2191
    %v2219 = vpop.f32.mrf.mxu0
    %v2220 = vadd.f32 0.0, %v2219
    %2221 = vmatmul.f32.gmra.mxu0 %v2194
    %v2222 = vpop.f32.mrf.mxu0
    %v2223 = vadd.f32 0.0, %v2222
    %2224 = vdwg.mxu0
    %v2225 = vmul.f32 %v2220, 0.35355338
    %v2226 = vmul.f32 %v2223, 0.35355338
    %v2227 = vadd.f32 %v2225, %v1552
    %v2228 = vadd.f32 %v2226, %v1553
    %v2229 = vsel %vm203, %v2227, -inf
    %2230 = vmax.xlane.f32.xlu0 %v2229
    %v2231 = vpop.xlane.xlu0 %2230
    %v2232 = vsel %vm203, %v2228, -inf
    %2233 = vmax.xlane.f32.xlu0 %v2232
    %v2234 = vpop.xlane.xlu0 %2233
    %v2235 = vsub.f32 %v2227, %v2231
    %v2236 = vsub.f32 %v2228, %v2234
    %v2237 = vmul.f32 %v2235, 1.442695
    %v2238 = vpow.pop %v2237
    %v2239 = vmul.f32 %v2236, 1.442695
    %v2240 = vpow.pop %v2239
    %v2241 = vsel %vm203, %v2238, 0.0
    %2242 = vadd.xlane.f32.xlu0 %v2241
    %v2243 = vpop.xlane.xlu0 %2242
    %v2244 = vsel %vm203, %v2240, 0.0
    %2245 = vadd.xlane.f32.xlu0 %v2244
    %v2246 = vpop.xlane.xlu0 %2245
    %v2247 = vrcp.pop %v2243
    %v2248 = vrcp.pop %v2246
    %v2249 = vmul.f32 %v2238, %v2247
    %v2250 = vmul.f32 %v2240, %v2248
    %2251 = vrot.lane.b32.xlu0 %v2185, 96
    %v2252 = vpop.permute.xlu0 %2251
    %2253 = vrot.lane.b32.xlu0 %v2188, 96
    %v2254 = vpop.permute.xlu0 %2253
    %v2258 = vsel %vm203, %v2249, 0
    %v2261 = vsel %vm203, %v2250, 0
    %2263 = vmatpush.msra.mxu0 0.0
    %2264 = vmatpush.msra.mxu0 0.0
    %2265 = vmatpush.msra.mxu0 0.0
    %2266 = vmatpush.msra.mxu0 0.0
    %2267 = vmatpush.msra.mxu0 0.0
    %2268 = vmatpush.msra.mxu0 0.0
    %2269 = vmatpush.msra.mxu0 0.0
    %2270 = vmatpush.msra.mxu0 0.0
    %2271 = vmatpush.msra.mxu0 0.0
    %2272 = vmatpush.msra.mxu0 0.0
    %2273 = vmatpush.msra.mxu0 0.0
    %2274 = vmatpush.msra.mxu0 0.0
    %2275 = vmatpush.msra.mxu0 0.0
    %2276 = vmatpush.msra.mxu0 0.0
    %2277 = vmatpush.msra.mxu0 %v2254
    %2278 = vmatpush.msra.mxu0 %v2252
    %2279 = vmatmul.f32.gmra.mxu0 %v2258
    %v2280 = vpop.f32.mrf.mxu0
    %v2281 = vadd.f32 0.0, %v2280
    %2282 = vmatmul.f32.gmra.mxu0 %v2261
    %v2283 = vpop.f32.mrf.mxu0
    %v2284 = vadd.f32 0.0, %v2283
    %2285 = vdwg.mxu0
    %2286 = vrot.lane.b32.xlu0 %v2136, 120
    %v2287 = vpop.permute.xlu0 %2286
    %2288 = vrot.lane.b32.xlu0 %v2139, 120
    %v2289 = vpop.permute.xlu0 %2288
    %2290 = vrot.lane.b32.xlu0 %v2185, 120
    %v2291 = vpop.permute.xlu0 %2290
    %2292 = vrot.lane.b32.xlu0 %v2188, 120
    %v2293 = vpop.permute.xlu0 %2292
    %v2294 = vsel %vm167, %v2287, 0
    %v2296 = vsel %vm167, %v2289, 0
    %v2298 = vsel %vm167, %v2291, 0
    %v2300 = vsel %vm167, %v2293, 0
    %2302 = vmatpush.xpose.msra.mxu0 0.0
    %2303 = vmatpush.xpose.msra.mxu0 0.0
    %2304 = vmatpush.xpose.msra.mxu0 0.0
    %2305 = vmatpush.xpose.msra.mxu0 0.0
    %2306 = vmatpush.xpose.msra.mxu0 0.0
    %2307 = vmatpush.xpose.msra.mxu0 0.0
    %2308 = vmatpush.xpose.msra.mxu0 0.0
    %2309 = vmatpush.xpose.msra.mxu0 0.0
    %2310 = vmatpush.xpose.msra.mxu0 0.0
    %2311 = vmatpush.xpose.msra.mxu0 0.0
    %2312 = vmatpush.xpose.msra.mxu0 0.0
    %2313 = vmatpush.xpose.msra.mxu0 0.0
    %2314 = vmatpush.xpose.msra.mxu0 0.0
    %2315 = vmatpush.xpose.msra.mxu0 0.0
    %2316 = vmatpush.xpose.msra.mxu0 %v2300
    %2317 = vmatpush.xpose.msra.mxu0 %v2298
    %2318 = vmatmul.f32.gmra.mxu0 %v2294
    %v2319 = vpop.f32.mrf.mxu0
    %v2320 = vadd.f32 0.0, %v2319
    %2321 = vmatmul.f32.gmra.mxu0 %v2296
    %v2322 = vpop.f32.mrf.mxu0
    %v2323 = vadd.f32 0.0, %v2322
    %2324 = vdwg.mxu0
    %v2325 = vmul.f32 %v2320, 0.35355338
    %v2326 = vmul.f32 %v2323, 0.35355338
    %v2327 = vadd.f32 %v2325, %v1552
    %v2328 = vadd.f32 %v2326, %v1553
    %v2329 = vsel %vm203, %v2327, -inf
    %2330 = vmax.xlane.f32.xlu0 %v2329
    %v2331 = vpop.xlane.xlu0 %2330
    %v2332 = vsel %vm203, %v2328, -inf
    %2333 = vmax.xlane.f32.xlu0 %v2332
    %v2334 = vpop.xlane.xlu0 %2333
    %v2335 = vsub.f32 %v2327, %v2331
    %v2336 = vsub.f32 %v2328, %v2334
    %v2337 = vmul.f32 %v2335, 1.442695
    %v2338 = vpow.pop %v2337
    %v2339 = vmul.f32 %v2336, 1.442695
    %v2340 = vpow.pop %v2339
    %v2341 = vsel %vm203, %v2338, 0.0
    %2342 = vadd.xlane.f32.xlu0 %v2341
    %v2343 = vpop.xlane.xlu0 %2342
    %v2344 = vsel %vm203, %v2340, 0.0
    %2345 = vadd.xlane.f32.xlu0 %v2344
    %v2346 = vpop.xlane.xlu0 %2345
    %v2347 = vrcp.pop %v2343
    %v2348 = vrcp.pop %v2346
    %v2349 = vmul.f32 %v2338, %v2347
    %v2350 = vmul.f32 %v2340, %v2348
    %2351 = vrot.lane.b32.xlu0 %v2185, 88
    %v2352 = vpop.permute.xlu0 %2351
    %2353 = vrot.lane.b32.xlu0 %v2188, 88
    %v2354 = vpop.permute.xlu0 %2353
    %v2358 = vsel %vm203, %v2349, 0
    %v2361 = vsel %vm203, %v2350, 0
    %2363 = vmatpush.msra.mxu0 0.0
    %2364 = vmatpush.msra.mxu0 0.0
    %2365 = vmatpush.msra.mxu0 0.0
    %2366 = vmatpush.msra.mxu0 0.0
    %2367 = vmatpush.msra.mxu0 0.0
    %2368 = vmatpush.msra.mxu0 0.0
    %2369 = vmatpush.msra.mxu0 0.0
    %2370 = vmatpush.msra.mxu0 0.0
    %2371 = vmatpush.msra.mxu0 0.0
    %2372 = vmatpush.msra.mxu0 0.0
    %2373 = vmatpush.msra.mxu0 0.0
    %2374 = vmatpush.msra.mxu0 0.0
    %2375 = vmatpush.msra.mxu0 0.0
    %2376 = vmatpush.msra.mxu0 0.0
    %2377 = vmatpush.msra.mxu0 %v2354
    %2378 = vmatpush.msra.mxu0 %v2352
    %2379 = vmatmul.f32.gmra.mxu0 %v2358
    %v2380 = vpop.f32.mrf.mxu0
    %v2381 = vadd.f32 0.0, %v2380
    %2382 = vmatmul.f32.gmra.mxu0 %v2361
    %v2383 = vpop.f32.mrf.mxu0
    %v2384 = vadd.f32 0.0, %v2383
    %2385 = vdwg.mxu0
    %2386 = vrot.lane.b32.xlu0 %v2136, 112
    %v2387 = vpop.permute.xlu0 %2386
    %2388 = vrot.lane.b32.xlu0 %v2139, 112
    %v2389 = vpop.permute.xlu0 %2388
    %2390 = vrot.lane.b32.xlu0 %v2185, 112
    %v2391 = vpop.permute.xlu0 %2390
    %2392 = vrot.lane.b32.xlu0 %v2188, 112
    %v2393 = vpop.permute.xlu0 %2392
    %v2394 = vsel %vm167, %v2387, 0
    %v2396 = vsel %vm167, %v2389, 0
    %v2398 = vsel %vm167, %v2391, 0
    %v2400 = vsel %vm167, %v2393, 0
    %2402 = vmatpush.xpose.msra.mxu0 0.0
    %2403 = vmatpush.xpose.msra.mxu0 0.0
    %2404 = vmatpush.xpose.msra.mxu0 0.0
    %2405 = vmatpush.xpose.msra.mxu0 0.0
    %2406 = vmatpush.xpose.msra.mxu0 0.0
    %2407 = vmatpush.xpose.msra.mxu0 0.0
    %2408 = vmatpush.xpose.msra.mxu0 0.0
    %2409 = vmatpush.xpose.msra.mxu0 0.0
    %2410 = vmatpush.xpose.msra.mxu0 0.0
    %2411 = vmatpush.xpose.msra.mxu0 0.0
    %2412 = vmatpush.xpose.msra.mxu0 0.0
    %2413 = vmatpush.xpose.msra.mxu0 0.0
    %2414 = vmatpush.xpose.msra.mxu0 0.0
    %2415 = vmatpush.xpose.msra.mxu0 0.0
    %2416 = vmatpush.xpose.msra.mxu0 %v2400
    %2417 = vmatpush.xpose.msra.mxu0 %v2398
    %2418 = vmatmul.f32.gmra.mxu0 %v2394
    %v2419 = vpop.f32.mrf.mxu0
    %v2420 = vadd.f32 0.0, %v2419
    %2421 = vmatmul.f32.gmra.mxu0 %v2396
    %v2422 = vpop.f32.mrf.mxu0
    %v2423 = vadd.f32 0.0, %v2422
    %2424 = vdwg.mxu0
    %v2425 = vmul.f32 %v2420, 0.35355338
    %v2426 = vmul.f32 %v2423, 0.35355338
    %v2427 = vadd.f32 %v2425, %v1552
    %v2428 = vadd.f32 %v2426, %v1553
    %v2429 = vsel %vm203, %v2427, -inf
    %2430 = vmax.xlane.f32.xlu0 %v2429
    %v2431 = vpop.xlane.xlu0 %2430
    %v2432 = vsel %vm203, %v2428, -inf
    %2433 = vmax.xlane.f32.xlu0 %v2432
    %v2434 = vpop.xlane.xlu0 %2433
    %v2435 = vsub.f32 %v2427, %v2431
    %v2436 = vsub.f32 %v2428, %v2434
    %v2437 = vmul.f32 %v2435, 1.442695
    %v2438 = vpow.pop %v2437
    %v2439 = vmul.f32 %v2436, 1.442695
    %v2440 = vpow.pop %v2439
    %v2441 = vsel %vm203, %v2438, 0.0
    %2442 = vadd.xlane.f32.xlu0 %v2441
    %v2443 = vpop.xlane.xlu0 %2442
    %v2444 = vsel %vm203, %v2440, 0.0
    %2445 = vadd.xlane.f32.xlu0 %v2444
    %v2446 = vpop.xlane.xlu0 %2445
    %v2447 = vrcp.pop %v2443
    %v2448 = vrcp.pop %v2446
    %v2449 = vmul.f32 %v2438, %v2447
    %v2450 = vmul.f32 %v2440, %v2448
    %2451 = vrot.lane.b32.xlu0 %v2185, 80
    %v2452 = vpop.permute.xlu0 %2451
    %2453 = vrot.lane.b32.xlu0 %v2188, 80
    %v2454 = vpop.permute.xlu0 %2453
    %v2458 = vsel %vm203, %v2449, 0
    %v2461 = vsel %vm203, %v2450, 0
    %2463 = vmatpush.msra.mxu0 0.0
    %2464 = vmatpush.msra.mxu0 0.0
    %2465 = vmatpush.msra.mxu0 0.0
    %2466 = vmatpush.msra.mxu0 0.0
    %2467 = vmatpush.msra.mxu0 0.0
    %2468 = vmatpush.msra.mxu0 0.0
    %2469 = vmatpush.msra.mxu0 0.0
    %2470 = vmatpush.msra.mxu0 0.0
    %2471 = vmatpush.msra.mxu0 0.0
    %2472 = vmatpush.msra.mxu0 0.0
    %2473 = vmatpush.msra.mxu0 0.0
    %2474 = vmatpush.msra.mxu0 0.0
    %2475 = vmatpush.msra.mxu0 0.0
    %2476 = vmatpush.msra.mxu0 0.0
    %2477 = vmatpush.msra.mxu0 %v2454
    %2478 = vmatpush.msra.mxu0 %v2452
    %2479 = vmatmul.f32.gmra.mxu0 %v2458
    %v2480 = vpop.f32.mrf.mxu0
    %v2481 = vadd.f32 0.0, %v2480
    %2482 = vmatmul.f32.gmra.mxu0 %v2461
    %v2483 = vpop.f32.mrf.mxu0
    %v2484 = vadd.f32 0.0, %v2483
    %2485 = vdwg.mxu0
    %2486 = vrot.lane.b32.xlu0 %v2136, 104
    %v2487 = vpop.permute.xlu0 %2486
    %2488 = vrot.lane.b32.xlu0 %v2139, 104
    %v2489 = vpop.permute.xlu0 %2488
    %2490 = vrot.lane.b32.xlu0 %v2185, 104
    %v2491 = vpop.permute.xlu0 %2490
    %2492 = vrot.lane.b32.xlu0 %v2188, 104
    %v2493 = vpop.permute.xlu0 %2492
    %v2494 = vsel %vm167, %v2487, 0
    %v2496 = vsel %vm167, %v2489, 0
    %v2498 = vsel %vm167, %v2491, 0
    %v2500 = vsel %vm167, %v2493, 0
    %2502 = vmatpush.xpose.msra.mxu0 0.0
    %2503 = vmatpush.xpose.msra.mxu0 0.0
    %2504 = vmatpush.xpose.msra.mxu0 0.0
    %2505 = vmatpush.xpose.msra.mxu0 0.0
    %2506 = vmatpush.xpose.msra.mxu0 0.0
    %2507 = vmatpush.xpose.msra.mxu0 0.0
    %2508 = vmatpush.xpose.msra.mxu0 0.0
    %2509 = vmatpush.xpose.msra.mxu0 0.0
    %2510 = vmatpush.xpose.msra.mxu0 0.0
    %2511 = vmatpush.xpose.msra.mxu0 0.0
    %2512 = vmatpush.xpose.msra.mxu0 0.0
    %2513 = vmatpush.xpose.msra.mxu0 0.0
    %2514 = vmatpush.xpose.msra.mxu0 0.0
    %2515 = vmatpush.xpose.msra.mxu0 0.0
    %2516 = vmatpush.xpose.msra.mxu0 %v2500
    %2517 = vmatpush.xpose.msra.mxu0 %v2498
    %2518 = vmatmul.f32.gmra.mxu0 %v2494
    %v2519 = vpop.f32.mrf.mxu0
    %v2520 = vadd.f32 0.0, %v2519
    %2521 = vmatmul.f32.gmra.mxu0 %v2496
    %v2522 = vpop.f32.mrf.mxu0
    %v2523 = vadd.f32 0.0, %v2522
    %2524 = vdwg.mxu0
    %v2525 = vmul.f32 %v2520, 0.35355338
    %v2526 = vmul.f32 %v2523, 0.35355338
    %v2527 = vadd.f32 %v2525, %v1552
    %v2528 = vadd.f32 %v2526, %v1553
    %v2529 = vsel %vm203, %v2527, -inf
    %2530 = vmax.xlane.f32.xlu0 %v2529
    %v2531 = vpop.xlane.xlu0 %2530
    %v2532 = vsel %vm203, %v2528, -inf
    %2533 = vmax.xlane.f32.xlu0 %v2532
    %v2534 = vpop.xlane.xlu0 %2533
    %v2535 = vsub.f32 %v2527, %v2531
    %v2536 = vsub.f32 %v2528, %v2534
    %v2537 = vmul.f32 %v2535, 1.442695
    %v2538 = vpow.pop %v2537
    %v2539 = vmul.f32 %v2536, 1.442695
    %v2540 = vpow.pop %v2539
    %v2541 = vsel %vm203, %v2538, 0.0
    %2542 = vadd.xlane.f32.xlu0 %v2541
    %v2543 = vpop.xlane.xlu0 %2542
    %v2544 = vsel %vm203, %v2540, 0.0
    %2545 = vadd.xlane.f32.xlu0 %v2544
    %v2546 = vpop.xlane.xlu0 %2545
    %v2547 = vrcp.pop %v2543
    %v2548 = vrcp.pop %v2546
    %v2549 = vmul.f32 %v2538, %v2547
    %v2550 = vmul.f32 %v2540, %v2548
    %2551 = vrot.lane.b32.xlu0 %v2185, 72
    %v2552 = vpop.permute.xlu0 %2551
    %2553 = vrot.lane.b32.xlu0 %v2188, 72
    %v2554 = vpop.permute.xlu0 %2553
    %v2558 = vsel %vm203, %v2549, 0
    %v2561 = vsel %vm203, %v2550, 0
    %2563 = vmatpush.msra.mxu0 0.0
    %2564 = vmatpush.msra.mxu0 0.0
    %2565 = vmatpush.msra.mxu0 0.0
    %2566 = vmatpush.msra.mxu0 0.0
    %2567 = vmatpush.msra.mxu0 0.0
    %2568 = vmatpush.msra.mxu0 0.0
    %2569 = vmatpush.msra.mxu0 0.0
    %2570 = vmatpush.msra.mxu0 0.0
    %2571 = vmatpush.msra.mxu0 0.0
    %2572 = vmatpush.msra.mxu0 0.0
    %2573 = vmatpush.msra.mxu0 0.0
    %2574 = vmatpush.msra.mxu0 0.0
    %2575 = vmatpush.msra.mxu0 0.0
    %2576 = vmatpush.msra.mxu0 0.0
    %2577 = vmatpush.msra.mxu0 %v2554
    %2578 = vmatpush.msra.mxu0 %v2552
    %2579 = vmatmul.f32.gmra.mxu0 %v2558
    %v2580 = vpop.f32.mrf.mxu0
    %v2581 = vadd.f32 0.0, %v2580
    %2582 = vmatmul.f32.gmra.mxu0 %v2561
    %v2583 = vpop.f32.mrf.mxu0
    %v2584 = vadd.f32 0.0, %v2583
    %2585 = vdwg.mxu0
    %2588 = vrot.lane.b32.xlu0 %v2381, 8
    %v2589 = vpop.permute.xlu0 %2588
    %2590 = vrot.lane.b32.xlu0 %v2384, 8
    %v2591 = vpop.permute.xlu0 %2590
    %2596 = vrot.lane.b32.xlu0 %v2481, 16
    %v2597 = vpop.permute.xlu0 %2596
    %2598 = vrot.lane.b32.xlu0 %v2484, 16
    %v2599 = vpop.permute.xlu0 %2598
    %2604 = vrot.lane.b32.xlu0 %v2581, 24
    %v2605 = vpop.permute.xlu0 %2604
    %2606 = vrot.lane.b32.xlu0 %v2584, 24
    %v2607 = vpop.permute.xlu0 %2606
    %v2610 = vsel %vm167, %v2281, %v2589
    %v2611 = vsel %vm167, %v2284, %v2591
    %v2612 = vsel %vm203, %v2610, %v2597
    %v2613 = vsel %vm203, %v2611, %v2599
    %v2614 = vsel %vm589, %v2612, %v2605
    %v2615 = vsel %vm589, %v2613, %v2607
    %v2616 = vld [vmem:[#allocation2 + $0x48] sm:$0xff]
    %v2617 = vld [vmem:[#allocation2 + $0xd8] sm:$0xff]
    %v2618 = vld [vmem:[#allocation2 + $0x168] sm:$0xff]
    %v2619 = vld [vmem:[#allocation2 + $0x1f8] sm:$0xff]
    %v2620 = vld [vmem:[%s9 + $0x13] sm:$0x1]
    %v2621 = vperm.slane %v2620, 0
    %v2623 = vsel %vm88, %v2614, 0
    %v2626 = vsel %vm88, %v2615, 0
    %2628 = vmatpush.msra.mxu0 0.0
    %2629 = vmatpush.msra.mxu0 0.0
    %2630 = vmatpush.msra.mxu0 0.0
    %2631 = vmatpush.msra.mxu0 0.0
    %2632 = vmatpush.msra.mxu0 0.0
    %2633 = vmatpush.msra.mxu0 0.0
    %2634 = vmatpush.msra.mxu0 0.0
    %2635 = vmatpush.msra.mxu0 0.0
    %2636 = vmatpush.msra.mxu0 0.0
    %2637 = vmatpush.msra.mxu0 0.0
    %2638 = vmatpush.msra.mxu0 0.0
    %2639 = vmatpush.msra.mxu0 0.0
    %2640 = vmatpush.msra.mxu0 %v2619
    %2641 = vmatpush.msra.mxu0 %v2618
    %2642 = vmatpush.msra.mxu0 %v2617
    %2643 = vmatpush.msra.mxu0 %v2616
    %2644 = vmatmul.f32.gmra.mxu0 %v2623
    %v2645 = vpop.f32.mrf.mxu0
    %v2646 = vadd.f32 %v2621, %v2645
    %2647 = vmatmul.f32.gmra.mxu0 %v2626
    %v2648 = vpop.f32.mrf.mxu0
    %v2649 = vadd.f32 %v2621, %v2648
    %2650 = vdwg.mxu0
    %v2651 = vadd.f32 %v2646, %v2104
    %v2652 = vadd.f32 %v2649, %v2105
    %v2653 = vld [vmem:[%s9 + $0x18] sm:$0x1]
    %v2654 = vld [vmem:[%s9 + $0x19] sm:$0x1]
    %v2655 = vsel %vm88, %v2651, 0.0
    %2656 = vadd.xlane.f32.xlu0 %v2655
    %v2657 = vpop.xlane.xlu0 %2656
    %v2658 = vsel %vm88, %v2652, 0.0
    %2659 = vadd.xlane.f32.xlu0 %v2658
    %v2660 = vpop.xlane.xlu0 %2659
    %v2661 = vmul.f32 %v2657, %v643
    %v2662 = vmul.f32 %v2660, %v643
    %v2663 = vsub.f32 %v2651, %v2661
    %v2664 = vsub.f32 %v2652, %v2662
    %v2665 = vmul.f32 %v2663, %v2663
    %v2666 = vmul.f32 %v2664, %v2664
    %v2667 = vsel %vm88, %v2665, 0.0
    %2668 = vadd.xlane.f32.xlu0 %v2667
    %v2669 = vpop.xlane.xlu0 %2668
    %v2670 = vsel %vm88, %v2666, 0.0
    %2671 = vadd.xlane.f32.xlu0 %v2670
    %v2672 = vpop.xlane.xlu0 %2671
    %v2673 = vmul.f32 %v2669, %v643
    %v2674 = vmul.f32 %v2672, %v643
    %v2675 = vadd.f32 %v2673, 1e-05
    %v2676 = vadd.f32 %v2674, 1e-05
    %v2677 = vrsqrt.pop %v2675
    %v2678 = vmul.f32 %v2677, %v2675
    %v2679 = vmul.f32 %v2678, %v2677
    %v2680 = vmul.f32 0.5, %v2679
    %v2681 = vsub.f32 1.5, %v2680
    %v2682 = vmul.f32 %v2677, %v2681
    %vm2683 = vweird.f32 %v2675
    %vm2684 = vweird.f32 %v2677
    %vm2685 = vmor %vm2683, %vm2684
    %v2686 = vsel %vm2685, %v2677, %v2682
    %v2687 = vrsqrt.pop %v2676
    %v2688 = vmul.f32 %v2687, %v2676
    %v2689 = vmul.f32 %v2688, %v2687
    %v2690 = vmul.f32 0.5, %v2689
    %v2691 = vsub.f32 1.5, %v2690
    %v2692 = vmul.f32 %v2687, %v2691
    %vm2693 = vweird.f32 %v2676
    %vm2694 = vweird.f32 %v2687
    %vm2695 = vmor %vm2693, %vm2694
    %v2696 = vsel %vm2695, %v2687, %v2692
    %v2697 = vmul.f32 %v2663, %v2686
    %v2698 = vmul.f32 %v2664, %v2696
    %v2699 = vperm.slane %v2653, 0
    %v2700 = vmul.f32 %v2697, %v2699
    %v2701 = vmul.f32 %v2698, %v2699
    %v2702 = vperm.slane %v2654, 0
    %v2703 = vadd.f32 %v2700, %v2702
    %v2704 = vadd.f32 %v2701, %v2702
    %v2705 = vld [vmem:[#allocation2 + $0x50] sm:$0xff]
    %v2706 = vld [vmem:[#allocation2 + $0xe0] sm:$0xff]
    %v2707 = vld [vmem:[#allocation2 + $0x170] sm:$0xff]
    %v2708 = vld [vmem:[#allocation2 + $0x200] sm:$0xff]
    %v2709 = vld [vmem:[%s9 + $0x14] sm:$0x1]
    %v2710 = vperm.slane %v2709, 0
    %v2712 = vsel %vm88, %v2703, 0
    %v2715 = vsel %vm88, %v2704, 0
    %2717 = vmatpush.msra.mxu0 0.0
    %2718 = vmatpush.msra.mxu0 0.0
    %2719 = vmatpush.msra.mxu0 0.0
    %2720 = vmatpush.msra.mxu0 0.0
    %2721 = vmatpush.msra.mxu0 0.0
    %2722 = vmatpush.msra.mxu0 0.0
    %2723 = vmatpush.msra.mxu0 0.0
    %2724 = vmatpush.msra.mxu0 0.0
    %2725 = vmatpush.msra.mxu0 0.0
    %2726 = vmatpush.msra.mxu0 0.0
    %2727 = vmatpush.msra.mxu0 0.0
    %2728 = vmatpush.msra.mxu0 0.0
    %2729 = vmatpush.msra.mxu0 %v2708
    %2730 = vmatpush.msra.mxu0 %v2707
    %2731 = vmatpush.msra.mxu0 %v2706
    %2732 = vmatpush.msra.mxu0 %v2705
    %2733 = vmatmul.f32.gmra.mxu0 %v2712
    %v2734 = vpop.f32.mrf.mxu0
    %v2735 = vadd.f32 %v2710, %v2734
    %2736 = vmatmul.f32.gmra.mxu0 %v2715
    %v2737 = vpop.f32.mrf.mxu0
    %v2738 = vadd.f32 %v2710, %v2737
    %2739 = vdwg.mxu0
    %v2740 = vmax.f32 %v2735, 0.0
    %v2741 = vmax.f32 %v2738, 0.0
    %v2742 = vld [vmem:[#allocation5 + $0x10] sm:$0xff]
    %v2743 = vld [vmem:[#allocation5 + $0x30] sm:$0xff]
    %v2744 = vld [vmem:[#allocation5 + $0x50] sm:$0xff]
    %v2745 = vld [vmem:[#allocation5 + $0x70] sm:$0xff]
    %v2746 = vld [vmem:[#allocation5 + $0x90] sm:$0xff]
    %v2747 = vld [vmem:[#allocation5 + $0xb0] sm:$0xff]
    %v2748 = vld [vmem:[#allocation5 + $0xd0] sm:$0xff]
    %v2749 = vld [vmem:[#allocation5 + $0xf0] sm:$0xff]
    %v2750 = vld [vmem:[%s9 + $0x15] sm:$0x1]
    %v2751 = vperm.slane %v2750, 0
    %v2753 = vsel %vm735, %v2740, 0
    %v2756 = vsel %vm735, %v2741, 0
    %2758 = vmatpush.msra.mxu0 0.0
    %2759 = vmatpush.msra.mxu0 0.0
    %2760 = vmatpush.msra.mxu0 0.0
    %2761 = vmatpush.msra.mxu0 0.0
    %2762 = vmatpush.msra.mxu0 0.0
    %2763 = vmatpush.msra.mxu0 0.0
    %2764 = vmatpush.msra.mxu0 0.0
    %2765 = vmatpush.msra.mxu0 0.0
    %2766 = vmatpush.msra.mxu0 %v2749
    %2767 = vmatpush.msra.mxu0 %v2748
    %2768 = vmatpush.msra.mxu0 %v2747
    %2769 = vmatpush.msra.mxu0 %v2746
    %2770 = vmatpush.msra.mxu0 %v2745
    %2771 = vmatpush.msra.mxu0 %v2744
    %2772 = vmatpush.msra.mxu0 %v2743
    %2773 = vmatpush.msra.mxu0 %v2742
    %2774 = vmatmul.f32.gmra.mxu0 %v2753
    %v2775 = vpop.f32.mrf.mxu0
    %v2776 = vadd.f32 %v2751, %v2775
    %2777 = vmatmul.f32.gmra.mxu0 %v2756
    %v2778 = vpop.f32.mrf.mxu0
    %v2779 = vadd.f32 %v2751, %v2778
    %2780 = vdwg.mxu0
    %v2781 = vadd.f32 %v2776, %v2703
    %v2782 = vadd.f32 %v2779, %v2704
    %v2783 = vld [vmem:[%s9 + $0x1a] sm:$0x1]
    %v2784 = vld [vmem:[%s9 + $0x1b] sm:$0x1]
    %v2785 = vsel %vm88, %v2781, 0.0
    %2786 = vadd.xlane.f32.xlu0 %v2785
    %v2787 = vpop.xlane.xlu0 %2786
    %v2788 = vsel %vm88, %v2782, 0.0
    %2789 = vadd.xlane.f32.xlu0 %v2788
    %v2790 = vpop.xlane.xlu0 %2789
    %v2791 = vmul.f32 %v2787, %v643
    %v2792 = vmul.f32 %v2790, %v643
    %v2793 = vsub.f32 %v2781, %v2791
    %v2794 = vsub.f32 %v2782, %v2792
    %v2795 = vmul.f32 %v2793, %v2793
    %v2796 = vmul.f32 %v2794, %v2794
    %v2797 = vsel %vm88, %v2795, 0.0
    %2798 = vadd.xlane.f32.xlu0 %v2797
    %v2799 = vpop.xlane.xlu0 %2798
    %v2800 = vsel %vm88, %v2796, 0.0
    %2801 = vadd.xlane.f32.xlu0 %v2800
    %v2802 = vpop.xlane.xlu0 %2801
    %v2803 = vmul.f32 %v2799, %v643
    %v2804 = vmul.f32 %v2802, %v643
    %v2805 = vadd.f32 %v2803, 1e-05
    %v2806 = vadd.f32 %v2804, 1e-05
    %v2807 = vrsqrt.pop %v2805
    %v2808 = vmul.f32 %v2807, %v2805
    %v2809 = vmul.f32 %v2808, %v2807
    %v2810 = vmul.f32 0.5, %v2809
    %v2811 = vsub.f32 1.5, %v2810
    %v2812 = vmul.f32 %v2807, %v2811
    %vm2813 = vweird.f32 %v2805
    %vm2814 = vweird.f32 %v2807
    %vm2815 = vmor %vm2813, %vm2814
    %v2816 = vsel %vm2815, %v2807, %v2812
    %v2817 = vrsqrt.pop %v2806
    %v2818 = vmul.f32 %v2817, %v2806
    %v2819 = vmul.f32 %v2818, %v2817
    %v2820 = vmul.f32 0.5, %v2819
    %v2821 = vsub.f32 1.5, %v2820
    %v2822 = vmul.f32 %v2817, %v2821
    %vm2823 = vweird.f32 %v2806
    %vm2824 = vweird.f32 %v2817
    %vm2825 = vmor %vm2823, %vm2824
    %v2826 = vsel %vm2825, %v2817, %v2822
    %v2827 = vmul.f32 %v2793, %v2816
    %v2828 = vmul.f32 %v2794, %v2826
    %v2829 = vperm.slane %v2783, 0
    %v2830 = vmul.f32 %v2827, %v2829
    %v2831 = vmul.f32 %v2828, %v2829
    %v2832 = vperm.slane %v2784, 0
    %v2833 = vadd.f32 %v2830, %v2832
    %v2834 = vadd.f32 %v2831, %v2832
    %v2835 = vld [vmem:[#allocation2 + $0x58] sm:$0xff]
    %v2836 = vld [vmem:[#allocation2 + $0xe8] sm:$0xff]
    %v2837 = vld [vmem:[#allocation2 + $0x178] sm:$0xff]
    %v2838 = vld [vmem:[#allocation2 + $0x208] sm:$0xff]
    %v2839 = vld [vmem:[%s9 + $0x1c] sm:$0x1]
    %v2840 = vperm.slane %v2839, 0
    %v2842 = vsel %vm88, %v2833, 0
    %v2845 = vsel %vm88, %v2834, 0
    %2847 = vmatpush.msra.mxu0 0.0
    %2848 = vmatpush.msra.mxu0 0.0
    %2849 = vmatpush.msra.mxu0 0.0
    %2850 = vmatpush.msra.mxu0 0.0
    %2851 = vmatpush.msra.mxu0 0.0
    %2852 = vmatpush.msra.mxu0 0.0
    %2853 = vmatpush.msra.mxu0 0.0
    %2854 = vmatpush.msra.mxu0 0.0
    %2855 = vmatpush.msra.mxu0 0.0
    %2856 = vmatpush.msra.mxu0 0.0
    %2857 = vmatpush.msra.mxu0 0.0
    %2858 = vmatpush.msra.mxu0 0.0
    %2859 = vmatpush.msra.mxu0 %v2838
    %2860 = vmatpush.msra.mxu0 %v2837
    %2861 = vmatpush.msra.mxu0 %v2836
    %2862 = vmatpush.msra.mxu0 %v2835
    %2863 = vmatmul.f32.gmra.mxu0 %v2842
    %v2864 = vpop.f32.mrf.mxu0
    %v2865 = vadd.f32 %v2840, %v2864
    %2866 = vmatmul.f32.gmra.mxu0 %v2845
    %v2867 = vpop.f32.mrf.mxu0
    %v2868 = vadd.f32 %v2840, %v2867
    %2869 = vdwg.mxu0
    %2872 = vrot.lane.b32.xlu0 %v2865, 96
    %v2873 = vpop.permute.xlu0 %2872
    %2874 = vrot.lane.b32.xlu0 %v2868, 96
    %v2875 = vpop.permute.xlu0 %2874
    %v2876 = vsel %vm167, %v2865, 0
    %v2878 = vsel %vm167, %v2868, 0
    %v2880 = vsel %vm167, %v2873, 0
    %v2882 = vsel %vm167, %v2875, 0
    %2884 = vmatpush.xpose.msra.mxu0 0.0
    %2885 = vmatpush.xpose.msra.mxu0 0.0
    %2886 = vmatpush.xpose.msra.mxu0 0.0
    %2887 = vmatpush.xpose.msra.mxu0 0.0
    %2888 = vmatpush.xpose.msra.mxu0 0.0
    %2889 = vmatpush.xpose.msra.mxu0 0.0
    %2890 = vmatpush.xpose.msra.mxu0 0.0
    %2891 = vmatpush.xpose.msra.mxu0 0.0
    %2892 = vmatpush.xpose.msra.mxu0 0.0
    %2893 = vmatpush.xpose.msra.mxu0 0.0
    %2894 = vmatpush.xpose.msra.mxu0 0.0
    %2895 = vmatpush.xpose.msra.mxu0 0.0
    %2896 = vmatpush.xpose.msra.mxu0 0.0
    %2897 = vmatpush.xpose.msra.mxu0 0.0
    %2898 = vmatpush.xpose.msra.mxu0 %v2882
    %2899 = vmatpush.xpose.msra.mxu0 %v2880
    %2900 = vmatmul.f32.gmra.mxu0 %v2876
    %v2901 = vpop.f32.mrf.mxu0
    %v2902 = vadd.f32 0.0, %v2901
    %2903 = vmatmul.f32.gmra.mxu0 %v2878
    %v2904 = vpop.f32.mrf.mxu0
    %v2905 = vadd.f32 0.0, %v2904
    %2906 = vdwg.mxu0
    %v2907 = vmul.f32 %v2902, 0.35355338
    %v2908 = vmul.f32 %v2905, 0.35355338
    %v2909 = vadd.f32 %v2907, %v1550
    %v2910 = vadd.f32 %v2908, %v1551
    %v2911 = vsel %vm203, %v2909, -inf
    %2912 = vmax.xlane.f32.xlu0 %v2911
    %v2913 = vpop.xlane.xlu0 %2912
    %v2914 = vsel %vm203, %v2910, -inf
    %2915 = vmax.xlane.f32.xlu0 %v2914
    %v2916 = vpop.xlane.xlu0 %2915
    %v2917 = vsub.f32 %v2909, %v2913
    %v2918 = vsub.f32 %v2910, %v2916
    %v2919 = vmul.f32 %v2917, 1.442695
    %v2920 = vpow.pop %v2919
    %v2921 = vmul.f32 %v2918, 1.442695
    %v2922 = vpow.pop %v2921
    %v2923 = vsel %vm203, %v2920, 0.0
    %2924 = vadd.xlane.f32.xlu0 %v2923
    %v2925 = vpop.xlane.xlu0 %2924
    %v2926 = vsel %vm203, %v2922, 0.0
    %2927 = vadd.xlane.f32.xlu0 %v2926
    %v2928 = vpop.xlane.xlu0 %2927
    %v2929 = vrcp.pop %v2925
    %v2930 = vrcp.pop %v2928
    %v2931 = vmul.f32 %v2920, %v2929
    %v2932 = vmul.f32 %v2922, %v2930
    %2933 = vrot.lane.b32.xlu0 %v2865, 64
    %v2934 = vpop.permute.xlu0 %2933
    %2935 = vrot.lane.b32.xlu0 %v2868, 64
    %v2936 = vpop.permute.xlu0 %2935
    %v2940 = vsel %vm203, %v2931, 0
    %v2943 = vsel %vm203, %v2932, 0
    %2945 = vmatpush.msra.mxu0 0.0
    %2946 = vmatpush.msra.mxu0 0.0
    %2947 = vmatpush.msra.mxu0 0.0
    %2948 = vmatpush.msra.mxu0 0.0
    %2949 = vmatpush.msra.mxu0 0.0
    %2950 = vmatpush.msra.mxu0 0.0
    %2951 = vmatpush.msra.mxu0 0.0
    %2952 = vmatpush.msra.mxu0 0.0
    %2953 = vmatpush.msra.mxu0 0.0
    %2954 = vmatpush.msra.mxu0 0.0
    %2955 = vmatpush.msra.mxu0 0.0
    %2956 = vmatpush.msra.mxu0 0.0
    %2957 = vmatpush.msra.mxu0 0.0
    %2958 = vmatpush.msra.mxu0 0.0
    %2959 = vmatpush.msra.mxu0 %v2936
    %2960 = vmatpush.msra.mxu0 %v2934
    %2961 = vmatmul.f32.gmra.mxu0 %v2940
    %v2962 = vpop.f32.mrf.mxu0
    %v2963 = vadd.f32 0.0, %v2962
    %2964 = vmatmul.f32.gmra.mxu0 %v2943
    %v2965 = vpop.f32.mrf.mxu0
    %v2966 = vadd.f32 0.0, %v2965
    %2967 = vdwg.mxu0
    %2968 = vrot.lane.b32.xlu0 %v2865, 120
    %v2969 = vpop.permute.xlu0 %2968
    %2970 = vrot.lane.b32.xlu0 %v2868, 120
    %v2971 = vpop.permute.xlu0 %2970
    %2972 = vrot.lane.b32.xlu0 %v2865, 88
    %v2973 = vpop.permute.xlu0 %2972
    %2974 = vrot.lane.b32.xlu0 %v2868, 88
    %v2975 = vpop.permute.xlu0 %2974
    %v2976 = vsel %vm167, %v2969, 0
    %v2978 = vsel %vm167, %v2971, 0
    %v2980 = vsel %vm167, %v2973, 0
    %v2982 = vsel %vm167, %v2975, 0
    %2984 = vmatpush.xpose.msra.mxu0 0.0
    %2985 = vmatpush.xpose.msra.mxu0 0.0
    %2986 = vmatpush.xpose.msra.mxu0 0.0
    %2987 = vmatpush.xpose.msra.mxu0 0.0
    %2988 = vmatpush.xpose.msra.mxu0 0.0
    %2989 = vmatpush.xpose.msra.mxu0 0.0
    %2990 = vmatpush.xpose.msra.mxu0 0.0
    %2991 = vmatpush.xpose.msra.mxu0 0.0
    %2992 = vmatpush.xpose.msra.mxu0 0.0
    %2993 = vmatpush.xpose.msra.mxu0 0.0
    %2994 = vmatpush.xpose.msra.mxu0 0.0
    %2995 = vmatpush.xpose.msra.mxu0 0.0
    %2996 = vmatpush.xpose.msra.mxu0 0.0
    %2997 = vmatpush.xpose.msra.mxu0 0.0
    %2998 = vmatpush.xpose.msra.mxu0 %v2982
    %2999 = vmatpush.xpose.msra.mxu0 %v2980
    %3000 = vmatmul.f32.gmra.mxu0 %v2976
    %v3001 = vpop.f32.mrf.mxu0
    %v3002 = vadd.f32 0.0, %v3001
    %3003 = vmatmul.f32.gmra.mxu0 %v2978
    %v3004 = vpop.f32.mrf.mxu0
    %v3005 = vadd.f32 0.0, %v3004
    %3006 = vdwg.mxu0
    %v3007 = vmul.f32 %v3002, 0.35355338
    %v3008 = vmul.f32 %v3005, 0.35355338
    %v3009 = vadd.f32 %v3007, %v1550
    %v3010 = vadd.f32 %v3008, %v1551
    %v3011 = vsel %vm203, %v3009, -inf
    %3012 = vmax.xlane.f32.xlu0 %v3011
    %v3013 = vpop.xlane.xlu0 %3012
    %v3014 = vsel %vm203, %v3010, -inf
    %3015 = vmax.xlane.f32.xlu0 %v3014
    %v3016 = vpop.xlane.xlu0 %3015
    %v3017 = vsub.f32 %v3009, %v3013
    %v3018 = vsub.f32 %v3010, %v3016
    %v3019 = vmul.f32 %v3017, 1.442695
    %v3020 = vpow.pop %v3019
    %v3021 = vmul.f32 %v3018, 1.442695
    %v3022 = vpow.pop %v3021
    %v3023 = vsel %vm203, %v3020, 0.0
    %3024 = vadd.xlane.f32.xlu0 %v3023
    %v3025 = vpop.xlane.xlu0 %3024
    %v3026 = vsel %vm203, %v3022, 0.0
    %3027 = vadd.xlane.f32.xlu0 %v3026
    %v3028 = vpop.xlane.xlu0 %3027
    %v3029 = vrcp.pop %v3025
    %v3030 = vrcp.pop %v3028
    %v3031 = vmul.f32 %v3020, %v3029
    %v3032 = vmul.f32 %v3022, %v3030
    %3033 = vrot.lane.b32.xlu0 %v2865, 56
    %v3034 = vpop.permute.xlu0 %3033
    %3035 = vrot.lane.b32.xlu0 %v2868, 56
    %v3036 = vpop.permute.xlu0 %3035
    %v3040 = vsel %vm203, %v3031, 0
    %v3043 = vsel %vm203, %v3032, 0
    %3045 = vmatpush.msra.mxu0 0.0
    %3046 = vmatpush.msra.mxu0 0.0
    %3047 = vmatpush.msra.mxu0 0.0
    %3048 = vmatpush.msra.mxu0 0.0
    %3049 = vmatpush.msra.mxu0 0.0
    %3050 = vmatpush.msra.mxu0 0.0
    %3051 = vmatpush.msra.mxu0 0.0
    %3052 = vmatpush.msra.mxu0 0.0
    %3053 = vmatpush.msra.mxu0 0.0
    %3054 = vmatpush.msra.mxu0 0.0
    %3055 = vmatpush.msra.mxu0 0.0
    %3056 = vmatpush.msra.mxu0 0.0
    %3057 = vmatpush.msra.mxu0 0.0
    %3058 = vmatpush.msra.mxu0 0.0
    %3059 = vmatpush.msra.mxu0 %v3036
    %3060 = vmatpush.msra.mxu0 %v3034
    %3061 = vmatmul.f32.gmra.mxu0 %v3040
    %v3062 = vpop.f32.mrf.mxu0
    %v3063 = vadd.f32 0.0, %v3062
    %3064 = vmatmul.f32.gmra.mxu0 %v3043
    %v3065 = vpop.f32.mrf.mxu0
    %v3066 = vadd.f32 0.0, %v3065
    %3067 = vdwg.mxu0
    %3068 = vrot.lane.b32.xlu0 %v2865, 112
    %v3069 = vpop.permute.xlu0 %3068
    %3070 = vrot.lane.b32.xlu0 %v2868, 112
    %v3071 = vpop.permute.xlu0 %3070
    %3072 = vrot.lane.b32.xlu0 %v2865, 80
    %v3073 = vpop.permute.xlu0 %3072
    %3074 = vrot.lane.b32.xlu0 %v2868, 80
    %v3075 = vpop.permute.xlu0 %3074
    %v3076 = vsel %vm167, %v3069, 0
    %v3078 = vsel %vm167, %v3071, 0
    %v3080 = vsel %vm167, %v3073, 0
    %v3082 = vsel %vm167, %v3075, 0
    %3084 = vmatpush.xpose.msra.mxu0 0.0
    %3085 = vmatpush.xpose.msra.mxu0 0.0
    %3086 = vmatpush.xpose.msra.mxu0 0.0
    %3087 = vmatpush.xpose.msra.mxu0 0.0
    %3088 = vmatpush.xpose.msra.mxu0 0.0
    %3089 = vmatpush.xpose.msra.mxu0 0.0
    %3090 = vmatpush.xpose.msra.mxu0 0.0
    %3091 = vmatpush.xpose.msra.mxu0 0.0
    %3092 = vmatpush.xpose.msra.mxu0 0.0
    %3093 = vmatpush.xpose.msra.mxu0 0.0
    %3094 = vmatpush.xpose.msra.mxu0 0.0
    %3095 = vmatpush.xpose.msra.mxu0 0.0
    %3096 = vmatpush.xpose.msra.mxu0 0.0
    %3097 = vmatpush.xpose.msra.mxu0 0.0
    %3098 = vmatpush.xpose.msra.mxu0 %v3082
    %3099 = vmatpush.xpose.msra.mxu0 %v3080
    %3100 = vmatmul.f32.gmra.mxu0 %v3076
    %v3101 = vpop.f32.mrf.mxu0
    %v3102 = vadd.f32 0.0, %v3101
    %3103 = vmatmul.f32.gmra.mxu0 %v3078
    %v3104 = vpop.f32.mrf.mxu0
    %v3105 = vadd.f32 0.0, %v3104
    %3106 = vdwg.mxu0
    %v3107 = vmul.f32 %v3102, 0.35355338
    %v3108 = vmul.f32 %v3105, 0.35355338
    %v3109 = vadd.f32 %v3107, %v1550
    %v3110 = vadd.f32 %v3108, %v1551
    %v3111 = vsel %vm203, %v3109, -inf
    %3112 = vmax.xlane.f32.xlu0 %v3111
    %v3113 = vpop.xlane.xlu0 %3112
    %v3114 = vsel %vm203, %v3110, -inf
    %3115 = vmax.xlane.f32.xlu0 %v3114
    %v3116 = vpop.xlane.xlu0 %3115
    %v3117 = vsub.f32 %v3109, %v3113
    %v3118 = vsub.f32 %v3110, %v3116
    %v3119 = vmul.f32 %v3117, 1.442695
    %v3120 = vpow.pop %v3119
    %v3121 = vmul.f32 %v3118, 1.442695
    %v3122 = vpow.pop %v3121
    %v3123 = vsel %vm203, %v3120, 0.0
    %3124 = vadd.xlane.f32.xlu0 %v3123
    %v3125 = vpop.xlane.xlu0 %3124
    %v3126 = vsel %vm203, %v3122, 0.0
    %3127 = vadd.xlane.f32.xlu0 %v3126
    %v3128 = vpop.xlane.xlu0 %3127
    %v3129 = vrcp.pop %v3125
    %v3130 = vrcp.pop %v3128
    %v3131 = vmul.f32 %v3120, %v3129
    %v3132 = vmul.f32 %v3122, %v3130
    %3133 = vrot.lane.b32.xlu0 %v2865, 48
    %v3134 = vpop.permute.xlu0 %3133
    %3135 = vrot.lane.b32.xlu0 %v2868, 48
    %v3136 = vpop.permute.xlu0 %3135
    %v3140 = vsel %vm203, %v3131, 0
    %v3143 = vsel %vm203, %v3132, 0
    %3145 = vmatpush.msra.mxu0 0.0
    %3146 = vmatpush.msra.mxu0 0.0
    %3147 = vmatpush.msra.mxu0 0.0
    %3148 = vmatpush.msra.mxu0 0.0
    %3149 = vmatpush.msra.mxu0 0.0
    %3150 = vmatpush.msra.mxu0 0.0
    %3151 = vmatpush.msra.mxu0 0.0
    %3152 = vmatpush.msra.mxu0 0.0
    %3153 = vmatpush.msra.mxu0 0.0
    %3154 = vmatpush.msra.mxu0 0.0
    %3155 = vmatpush.msra.mxu0 0.0
    %3156 = vmatpush.msra.mxu0 0.0
    %3157 = vmatpush.msra.mxu0 0.0
    %3158 = vmatpush.msra.mxu0 0.0
    %3159 = vmatpush.msra.mxu0 %v3136
    %3160 = vmatpush.msra.mxu0 %v3134
    %3161 = vmatmul.f32.gmra.mxu0 %v3140
    %v3162 = vpop.f32.mrf.mxu0
    %v3163 = vadd.f32 0.0, %v3162
    %3164 = vmatmul.f32.gmra.mxu0 %v3143
    %v3165 = vpop.f32.mrf.mxu0
    %v3166 = vadd.f32 0.0, %v3165
    %3167 = vdwg.mxu0
    %3168 = vrot.lane.b32.xlu0 %v2865, 104
    %v3169 = vpop.permute.xlu0 %3168
    %3170 = vrot.lane.b32.xlu0 %v2868, 104
    %v3171 = vpop.permute.xlu0 %3170
    %3172 = vrot.lane.b32.xlu0 %v2865, 72
    %v3173 = vpop.permute.xlu0 %3172
    %3174 = vrot.lane.b32.xlu0 %v2868, 72
    %v3175 = vpop.permute.xlu0 %3174
    %v3176 = vsel %vm167, %v3169, 0
    %v3178 = vsel %vm167, %v3171, 0
    %v3180 = vsel %vm167, %v3173, 0
    %v3182 = vsel %vm167, %v3175, 0
    %3184 = vmatpush.xpose.msra.mxu0 0.0
    %3185 = vmatpush.xpose.msra.mxu0 0.0
    %3186 = vmatpush.xpose.msra.mxu0 0.0
    %3187 = vmatpush.xpose.msra.mxu0 0.0
    %3188 = vmatpush.xpose.msra.mxu0 0.0
    %3189 = vmatpush.xpose.msra.mxu0 0.0
    %3190 = vmatpush.xpose.msra.mxu0 0.0
    %3191 = vmatpush.xpose.msra.mxu0 0.0
    %3192 = vmatpush.xpose.msra.mxu0 0.0
    %3193 = vmatpush.xpose.msra.mxu0 0.0
    %3194 = vmatpush.xpose.msra.mxu0 0.0
    %3195 = vmatpush.xpose.msra.mxu0 0.0
    %3196 = vmatpush.xpose.msra.mxu0 0.0
    %3197 = vmatpush.xpose.msra.mxu0 0.0
    %3198 = vmatpush.xpose.msra.mxu0 %v3182
    %3199 = vmatpush.xpose.msra.mxu0 %v3180
    %3200 = vmatmul.f32.gmra.mxu0 %v3176
    %v3201 = vpop.f32.mrf.mxu0
    %v3202 = vadd.f32 0.0, %v3201
    %3203 = vmatmul.f32.gmra.mxu0 %v3178
    %v3204 = vpop.f32.mrf.mxu0
    %v3205 = vadd.f32 0.0, %v3204
    %3206 = vdwg.mxu0
    %v3207 = vmul.f32 %v3202, 0.35355338
    %v3208 = vmul.f32 %v3205, 0.35355338
    %v3209 = vadd.f32 %v3207, %v1550
    %v3210 = vadd.f32 %v3208, %v1551
    %v3211 = vsel %vm203, %v3209, -inf
    %3212 = vmax.xlane.f32.xlu0 %v3211
    %v3213 = vpop.xlane.xlu0 %3212
    %v3214 = vsel %vm203, %v3210, -inf
    %3215 = vmax.xlane.f32.xlu0 %v3214
    %v3216 = vpop.xlane.xlu0 %3215
    %v3217 = vsub.f32 %v3209, %v3213
    %v3218 = vsub.f32 %v3210, %v3216
    %v3219 = vmul.f32 %v3217, 1.442695
    %v3220 = vpow.pop %v3219
    %v3221 = vmul.f32 %v3218, 1.442695
    %v3222 = vpow.pop %v3221
    %v3223 = vsel %vm203, %v3220, 0.0
    %3224 = vadd.xlane.f32.xlu0 %v3223
    %v3225 = vpop.xlane.xlu0 %3224
    %v3226 = vsel %vm203, %v3222, 0.0
    %3227 = vadd.xlane.f32.xlu0 %v3226
    %v3228 = vpop.xlane.xlu0 %3227
    %v3229 = vrcp.pop %v3225
    %v3230 = vrcp.pop %v3228
    %v3231 = vmul.f32 %v3220, %v3229
    %v3232 = vmul.f32 %v3222, %v3230
    %3233 = vrot.lane.b32.xlu0 %v2865, 40
    %v3234 = vpop.permute.xlu0 %3233
    %3235 = vrot.lane.b32.xlu0 %v2868, 40
    %v3236 = vpop.permute.xlu0 %3235
    %v3240 = vsel %vm203, %v3231, 0
    %v3243 = vsel %vm203, %v3232, 0
    %3245 = vmatpush.msra.mxu0 0.0
    %3246 = vmatpush.msra.mxu0 0.0
    %3247 = vmatpush.msra.mxu0 0.0
    %3248 = vmatpush.msra.mxu0 0.0
    %3249 = vmatpush.msra.mxu0 0.0
    %3250 = vmatpush.msra.mxu0 0.0
    %3251 = vmatpush.msra.mxu0 0.0
    %3252 = vmatpush.msra.mxu0 0.0
    %3253 = vmatpush.msra.mxu0 0.0
    %3254 = vmatpush.msra.mxu0 0.0
    %3255 = vmatpush.msra.mxu0 0.0
    %3256 = vmatpush.msra.mxu0 0.0
    %3257 = vmatpush.msra.mxu0 0.0
    %3258 = vmatpush.msra.mxu0 0.0
    %3259 = vmatpush.msra.mxu0 %v3236
    %3260 = vmatpush.msra.mxu0 %v3234
    %3261 = vmatmul.f32.gmra.mxu0 %v3240
    %v3262 = vpop.f32.mrf.mxu0
    %v3263 = vadd.f32 0.0, %v3262
    %3264 = vmatmul.f32.gmra.mxu0 %v3243
    %v3265 = vpop.f32.mrf.mxu0
    %v3266 = vadd.f32 0.0, %v3265
    %3267 = vdwg.mxu0
    %3270 = vrot.lane.b32.xlu0 %v3063, 8
    %v3271 = vpop.permute.xlu0 %3270
    %3272 = vrot.lane.b32.xlu0 %v3066, 8
    %v3273 = vpop.permute.xlu0 %3272
    %3278 = vrot.lane.b32.xlu0 %v3163, 16
    %v3279 = vpop.permute.xlu0 %3278
    %3280 = vrot.lane.b32.xlu0 %v3166, 16
    %v3281 = vpop.permute.xlu0 %3280
    %3286 = vrot.lane.b32.xlu0 %v3263, 24
    %v3287 = vpop.permute.xlu0 %3286
    %3288 = vrot.lane.b32.xlu0 %v3266, 24
    %v3289 = vpop.permute.xlu0 %3288
    %v3292 = vsel %vm167, %v2963, %v3271
    %v3293 = vsel %vm167, %v2966, %v3273
    %v3294 = vsel %vm203, %v3292, %v3279
    %v3295 = vsel %vm203, %v3293, %v3281
    %v3296 = vsel %vm589, %v3294, %v3287
    %v3297 = vsel %vm589, %v3295, %v3289
    %v3298 = vld [vmem:[#allocation2 + $0x60] sm:$0xff]
    %v3299 = vld [vmem:[#allocation2 + $0xf0] sm:$0xff]
    %v3300 = vld [vmem:[#allocation2 + $0x180] sm:$0xff]
    %v3301 = vld [vmem:[#allocation2 + $0x210] sm:$0xff]
    %v3302 = vld [vmem:[%s9 + $0x1d] sm:$0x1]
    %v3303 = vperm.slane %v3302, 0
    %v3305 = vsel %vm88, %v3296, 0
    %v3308 = vsel %vm88, %v3297, 0
    %3310 = vmatpush.msra.mxu0 0.0
    %3311 = vmatpush.msra.mxu0 0.0
    %3312 = vmatpush.msra.mxu0 0.0
    %3313 = vmatpush.msra.mxu0 0.0
    %3314 = vmatpush.msra.mxu0 0.0
    %3315 = vmatpush.msra.mxu0 0.0
    %3316 = vmatpush.msra.mxu0 0.0
    %3317 = vmatpush.msra.mxu0 0.0
    %3318 = vmatpush.msra.mxu0 0.0
    %3319 = vmatpush.msra.mxu0 0.0
    %3320 = vmatpush.msra.mxu0 0.0
    %3321 = vmatpush.msra.mxu0 0.0
    %3322 = vmatpush.msra.mxu0 %v3301
    %3323 = vmatpush.msra.mxu0 %v3300
    %3324 = vmatpush.msra.mxu0 %v3299
    %3325 = vmatpush.msra.mxu0 %v3298
    %3326 = vmatmul.f32.gmra.mxu0 %v3305
    %v3327 = vpop.f32.mrf.mxu0
    %v3328 = vadd.f32 %v3303, %v3327
    %3329 = vmatmul.f32.gmra.mxu0 %v3308
    %v3330 = vpop.f32.mrf.mxu0
    %v3331 = vadd.f32 %v3303, %v3330
    %3332 = vdwg.mxu0
    %v3333 = vadd.f32 %v3328, %v2833
    %v3334 = vadd.f32 %v3331, %v2834
    %v3335 = vld [vmem:[%s9 + $0x22] sm:$0x1]
    %v3336 = vld [vmem:[%s9 + $0x23] sm:$0x1]
    %v3337 = vsel %vm88, %v3333, 0.0
    %3338 = vadd.xlane.f32.xlu0 %v3337
    %v3339 = vpop.xlane.xlu0 %3338
    %v3340 = vsel %vm88, %v3334, 0.0
    %3341 = vadd.xlane.f32.xlu0 %v3340
    %v3342 = vpop.xlane.xlu0 %3341
    %v3343 = vmul.f32 %v3339, %v643
    %v3344 = vmul.f32 %v3342, %v643
    %v3345 = vsub.f32 %v3333, %v3343
    %v3346 = vsub.f32 %v3334, %v3344
    %v3347 = vmul.f32 %v3345, %v3345
    %v3348 = vmul.f32 %v3346, %v3346
    %v3349 = vsel %vm88, %v3347, 0.0
    %3350 = vadd.xlane.f32.xlu0 %v3349
    %v3351 = vpop.xlane.xlu0 %3350
    %v3352 = vsel %vm88, %v3348, 0.0
    %3353 = vadd.xlane.f32.xlu0 %v3352
    %v3354 = vpop.xlane.xlu0 %3353
    %v3355 = vmul.f32 %v3351, %v643
    %v3356 = vmul.f32 %v3354, %v643
    %v3357 = vadd.f32 %v3355, 1e-05
    %v3358 = vadd.f32 %v3356, 1e-05
    %v3359 = vrsqrt.pop %v3357
    %v3360 = vmul.f32 %v3359, %v3357
    %v3361 = vmul.f32 %v3360, %v3359
    %v3362 = vmul.f32 0.5, %v3361
    %v3363 = vsub.f32 1.5, %v3362
    %v3364 = vmul.f32 %v3359, %v3363
    %vm3365 = vweird.f32 %v3357
    %vm3366 = vweird.f32 %v3359
    %vm3367 = vmor %vm3365, %vm3366
    %v3368 = vsel %vm3367, %v3359, %v3364
    %v3369 = vrsqrt.pop %v3358
    %v3370 = vmul.f32 %v3369, %v3358
    %v3371 = vmul.f32 %v3370, %v3369
    %v3372 = vmul.f32 0.5, %v3371
    %v3373 = vsub.f32 1.5, %v3372
    %v3374 = vmul.f32 %v3369, %v3373
    %vm3375 = vweird.f32 %v3358
    %vm3376 = vweird.f32 %v3369
    %vm3377 = vmor %vm3375, %vm3376
    %v3378 = vsel %vm3377, %v3369, %v3374
    %v3379 = vmul.f32 %v3345, %v3368
    %v3380 = vmul.f32 %v3346, %v3378
    %v3381 = vperm.slane %v3335, 0
    %v3382 = vmul.f32 %v3379, %v3381
    %v3383 = vmul.f32 %v3380, %v3381
    %v3384 = vperm.slane %v3336, 0
    %v3385 = vadd.f32 %v3382, %v3384
    %v3386 = vadd.f32 %v3383, %v3384
    %v3387 = vld [vmem:[#allocation2 + $0x68] sm:$0xff]
    %v3388 = vld [vmem:[#allocation2 + $0xf8] sm:$0xff]
    %v3389 = vld [vmem:[#allocation2 + $0x188] sm:$0xff]
    %v3390 = vld [vmem:[#allocation2 + $0x218] sm:$0xff]
    %v3391 = vld [vmem:[%s9 + $0x1e] sm:$0x1]
    %v3392 = vperm.slane %v3391, 0
    %v3394 = vsel %vm88, %v3385, 0
    %v3397 = vsel %vm88, %v3386, 0
    %3399 = vmatpush.msra.mxu0 0.0
    %3400 = vmatpush.msra.mxu0 0.0
    %3401 = vmatpush.msra.mxu0 0.0
    %3402 = vmatpush.msra.mxu0 0.0
    %3403 = vmatpush.msra.mxu0 0.0
    %3404 = vmatpush.msra.mxu0 0.0
    %3405 = vmatpush.msra.mxu0 0.0
    %3406 = vmatpush.msra.mxu0 0.0
    %3407 = vmatpush.msra.mxu0 0.0
    %3408 = vmatpush.msra.mxu0 0.0
    %3409 = vmatpush.msra.mxu0 0.0
    %3410 = vmatpush.msra.mxu0 0.0
    %3411 = vmatpush.msra.mxu0 %v3390
    %3412 = vmatpush.msra.mxu0 %v3389
    %3413 = vmatpush.msra.mxu0 %v3388
    %3414 = vmatpush.msra.mxu0 %v3387
    %3415 = vmatmul.f32.gmra.mxu0 %v3394
    %v3416 = vpop.f32.mrf.mxu0
    %v3417 = vadd.f32 %v3392, %v3416
    %3418 = vmatmul.f32.gmra.mxu0 %v3397
    %v3419 = vpop.f32.mrf.mxu0
    %v3420 = vadd.f32 %v3392, %v3419
    %3421 = vdwg.mxu0
    %3426 = vrot.lane.b32.xlu0 %v3387, 96
    %v3427 = vpop.permute.xlu0 %3426
    %3428 = vrot.lane.b32.xlu0 %v3388, 96
    %v3429 = vpop.permute.xlu0 %3428
    %3430 = vrot.lane.b32.xlu0 %v3389, 96
    %v3431 = vpop.permute.xlu0 %3430
    %3432 = vrot.lane.b32.xlu0 %v3390, 96
    %v3433 = vpop.permute.xlu0 %3432
    %3439 = vrot.lane.b32.xlu0 %v3392, 96
    %v3440 = vpop.permute.xlu0 %3439
    %3442 = vmatpush.msra.mxu0 0.0
    %3443 = vmatpush.msra.mxu0 0.0
    %3444 = vmatpush.msra.mxu0 0.0
    %3445 = vmatpush.msra.mxu0 0.0
    %3446 = vmatpush.msra.mxu0 0.0
    %3447 = vmatpush.msra.mxu0 0.0
    %3448 = vmatpush.msra.mxu0 0.0
    %3449 = vmatpush.msra.mxu0 0.0
    %3450 = vmatpush.msra.mxu0 0.0
    %3451 = vmatpush.msra.mxu0 0.0
    %3452 = vmatpush.msra.mxu0 0.0
    %3453 = vmatpush.msra.mxu0 0.0
    %3454 = vmatpush.msra.mxu0 %v3433
    %3455 = vmatpush.msra.mxu0 %v3431
    %3456 = vmatpush.msra.mxu0 %v3429
    %3457 = vmatpush.msra.mxu0 %v3427
    %3458 = vmatmul.f32.gmra.mxu0 %v2162
    %v3459 = vpop.f32.mrf.mxu0
    %v3460 = vadd.f32 %v3440, %v3459
    %3461 = vmatmul.f32.gmra.mxu0 %v2165
    %v3462 = vpop.f32.mrf.mxu0
    %v3463 = vadd.f32 %v3440, %v3462
    %3464 = vdwg.mxu0
    %v3466 = vsel %vm167, %v3417, 0
    %v3469 = vsel %vm167, %v3420, 0
    %v3472 = vsel %vm167, %v3460, 0
    %v3475 = vsel %vm167, %v3463, 0
    %3477 = vmatpush.xpose.msra.mxu0 0.0
    %3478 = vmatpush.xpose.msra.mxu0 0.0
    %3479 = vmatpush.xpose.msra.mxu0 0.0
    %3480 = vmatpush.xpose.msra.mxu0 0.0
    %3481 = vmatpush.xpose.msra.mxu0 0.0
    %3482 = vmatpush.xpose.msra.mxu0 0.0
    %3483 = vmatpush.xpose.msra.mxu0 0.0
    %3484 = vmatpush.xpose.msra.mxu0 0.0
    %3485 = vmatpush.xpose.msra.mxu0 0.0
    %3486 = vmatpush.xpose.msra.mxu0 0.0
    %3487 = vmatpush.xpose.msra.mxu0 0.0
    %3488 = vmatpush.xpose.msra.mxu0 0.0
    %3489 = vmatpush.xpose.msra.mxu0 0.0
    %3490 = vmatpush.xpose.msra.mxu0 0.0
    %3491 = vmatpush.xpose.msra.mxu0 %v3475
    %3492 = vmatpush.xpose.msra.mxu0 %v3472
    %3493 = vmatmul.f32.gmra.mxu0 %v3466
    %v3494 = vpop.f32.mrf.mxu0
    %v3495 = vadd.f32 0.0, %v3494
    %3496 = vmatmul.f32.gmra.mxu0 %v3469
    %v3497 = vpop.f32.mrf.mxu0
    %v3498 = vadd.f32 0.0, %v3497
    %3499 = vdwg.mxu0
    %v3500 = vmul.f32 %v3495, 0.35355338
    %v3501 = vmul.f32 %v3498, 0.35355338
    %v3502 = vadd.f32 %v3500, %v1552
    %v3503 = vadd.f32 %v3501, %v1553
    %v3504 = vsel %vm203, %v3502, -inf
    %3505 = vmax.xlane.f32.xlu0 %v3504
    %v3506 = vpop.xlane.xlu0 %3505
    %v3507 = vsel %vm203, %v3503, -inf
    %3508 = vmax.xlane.f32.xlu0 %v3507
    %v3509 = vpop.xlane.xlu0 %3508
    %v3510 = vsub.f32 %v3502, %v3506
    %v3511 = vsub.f32 %v3503, %v3509
    %v3512 = vmul.f32 %v3510, 1.442695
    %v3513 = vpow.pop %v3512
    %v3514 = vmul.f32 %v3511, 1.442695
    %v3515 = vpow.pop %v3514
    %v3516 = vsel %vm203, %v3513, 0.0
    %3517 = vadd.xlane.f32.xlu0 %v3516
    %v3518 = vpop.xlane.xlu0 %3517
    %v3519 = vsel %vm203, %v3515, 0.0
    %3520 = vadd.xlane.f32.xlu0 %v3519
    %v3521 = vpop.xlane.xlu0 %3520
    %v3522 = vrcp.pop %v3518
    %v3523 = vrcp.pop %v3521
    %v3524 = vmul.f32 %v3513, %v3522
    %v3525 = vmul.f32 %v3515, %v3523
    %3526 = vrot.lane.b32.xlu0 %v3460, 96
    %v3527 = vpop.permute.xlu0 %3526
    %3528 = vrot.lane.b32.xlu0 %v3463, 96
    %v3529 = vpop.permute.xlu0 %3528
    %v3533 = vsel %vm203, %v3524, 0
    %v3536 = vsel %vm203, %v3525, 0
    %3538 = vmatpush.msra.mxu0 0.0
    %3539 = vmatpush.msra.mxu0 0.0
    %3540 = vmatpush.msra.mxu0 0.0
    %3541 = vmatpush.msra.mxu0 0.0
    %3542 = vmatpush.msra.mxu0 0.0
    %3543 = vmatpush.msra.mxu0 0.0
    %3544 = vmatpush.msra.mxu0 0.0
    %3545 = vmatpush.msra.mxu0 0.0
    %3546 = vmatpush.msra.mxu0 0.0
    %3547 = vmatpush.msra.mxu0 0.0
    %3548 = vmatpush.msra.mxu0 0.0
    %3549 = vmatpush.msra.mxu0 0.0
    %3550 = vmatpush.msra.mxu0 0.0
    %3551 = vmatpush.msra.mxu0 0.0
    %3552 = vmatpush.msra.mxu0 %v3529
    %3553 = vmatpush.msra.mxu0 %v3527
    %3554 = vmatmul.f32.gmra.mxu0 %v3533
    %v3555 = vpop.f32.mrf.mxu0
    %v3556 = vadd.f32 0.0, %v3555
    %3557 = vmatmul.f32.gmra.mxu0 %v3536
    %v3558 = vpop.f32.mrf.mxu0
    %v3559 = vadd.f32 0.0, %v3558
    %3560 = vdwg.mxu0
    %3561 = vrot.lane.b32.xlu0 %v3417, 120
    %v3562 = vpop.permute.xlu0 %3561
    %3563 = vrot.lane.b32.xlu0 %v3420, 120
    %v3564 = vpop.permute.xlu0 %3563
    %3565 = vrot.lane.b32.xlu0 %v3460, 120
    %v3566 = vpop.permute.xlu0 %3565
    %3567 = vrot.lane.b32.xlu0 %v3463, 120
    %v3568 = vpop.permute.xlu0 %3567
    %v3569 = vsel %vm167, %v3562, 0
    %v3571 = vsel %vm167, %v3564, 0
    %v3573 = vsel %vm167, %v3566, 0
    %v3575 = vsel %vm167, %v3568, 0
    %3577 = vmatpush.xpose.msra.mxu0 0.0
    %3578 = vmatpush.xpose.msra.mxu0 0.0
    %3579 = vmatpush.xpose.msra.mxu0 0.0
    %3580 = vmatpush.xpose.msra.mxu0 0.0
    %3581 = vmatpush.xpose.msra.mxu0 0.0
    %3582 = vmatpush.xpose.msra.mxu0 0.0
    %3583 = vmatpush.xpose.msra.mxu0 0.0
    %3584 = vmatpush.xpose.msra.mxu0 0.0
    %3585 = vmatpush.xpose.msra.mxu0 0.0
    %3586 = vmatpush.xpose.msra.mxu0 0.0
    %3587 = vmatpush.xpose.msra.mxu0 0.0
    %3588 = vmatpush.xpose.msra.mxu0 0.0
    %3589 = vmatpush.xpose.msra.mxu0 0.0
    %3590 = vmatpush.xpose.msra.mxu0 0.0
    %3591 = vmatpush.xpose.msra.mxu0 %v3575
    %3592 = vmatpush.xpose.msra.mxu0 %v3573
    %3593 = vmatmul.f32.gmra.mxu0 %v3569
    %v3594 = vpop.f32.mrf.mxu0
    %v3595 = vadd.f32 0.0, %v3594
    %3596 = vmatmul.f32.gmra.mxu0 %v3571
    %v3597 = vpop.f32.mrf.mxu0
    %v3598 = vadd.f32 0.0, %v3597
    %3599 = vdwg.mxu0
    %v3600 = vmul.f32 %v3595, 0.35355338
    %v3601 = vmul.f32 %v3598, 0.35355338
    %v3602 = vadd.f32 %v3600, %v1552
    %v3603 = vadd.f32 %v3601, %v1553
    %v3604 = vsel %vm203, %v3602, -inf
    %3605 = vmax.xlane.f32.xlu0 %v3604
    %v3606 = vpop.xlane.xlu0 %3605
    %v3607 = vsel %vm203, %v3603, -inf
    %3608 = vmax.xlane.f32.xlu0 %v3607
    %v3609 = vpop.xlane.xlu0 %3608
    %v3610 = vsub.f32 %v3602, %v3606
    %v3611 = vsub.f32 %v3603, %v3609
    %v3612 = vmul.f32 %v3610, 1.442695
    %v3613 = vpow.pop %v3612
    %v3614 = vmul.f32 %v3611, 1.442695
    %v3615 = vpow.pop %v3614
    %v3616 = vsel %vm203, %v3613, 0.0
    %3617 = vadd.xlane.f32.xlu0 %v3616
    %v3618 = vpop.xlane.xlu0 %3617
    %v3619 = vsel %vm203, %v3615, 0.0
    %3620 = vadd.xlane.f32.xlu0 %v3619
    %v3621 = vpop.xlane.xlu0 %3620
    %v3622 = vrcp.pop %v3618
    %v3623 = vrcp.pop %v3621
    %v3624 = vmul.f32 %v3613, %v3622
    %v3625 = vmul.f32 %v3615, %v3623
    %3626 = vrot.lane.b32.xlu0 %v3460, 88
    %v3627 = vpop.permute.xlu0 %3626
    %3628 = vrot.lane.b32.xlu0 %v3463, 88
    %v3629 = vpop.permute.xlu0 %3628
    %v3633 = vsel %vm203, %v3624, 0
    %v3636 = vsel %vm203, %v3625, 0
    %3638 = vmatpush.msra.mxu0 0.0
    %3639 = vmatpush.msra.mxu0 0.0
    %3640 = vmatpush.msra.mxu0 0.0
    %3641 = vmatpush.msra.mxu0 0.0
    %3642 = vmatpush.msra.mxu0 0.0
    %3643 = vmatpush.msra.mxu0 0.0
    %3644 = vmatpush.msra.mxu0 0.0
    %3645 = vmatpush.msra.mxu0 0.0
    %3646 = vmatpush.msra.mxu0 0.0
    %3647 = vmatpush.msra.mxu0 0.0
    %3648 = vmatpush.msra.mxu0 0.0
    %3649 = vmatpush.msra.mxu0 0.0
    %3650 = vmatpush.msra.mxu0 0.0
    %3651 = vmatpush.msra.mxu0 0.0
    %3652 = vmatpush.msra.mxu0 %v3629
    %3653 = vmatpush.msra.mxu0 %v3627
    %3654 = vmatmul.f32.gmra.mxu0 %v3633
    %v3655 = vpop.f32.mrf.mxu0
    %v3656 = vadd.f32 0.0, %v3655
    %3657 = vmatmul.f32.gmra.mxu0 %v3636
    %v3658 = vpop.f32.mrf.mxu0
    %v3659 = vadd.f32 0.0, %v3658
    %3660 = vdwg.mxu0
    %3661 = vrot.lane.b32.xlu0 %v3417, 112
    %v3662 = vpop.permute.xlu0 %3661
    %3663 = vrot.lane.b32.xlu0 %v3420, 112
    %v3664 = vpop.permute.xlu0 %3663
    %3665 = vrot.lane.b32.xlu0 %v3460, 112
    %v3666 = vpop.permute.xlu0 %3665
    %3667 = vrot.lane.b32.xlu0 %v3463, 112
    %v3668 = vpop.permute.xlu0 %3667
    %v3669 = vsel %vm167, %v3662, 0
    %v3671 = vsel %vm167, %v3664, 0
    %v3673 = vsel %vm167, %v3666, 0
    %v3675 = vsel %vm167, %v3668, 0
    %3677 = vmatpush.xpose.msra.mxu0 0.0
    %3678 = vmatpush.xpose.msra.mxu0 0.0
    %3679 = vmatpush.xpose.msra.mxu0 0.0
    %3680 = vmatpush.xpose.msra.mxu0 0.0
    %3681 = vmatpush.xpose.msra.mxu0 0.0
    %3682 = vmatpush.xpose.msra.mxu0 0.0
    %3683 = vmatpush.xpose.msra.mxu0 0.0
    %3684 = vmatpush.xpose.msra.mxu0 0.0
    %3685 = vmatpush.xpose.msra.mxu0 0.0
    %3686 = vmatpush.xpose.msra.mxu0 0.0
    %3687 = vmatpush.xpose.msra.mxu0 0.0
    %3688 = vmatpush.xpose.msra.mxu0 0.0
    %3689 = vmatpush.xpose.msra.mxu0 0.0
    %3690 = vmatpush.xpose.msra.mxu0 0.0
    %3691 = vmatpush.xpose.msra.mxu0 %v3675
    %3692 = vmatpush.xpose.msra.mxu0 %v3673
    %3693 = vmatmul.f32.gmra.mxu0 %v3669
    %v3694 = vpop.f32.mrf.mxu0
    %v3695 = vadd.f32 0.0, %v3694
    %3696 = vmatmul.f32.gmra.mxu0 %v3671
    %v3697 = vpop.f32.mrf.mxu0
    %v3698 = vadd.f32 0.0, %v3697
    %3699 = vdwg.mxu0
    %v3700 = vmul.f32 %v3695, 0.35355338
    %v3701 = vmul.f32 %v3698, 0.35355338
    %v3702 = vadd.f32 %v3700, %v1552
    %v3703 = vadd.f32 %v3701, %v1553
    %v3704 = vsel %vm203, %v3702, -inf
    %3705 = vmax.xlane.f32.xlu0 %v3704
    %v3706 = vpop.xlane.xlu0 %3705
    %v3707 = vsel %vm203, %v3703, -inf
    %3708 = vmax.xlane.f32.xlu0 %v3707
    %v3709 = vpop.xlane.xlu0 %3708
    %v3710 = vsub.f32 %v3702, %v3706
    %v3711 = vsub.f32 %v3703, %v3709
    %v3712 = vmul.f32 %v3710, 1.442695
    %v3713 = vpow.pop %v3712
    %v3714 = vmul.f32 %v3711, 1.442695
    %v3715 = vpow.pop %v3714
    %v3716 = vsel %vm203, %v3713, 0.0
    %3717 = vadd.xlane.f32.xlu0 %v3716
    %v3718 = vpop.xlane.xlu0 %3717
    %v3719 = vsel %vm203, %v3715, 0.0
    %3720 = vadd.xlane.f32.xlu0 %v3719
    %v3721 = vpop.xlane.xlu0 %3720
    %v3722 = vrcp.pop %v3718
    %v3723 = vrcp.pop %v3721
    %v3724 = vmul.f32 %v3713, %v3722
    %v3725 = vmul.f32 %v3715, %v3723
    %3726 = vrot.lane.b32.xlu0 %v3460, 80
    %v3727 = vpop.permute.xlu0 %3726
    %3728 = vrot.lane.b32.xlu0 %v3463, 80
    %v3729 = vpop.permute.xlu0 %3728
    %v3733 = vsel %vm203, %v3724, 0
    %v3736 = vsel %vm203, %v3725, 0
    %3738 = vmatpush.msra.mxu0 0.0
    %3739 = vmatpush.msra.mxu0 0.0
    %3740 = vmatpush.msra.mxu0 0.0
    %3741 = vmatpush.msra.mxu0 0.0
    %3742 = vmatpush.msra.mxu0 0.0
    %3743 = vmatpush.msra.mxu0 0.0
    %3744 = vmatpush.msra.mxu0 0.0
    %3745 = vmatpush.msra.mxu0 0.0
    %3746 = vmatpush.msra.mxu0 0.0
    %3747 = vmatpush.msra.mxu0 0.0
    %3748 = vmatpush.msra.mxu0 0.0
    %3749 = vmatpush.msra.mxu0 0.0
    %3750 = vmatpush.msra.mxu0 0.0
    %3751 = vmatpush.msra.mxu0 0.0
    %3752 = vmatpush.msra.mxu0 %v3729
    %3753 = vmatpush.msra.mxu0 %v3727
    %3754 = vmatmul.f32.gmra.mxu0 %v3733
    %v3755 = vpop.f32.mrf.mxu0
    %v3756 = vadd.f32 0.0, %v3755
    %3757 = vmatmul.f32.gmra.mxu0 %v3736
    %v3758 = vpop.f32.mrf.mxu0
    %v3759 = vadd.f32 0.0, %v3758
    %3760 = vdwg.mxu0
    %3761 = vrot.lane.b32.xlu0 %v3417, 104
    %v3762 = vpop.permute.xlu0 %3761
    %3763 = vrot.lane.b32.xlu0 %v3420, 104
    %v3764 = vpop.permute.xlu0 %3763
    %3765 = vrot.lane.b32.xlu0 %v3460, 104
    %v3766 = vpop.permute.xlu0 %3765
    %3767 = vrot.lane.b32.xlu0 %v3463, 104
    %v3768 = vpop.permute.xlu0 %3767
    %v3769 = vsel %vm167, %v3762, 0
    %v3771 = vsel %vm167, %v3764, 0
    %v3773 = vsel %vm167, %v3766, 0
    %v3775 = vsel %vm167, %v3768, 0
    %3777 = vmatpush.xpose.msra.mxu0 0.0
    %3778 = vmatpush.xpose.msra.mxu0 0.0
    %3779 = vmatpush.xpose.msra.mxu0 0.0
    %3780 = vmatpush.xpose.msra.mxu0 0.0
    %3781 = vmatpush.xpose.msra.mxu0 0.0
    %3782 = vmatpush.xpose.msra.mxu0 0.0
    %3783 = vmatpush.xpose.msra.mxu0 0.0
    %3784 = vmatpush.xpose.msra.mxu0 0.0
    %3785 = vmatpush.xpose.msra.mxu0 0.0
    %3786 = vmatpush.xpose.msra.mxu0 0.0
    %3787 = vmatpush.xpose.msra.mxu0 0.0
    %3788 = vmatpush.xpose.msra.mxu0 0.0
    %3789 = vmatpush.xpose.msra.mxu0 0.0
    %3790 = vmatpush.xpose.msra.mxu0 0.0
    %3791 = vmatpush.xpose.msra.mxu0 %v3775
    %3792 = vmatpush.xpose.msra.mxu0 %v3773
    %3793 = vmatmul.f32.gmra.mxu0 %v3769
    %v3794 = vpop.f32.mrf.mxu0
    %v3795 = vadd.f32 0.0, %v3794
    %3796 = vmatmul.f32.gmra.mxu0 %v3771
    %v3797 = vpop.f32.mrf.mxu0
    %v3798 = vadd.f32 0.0, %v3797
    %3799 = vdwg.mxu0
    %v3800 = vmul.f32 %v3795, 0.35355338
    %v3801 = vmul.f32 %v3798, 0.35355338
    %v3802 = vadd.f32 %v3800, %v1552
    %v3803 = vadd.f32 %v3801, %v1553
    %v3804 = vsel %vm203, %v3802, -inf
    %3805 = vmax.xlane.f32.xlu0 %v3804
    %v3806 = vpop.xlane.xlu0 %3805
    %v3807 = vsel %vm203, %v3803, -inf
    %3808 = vmax.xlane.f32.xlu0 %v3807
    %v3809 = vpop.xlane.xlu0 %3808
    %v3810 = vsub.f32 %v3802, %v3806
    %v3811 = vsub.f32 %v3803, %v3809
    %v3812 = vmul.f32 %v3810, 1.442695
    %v3813 = vpow.pop %v3812
    %v3814 = vmul.f32 %v3811, 1.442695
    %v3815 = vpow.pop %v3814
    %v3816 = vsel %vm203, %v3813, 0.0
    %3817 = vadd.xlane.f32.xlu0 %v3816
    %v3818 = vpop.xlane.xlu0 %3817
    %v3819 = vsel %vm203, %v3815, 0.0
    %3820 = vadd.xlane.f32.xlu0 %v3819
    %v3821 = vpop.xlane.xlu0 %3820
    %v3822 = vrcp.pop %v3818
    %v3823 = vrcp.pop %v3821
    %v3824 = vmul.f32 %v3813, %v3822
    %v3825 = vmul.f32 %v3815, %v3823
    %3826 = vrot.lane.b32.xlu0 %v3460, 72
    %v3827 = vpop.permute.xlu0 %3826
    %3828 = vrot.lane.b32.xlu0 %v3463, 72
    %v3829 = vpop.permute.xlu0 %3828
    %v3833 = vsel %vm203, %v3824, 0
    %v3836 = vsel %vm203, %v3825, 0
    %3838 = vmatpush.msra.mxu0 0.0
    %3839 = vmatpush.msra.mxu0 0.0
    %3840 = vmatpush.msra.mxu0 0.0
    %3841 = vmatpush.msra.mxu0 0.0
    %3842 = vmatpush.msra.mxu0 0.0
    %3843 = vmatpush.msra.mxu0 0.0
    %3844 = vmatpush.msra.mxu0 0.0
    %3845 = vmatpush.msra.mxu0 0.0
    %3846 = vmatpush.msra.mxu0 0.0
    %3847 = vmatpush.msra.mxu0 0.0
    %3848 = vmatpush.msra.mxu0 0.0
    %3849 = vmatpush.msra.mxu0 0.0
    %3850 = vmatpush.msra.mxu0 0.0
    %3851 = vmatpush.msra.mxu0 0.0
    %3852 = vmatpush.msra.mxu0 %v3829
    %3853 = vmatpush.msra.mxu0 %v3827
    %3854 = vmatmul.f32.gmra.mxu0 %v3833
    %v3855 = vpop.f32.mrf.mxu0
    %v3856 = vadd.f32 0.0, %v3855
    %3857 = vmatmul.f32.gmra.mxu0 %v3836
    %v3858 = vpop.f32.mrf.mxu0
    %v3859 = vadd.f32 0.0, %v3858
    %3860 = vdwg.mxu0
    %3863 = vrot.lane.b32.xlu0 %v3656, 8
    %v3864 = vpop.permute.xlu0 %3863
    %3865 = vrot.lane.b32.xlu0 %v3659, 8
    %v3866 = vpop.permute.xlu0 %3865
    %3871 = vrot.lane.b32.xlu0 %v3756, 16
    %v3872 = vpop.permute.xlu0 %3871
    %3873 = vrot.lane.b32.xlu0 %v3759, 16
    %v3874 = vpop.permute.xlu0 %3873
    %3879 = vrot.lane.b32.xlu0 %v3856, 24
    %v3880 = vpop.permute.xlu0 %3879
    %3881 = vrot.lane.b32.xlu0 %v3859, 24
    %v3882 = vpop.permute.xlu0 %3881
    %v3885 = vsel %vm167, %v3556, %v3864
    %v3886 = vsel %vm167, %v3559, %v3866
    %v3887 = vsel %vm203, %v3885, %v3872
    %v3888 = vsel %vm203, %v3886, %v3874
    %v3889 = vsel %vm589, %v3887, %v3880
    %v3890 = vsel %vm589, %v3888, %v3882
    %v3891 = vld [vmem:[#allocation2 + $0x70] sm:$0xff]
    %v3892 = vld [vmem:[#allocation2 + $0x100] sm:$0xff]
    %v3893 = vld [vmem:[#allocation2 + $0x190] sm:$0xff]
    %v3894 = vld [vmem:[#allocation2 + $0x220] sm:$0xff]
    %v3895 = vld [vmem:[%s9 + $0x1f] sm:$0x1]
    %v3896 = vperm.slane %v3895, 0
    %v3898 = vsel %vm88, %v3889, 0
    %v3901 = vsel %vm88, %v3890, 0
    %3903 = vmatpush.msra.mxu0 0.0
    %3904 = vmatpush.msra.mxu0 0.0
    %3905 = vmatpush.msra.mxu0 0.0
    %3906 = vmatpush.msra.mxu0 0.0
    %3907 = vmatpush.msra.mxu0 0.0
    %3908 = vmatpush.msra.mxu0 0.0
    %3909 = vmatpush.msra.mxu0 0.0
    %3910 = vmatpush.msra.mxu0 0.0
    %3911 = vmatpush.msra.mxu0 0.0
    %3912 = vmatpush.msra.mxu0 0.0
    %3913 = vmatpush.msra.mxu0 0.0
    %3914 = vmatpush.msra.mxu0 0.0
    %3915 = vmatpush.msra.mxu0 %v3894
    %3916 = vmatpush.msra.mxu0 %v3893
    %3917 = vmatpush.msra.mxu0 %v3892
    %3918 = vmatpush.msra.mxu0 %v3891
    %3919 = vmatmul.f32.gmra.mxu0 %v3898
    %v3920 = vpop.f32.mrf.mxu0
    %v3921 = vadd.f32 %v3896, %v3920
    %3922 = vmatmul.f32.gmra.mxu0 %v3901
    %v3923 = vpop.f32.mrf.mxu0
    %v3924 = vadd.f32 %v3896, %v3923
    %3925 = vdwg.mxu0
    %v3926 = vadd.f32 %v3921, %v3385
    %v3927 = vadd.f32 %v3924, %v3386
    %v3928 = vld [vmem:[%s9 + $0x24] sm:$0x1]
    %v3929 = vld [vmem:[%s9 + $0x25] sm:$0x1]
    %v3930 = vsel %vm88, %v3926, 0.0
    %3931 = vadd.xlane.f32.xlu0 %v3930
    %v3932 = vpop.xlane.xlu0 %3931
    %v3933 = vsel %vm88, %v3927, 0.0
    %3934 = vadd.xlane.f32.xlu0 %v3933
    %v3935 = vpop.xlane.xlu0 %3934
    %v3936 = vmul.f32 %v3932, %v643
    %v3937 = vmul.f32 %v3935, %v643
    %v3938 = vsub.f32 %v3926, %v3936
    %v3939 = vsub.f32 %v3927, %v3937
    %v3940 = vmul.f32 %v3938, %v3938
    %v3941 = vmul.f32 %v3939, %v3939
    %v3942 = vsel %vm88, %v3940, 0.0
    %3943 = vadd.xlane.f32.xlu0 %v3942
    %v3944 = vpop.xlane.xlu0 %3943
    %v3945 = vsel %vm88, %v3941, 0.0
    %3946 = vadd.xlane.f32.xlu0 %v3945
    %v3947 = vpop.xlane.xlu0 %3946
    %v3948 = vmul.f32 %v3944, %v643
    %v3949 = vmul.f32 %v3947, %v643
    %v3950 = vadd.f32 %v3948, 1e-05
    %v3951 = vadd.f32 %v3949, 1e-05
    %v3952 = vrsqrt.pop %v3950
    %v3953 = vmul.f32 %v3952, %v3950
    %v3954 = vmul.f32 %v3953, %v3952
    %v3955 = vmul.f32 0.5, %v3954
    %v3956 = vsub.f32 1.5, %v3955
    %v3957 = vmul.f32 %v3952, %v3956
    %vm3958 = vweird.f32 %v3950
    %vm3959 = vweird.f32 %v3952
    %vm3960 = vmor %vm3958, %vm3959
    %v3961 = vsel %vm3960, %v3952, %v3957
    %v3962 = vrsqrt.pop %v3951
    %v3963 = vmul.f32 %v3962, %v3951
    %v3964 = vmul.f32 %v3963, %v3962
    %v3965 = vmul.f32 0.5, %v3964
    %v3966 = vsub.f32 1.5, %v3965
    %v3967 = vmul.f32 %v3962, %v3966
    %vm3968 = vweird.f32 %v3951
    %vm3969 = vweird.f32 %v3962
    %vm3970 = vmor %vm3968, %vm3969
    %v3971 = vsel %vm3970, %v3962, %v3967
    %v3972 = vmul.f32 %v3938, %v3961
    %v3973 = vmul.f32 %v3939, %v3971
    %v3974 = vperm.slane %v3928, 0
    %v3975 = vmul.f32 %v3972, %v3974
    %v3976 = vmul.f32 %v3973, %v3974
    %v3977 = vperm.slane %v3929, 0
    %v3978 = vadd.f32 %v3975, %v3977
    %v3979 = vadd.f32 %v3976, %v3977
    %v3980 = vld [vmem:[#allocation2 + $0x78] sm:$0xff]
    %v3981 = vld [vmem:[#allocation2 + $0x108] sm:$0xff]
    %v3982 = vld [vmem:[#allocation2 + $0x198] sm:$0xff]
    %v3983 = vld [vmem:[#allocation2 + $0x228] sm:$0xff]
    %v3984 = vld [vmem:[%s9 + $0x20] sm:$0x1]
    %v3985 = vperm.slane %v3984, 0
    %v3987 = vsel %vm88, %v3978, 0
    %v3990 = vsel %vm88, %v3979, 0
    %3992 = vmatpush.msra.mxu0 0.0
    %3993 = vmatpush.msra.mxu0 0.0
    %3994 = vmatpush.msra.mxu0 0.0
    %3995 = vmatpush.msra.mxu0 0.0
    %3996 = vmatpush.msra.mxu0 0.0
    %3997 = vmatpush.msra.mxu0 0.0
    %3998 = vmatpush.msra.mxu0 0.0
    %3999 = vmatpush.msra.mxu0 0.0
    %4000 = vmatpush.msra.mxu0 0.0
    %4001 = vmatpush.msra.mxu0 0.0
    %4002 = vmatpush.msra.mxu0 0.0
    %4003 = vmatpush.msra.mxu0 0.0
    %4004 = vmatpush.msra.mxu0 %v3983
    %4005 = vmatpush.msra.mxu0 %v3982
    %4006 = vmatpush.msra.mxu0 %v3981
    %4007 = vmatpush.msra.mxu0 %v3980
    %4008 = vmatmul.f32.gmra.mxu0 %v3987
    %v4009 = vpop.f32.mrf.mxu0
    %v4010 = vadd.f32 %v3985, %v4009
    %4011 = vmatmul.f32.gmra.mxu0 %v3990
    %v4012 = vpop.f32.mrf.mxu0
    %v4013 = vadd.f32 %v3985, %v4012
    %4014 = vdwg.mxu0
    %v4015 = vmax.f32 %v4010, 0.0
    %v4016 = vmax.f32 %v4013, 0.0
    %v4017 = vld [vmem:[#allocation5 + $0x18] sm:$0xff]
    %v4018 = vld [vmem:[#allocation5 + $0x38] sm:$0xff]
    %v4019 = vld [vmem:[#allocation5 + $0x58] sm:$0xff]
    %v4020 = vld [vmem:[#allocation5 + $0x78] sm:$0xff]
    %v4021 = vld [vmem:[#allocation5 + $0x98] sm:$0xff]
    %v4022 = vld [vmem:[#allocation5 + $0xb8] sm:$0xff]
    %v4023 = vld [vmem:[#allocation5 + $0xd8] sm:$0xff]
    %v4024 = vld [vmem:[#allocation5 + $0xf8] sm:$0xff]
    %v4025 = vld [vmem:[%s9 + $0x21] sm:$0x1]
    %v4026 = vperm.slane %v4025, 0
    %v4028 = vsel %vm735, %v4015, 0
    %v4031 = vsel %vm735, %v4016, 0
    %4033 = vmatpush.msra.mxu0 0.0
    %4034 = vmatpush.msra.mxu0 0.0
    %4035 = vmatpush.msra.mxu0 0.0
    %4036 = vmatpush.msra.mxu0 0.0
    %4037 = vmatpush.msra.mxu0 0.0
    %4038 = vmatpush.msra.mxu0 0.0
    %4039 = vmatpush.msra.mxu0 0.0
    %4040 = vmatpush.msra.mxu0 0.0
    %4041 = vmatpush.msra.mxu0 %v4024
    %4042 = vmatpush.msra.mxu0 %v4023
    %4043 = vmatpush.msra.mxu0 %v4022
    %4044 = vmatpush.msra.mxu0 %v4021
    %4045 = vmatpush.msra.mxu0 %v4020
    %4046 = vmatpush.msra.mxu0 %v4019
    %4047 = vmatpush.msra.mxu0 %v4018
    %4048 = vmatpush.msra.mxu0 %v4017
    %4049 = vmatmul.f32.gmra.mxu0 %v4028
    %v4050 = vpop.f32.mrf.mxu0
    %v4051 = vadd.f32 %v4026, %v4050
    %4052 = vmatmul.f32.gmra.mxu0 %v4031
    %v4053 = vpop.f32.mrf.mxu0
    %v4054 = vadd.f32 %v4026, %v4053
    %4055 = vdwg.mxu0
    %v4056 = vadd.f32 %v4051, %v3978
    %v4057 = vadd.f32 %v4054, %v3979
    %v4058 = vld [vmem:[%s9 + $0x26] sm:$0x1]
    %v4059 = vld [vmem:[%s9 + $0x27] sm:$0x1]
    %v4060 = vsel %vm88, %v4056, 0.0
    %4061 = vadd.xlane.f32.xlu0 %v4060
    %v4062 = vpop.xlane.xlu0 %4061
    %v4063 = vsel %vm88, %v4057, 0.0
    %4064 = vadd.xlane.f32.xlu0 %v4063
    %v4065 = vpop.xlane.xlu0 %4064
    %v4066 = vmul.f32 %v4062, %v643
    %v4067 = vmul.f32 %v4065, %v643
    %v4068 = vsub.f32 %v4056, %v4066
    %v4069 = vsub.f32 %v4057, %v4067
    %v4070 = vmul.f32 %v4068, %v4068
    %v4071 = vmul.f32 %v4069, %v4069
    %v4072 = vsel %vm88, %v4070, 0.0
    %4073 = vadd.xlane.f32.xlu0 %v4072
    %v4074 = vpop.xlane.xlu0 %4073
    %v4075 = vsel %vm88, %v4071, 0.0
    %4076 = vadd.xlane.f32.xlu0 %v4075
    %v4077 = vpop.xlane.xlu0 %4076
    %v4078 = vmul.f32 %v4074, %v643
    %v4079 = vmul.f32 %v4077, %v643
    %v4080 = vadd.f32 %v4078, 1e-05
    %v4081 = vadd.f32 %v4079, 1e-05
    %v4082 = vrsqrt.pop %v4080
    %v4083 = vmul.f32 %v4082, %v4080
    %v4084 = vmul.f32 %v4083, %v4082
    %v4085 = vmul.f32 0.5, %v4084
    %v4086 = vsub.f32 1.5, %v4085
    %v4087 = vmul.f32 %v4082, %v4086
    %vm4088 = vweird.f32 %v4080
    %vm4089 = vweird.f32 %v4082
    %vm4090 = vmor %vm4088, %vm4089
    %v4091 = vsel %vm4090, %v4082, %v4087
    %v4092 = vrsqrt.pop %v4081
    %v4093 = vmul.f32 %v4092, %v4081
    %v4094 = vmul.f32 %v4093, %v4092
    %v4095 = vmul.f32 0.5, %v4094
    %v4096 = vsub.f32 1.5, %v4095
    %v4097 = vmul.f32 %v4092, %v4096
    %vm4098 = vweird.f32 %v4081
    %vm4099 = vweird.f32 %v4092
    %vm4100 = vmor %vm4098, %vm4099
    %v4101 = vsel %vm4100, %v4092, %v4097
    %v4102 = vmul.f32 %v4068, %v4091
    %v4103 = vmul.f32 %v4069, %v4101
    %v4104 = vperm.slane %v4058, 0
    %v4105 = vmul.f32 %v4102, %v4104
    %v4106 = vmul.f32 %v4103, %v4104
    %v4107 = vperm.slane %v4059, 0
    %v4108 = vadd.f32 %v4105, %v4107
    %v4109 = vadd.f32 %v4106, %v4107
    %v4110 = vld [vmem:[#allocation2 + $0x80] sm:$0xff]
    %v4111 = vld [vmem:[#allocation2 + $0x110] sm:$0xff]
    %v4112 = vld [vmem:[#allocation2 + $0x1a0] sm:$0xff]
    %v4113 = vld [vmem:[#allocation2 + $0x230] sm:$0xff]
    %v4114 = vld [vmem:[%s9 + $0x28] sm:$0x1]
    %v4115 = vperm.slane %v4114, 0
    %v4117 = vsel %vm88, %v4108, 0
    %v4120 = vsel %vm88, %v4109, 0
    %4122 = vmatpush.msra.mxu0 0.0
    %4123 = vmatpush.msra.mxu0 0.0
    %4124 = vmatpush.msra.mxu0 0.0
    %4125 = vmatpush.msra.mxu0 0.0
    %4126 = vmatpush.msra.mxu0 0.0
    %4127 = vmatpush.msra.mxu0 0.0
    %4128 = vmatpush.msra.mxu0 0.0
    %4129 = vmatpush.msra.mxu0 0.0
    %4130 = vmatpush.msra.mxu0 0.0
    %4131 = vmatpush.msra.mxu0 0.0
    %4132 = vmatpush.msra.mxu0 0.0
    %4133 = vmatpush.msra.mxu0 0.0
    %4134 = vmatpush.msra.mxu0 %v4113
    %4135 = vmatpush.msra.mxu0 %v4112
    %4136 = vmatpush.msra.mxu0 %v4111
    %4137 = vmatpush.msra.mxu0 %v4110
    %4138 = vmatmul.f32.gmra.mxu0 %v4117
    %v4139 = vpop.f32.mrf.mxu0
    %v4140 = vadd.f32 %v4115, %v4139
    %4141 = vmatmul.f32.gmra.mxu0 %v4120
    %v4142 = vpop.f32.mrf.mxu0
    %v4143 = vadd.f32 %v4115, %v4142
    %4144 = vdwg.mxu0
    %4145 = vmax.xlane.f32.xlu0 %v4140
    %v4146 = vpop.xlane.xlu0 %4145
    %4147 = vmax.xlane.f32.xlu0 %v4143
    %v4148 = vpop.xlane.xlu0 %4147
    %v4149 = vsub.f32 %v4140, %v4146
    %v4150 = vsub.f32 %v4143, %v4148
    %v4151 = vmul.f32 %v4149, 1.442695
    %v4152 = vpow.pop %v4151
    %v4153 = vmul.f32 %v4150, 1.442695
    %v4154 = vpow.pop %v4153
    %4155 = vadd.xlane.f32.xlu0 %v4152
    %v4156 = vpop.xlane.xlu0 %4155
    %4157 = vadd.xlane.f32.xlu0 %v4154
    %v4158 = vpop.xlane.xlu0 %4157
    %v4159 = vlog2.pop %v4156
    %v4160 = vmul.f32 %v4159, 0.6931472
    %v4161 = vlog2.pop %v4158
    %v4162 = vmul.f32 %v4161, 0.6931472
    %v4163 = vsub.f32 %v4149, %v4160
    %v4164 = vsub.f32 %v4150, %v4162
    %4165 = vst [vmem:[#allocation7] sm:$0xff] %v4163
    %4166 = vst [vmem:[#allocation7 + $0x8] sm:$0xff] %v4164
    // Predicated region
    $region50: #{transformer_forward.1} parent=1 // pred_check
      _
    $region51: #{transformer_forward.1} parent=1 // pred_check_branch
      %4168 = sbr.rel (0) target = $region53
    $region52: #{transformer_forward.1} parent=1 // pred_region
      %4170 = vsyncadd [#allocation4], 0
      %s4171 = sshll.u32 [#allocation7], 4
      %s4172 = int_to_ptr.vmem [resolvable:$true] %s4171
      %s4173 = sshll.u32 %s10, 4
      %s4174 = int_to_ptr.hbm [resolvable:$true] %s4173
      %4179 = dma.vmem_to_hbm [thread:$0]  %s4172, 256, %s4174, [#allocation4], 128, 128, 8
    $region53: #{transformer_forward.1} parent=1 // pred_fallthru
      _
    // Predicated region
    $region54: #{transformer_forward.1} parent=1 // pred_check
      _
    $region55: #{transformer_forward.1} parent=1 // pred_check_branch
      %4181 = sbr.rel (0) target = $region57
    $region56: #{transformer_forward.1} parent=1 // pred_region
      %4183 = dma.done [#allocation4], 256
    $region57: #{transformer_forward.1} parent=1 // pred_fallthru
      _
    %4184 = vsyncpa [#allocation3], 1
    %4185 = vsyncpa [#allocation6], 1
    %4186 = vsyncpa [#allocation4], 1

</llo_original>
